<compile_context>
chip_gen: v7x
topology: tpu7x:2x2x1
jax: 0.10.0
libtpu: 0.0.40
codegen_flags: <defaults>
</compile_context>

<pallas_src>
import jax
import jax.numpy as jnp
import numpy as np
from jax import lax
from jax.experimental import pallas as pl
from jax.experimental.pallas import tpu as pltpu


_LP = 8  # left pad (in W) of the f32 conv scratch -> interior store is sublane-aligned


def _decoder_bottleneck_kernel(
    x_ref,                      # (1, H, W, Cin)   f32  (true, un-padded Cin)
    s1_ref, b1_ref, w1_ref,     # (1,Cin_p) f32, (1,Cin_p) f32, (Cin_p,Chid_p) bf16
    s2_ref, b2_ref, w2_ref,     # (1,Chid_p), (1,Chid_p), (9*Chid_p, Chid_p) bf16 (tap-major)
    s3_ref, b3_ref,             # (1,Chid_p), (1,Chid_p)
    s4_ref, b4_ref,             # (1,Cin_p), (1,Cin_p)
    w3ds_ref,                   # (Chid_p + Cin_p, Cdn_p) bf16  = stacked [w3 ; wds]
    out_ref,                    # (1, H, W, Cdn)  f32  (true, un-padded Cdn)
    pad_ref,                    # scratch: (H+2, _LP + W + rpad, Chid_p) f32
):
    H, W = x_ref.shape[1], x_ref.shape[2]
    Cin = x_ref.shape[3]
    Cin_p = w1_ref.shape[0]
    Chid = w1_ref.shape[1]          # == Chid_p (lane-padded)
    Cdn = out_ref.shape[3]

    # Input DMA'd at true Cin; zero-extend to the lane-dense padded width in-register.
    xf = x_ref[...].reshape(H * W, Cin)
    if Cin_p != Cin:
        xf = jnp.concatenate(
            [xf, jnp.zeros((H * W, Cin_p - Cin), xf.dtype)], axis=-1)

    # ---- weight_layer1: BN -> ReLU -> 1x1 conv (matmul) -----------------------
    h = jnp.maximum(xf * s1_ref[...] + b1_ref[...], 0.0)
    h = jnp.dot(h.astype(jnp.bfloat16), w1_ref[...],
                preferred_element_type=jnp.float32)               # (H*W, Chid) f32

    # ---- weight_layer2: BN -> ReLU -> 3x3 SAME conv ----------------------------
    h = jnp.maximum(h * s2_ref[...] + b2_ref[...], 0.0)

    # Zero only what the im2col reads and the interior store does not rewrite:
    # the 1-wide left/right border columns and the top/bottom halo rows.
    # Done every grid step so the kernel stays correct under megacore sharding.
    pad_ref[0:1, _LP - 1:_LP + W + 1, :] = jnp.zeros((1, W + 2, Chid), jnp.float32)
    pad_ref[H + 1:H + 2, _LP - 1:_LP + W + 1, :] = jnp.zeros((1, W + 2, Chid),
                                                             jnp.float32)
    pad_ref[1:H + 1, _LP - 1:_LP, :] = jnp.zeros((H, 1, Chid), jnp.float32)
    pad_ref[1:H + 1, _LP + W:_LP + W + 1, :] = jnp.zeros((H, 1, Chid), jnp.float32)
    # Sublane-aligned, unmasked interior store (offset _LP is a multiple of 8).
    pad_ref[1:H + 1, _LP:_LP + W, :] = h.reshape(H, W, Chid)

    # Conv as three K=3*Chid matmuls (one per kernel row dh), f32 accumulation in
    # registers: the im2col slab stays at (H*W, 3*Chid) bf16 and is reused per dh.
    acc = None
    for dh in range(3):
        band = pad_ref[dh:dh + H, :, :]                           # (H, Wp, Chid) f32
        taps = []
        for dw in range(3):
            c0 = _LP - 1 + dw
            taps.append(band[:, c0:c0 + W, :]
                        .reshape(H * W, Chid).astype(jnp.bfloat16))
        slab = jnp.concatenate(taps, axis=-1)                     # (H*W, 3*Chid) bf16
        part = jnp.dot(slab, w2_ref[dh * 3 * Chid:(dh + 1) * 3 * Chid, :],
                       preferred_element_type=jnp.float32)
        acc = part if acc is None else acc + part
    h = acc                                                       # (H*W, Chid) f32

    # ---- weight_layer3 + down_scale identity fused into ONE matmul -------------
    # lhs = [ReLU(BN3(h)) | ReLU(BN4(x))], rhs = [w3 ; wds]: the residual add is
    # absorbed into the K-axis accumulation of a single full-depth MXU pass.
    lhs = jnp.concatenate(
        [jnp.maximum(h * s3_ref[...] + b3_ref[...], 0.0).astype(jnp.bfloat16),
         jnp.maximum(xf * s4_ref[...] + b4_ref[...], 0.0).astype(jnp.bfloat16)],
        axis=-1)                                                  # (H*W, Chid_p+Cin_p)
    res = jnp.dot(lhs, w3ds_ref[...], preferred_element_type=jnp.float32)

    # Output written at the true channel count (lane-padded columns dropped in-register).
    out_ref[...] = res[:, :Cdn].reshape(1, H, W, Cdn).astype(out_ref.dtype)


def _round_up(n, m):
    return (n + m - 1) // m * m


def _vmem_limit_bytes():
    # v5e / v6e have 128 MiB physical VMEM per core, v7x has 64 MiB: request ~3/4 of
    # physical (headroom for Mosaic internals), capped at 96 MiB.
    try:
        cap = pltpu.get_tpu_info().vmem_capacity_bytes
    except Exception:
        cap = 64 * 1024 * 1024
    return int(min(96 * 1024 * 1024, cap * 3 // 4))


def _const_spec(shape):
    # Grid-invariant operand (constant index_map): single-buffer it so the pipeline does
    # not double its VMEM footprint.
    idx = lambda n: (0,) * len(shape)
    try:
        return pl.BlockSpec(shape, idx, pipeline_mode=pl.Buffered(1))
    except TypeError:       # older jax without BlockSpec.pipeline_mode
        return pl.BlockSpec(shape, idx)


def decoder_bottleneck_forward(x, params):
    """x: (N, H, W, Cin) float32 NHWC. Returns (N, H, W, Cdown) float32."""
    N, H, W, Cin = x.shape
    Chid = params["w1"].shape[1]
    Cdn = params["w3"].shape[1]

    # Lane-dense channel padding for weights / folded-BN vectors only (zero pad: padded
    # channels stay exactly zero through BN(0,0)->ReLU->zero weight rows/cols).  x and the
    # output stay at their true channel counts in HBM; the kernel pads/slices in-register.
    Cin_p = _round_up(Cin, 128)
    Chid_p = _round_up(Chid, 128)
    Cdn_p = _round_up(Cdn, 128)

    def padv(v, c):
        return jnp.pad(v, ((0, 0), (0, c - v.shape[1])))

    def padm(m, r, c):
        return jnp.pad(m, ((0, r - m.shape[0]), (0, c - m.shape[1])))

    s1 = padv(params["s1"], Cin_p);  b1 = padv(params["b1"], Cin_p)
    s2 = padv(params["s2"], Chid_p); b2 = padv(params["b2"], Chid_p)
    s3 = padv(params["s3"], Chid_p); b3 = padv(params["b3"], Chid_p)
    s4 = padv(params["s4"], Cin_p);  b4 = padv(params["b4"], Cin_p)

    w1 = padm(params["w1"], Cin_p, Chid_p).astype(jnp.bfloat16)
    w2p = jnp.pad(params["w2_hwio"],
                  ((0, 0), (0, 0), (0, Chid_p - Chid), (0, Chid_p - Chid)))
    w2f = w2p.reshape(9 * Chid_p, Chid_p).astype(jnp.bfloat16)    # tap-major rows
    # Fused layer3 + identity weight: [w3 ; wds] stacked along K.
    w3ds = jnp.concatenate(
        [padm(params["w3"], Chid_p, Cdn_p),
         padm(params["wds"], Cin_p, Cdn_p)], axis=0).astype(jnp.bfloat16)

    # f32 conv scratch width: left pad _LP (sublane-aligned interior store), >=1 right
    # border column, total width a multiple of 8.
    w_rpad = (-(W + 1)) % 8 + 1
    Wp = _LP + W + w_rpad

    in_specs = [
        pl.BlockSpec((1, H, W, Cin), lambda n: (n, 0, 0, 0)),
        _const_spec((1, Cin_p)), _const_spec((1, Cin_p)),
        _const_spec((Cin_p, Chid_p)),
        _const_spec((1, Chid_p)), _const_spec((1, Chid_p)),
        _const_spec((9 * Chid_p, Chid_p)),
        _const_spec((1, Chid_p)), _const_spec((1, Chid_p)),
        _const_spec((1, Cin_p)), _const_spec((1, Cin_p)),
        _const_spec((Chid_p + Cin_p, Cdn_p)),
    ]

    out = pl.pallas_call(
        _decoder_bottleneck_kernel,
        out_shape=jax.ShapeDtypeStruct((N, H, W, Cdn), jnp.float32),
        grid=(N,),
        in_specs=in_specs,
        out_specs=pl.BlockSpec((1, H, W, Cdn), lambda n: (n, 0, 0, 0)),
        scratch_shapes=[pltpu.VMEM((H + 2, Wp, Chid_p), jnp.float32)],
        compiler_params=pltpu.CompilerParams(
            dimension_semantics=("parallel",),
            vmem_limit_bytes=_vmem_limit_bytes()),
    )(x, s1, b1, w1, s2, b2, w2f, s3, b3, s4, b4, w3ds)
    return out


# ----------------------------------------------------------------------------
# Deterministic parameter construction (matching PyTorch module shapes) + ref.
# ----------------------------------------------------------------------------
def _fold_bn(gamma, beta, mean, var, eps=1e-5):
    scale = gamma / jnp.sqrt(var + eps)
    bias = beta - mean * scale
    return scale.reshape(1, -1), bias.reshape(1, -1)


def make_params(key, in_channels, hidden_channels, down_channels):
    ks = jax.random.split(key, 8)

    def bn(k, c):
        k1, k2, k3, k4 = jax.random.split(k, 4)
        gamma = 1.0 + 0.1 * jax.random.normal(k1, (c,), jnp.float32)
        beta = 0.1 * jax.random.normal(k2, (c,), jnp.float32)
        mean = 0.1 * jax.random.normal(k3, (c,), jnp.float32)
        var = 1.0 + 0.2 * jax.random.uniform(k4, (c,), jnp.float32)
        return _fold_bn(gamma, beta, mean, var)

    s1, b1 = bn(ks[0], in_channels)
    s2, b2 = bn(ks[1], hidden_channels)
    s3, b3 = bn(ks[2], hidden_channels)
    s4, b4 = bn(ks[3], in_channels)

    # PyTorch conv weights are OIHW; convert 1x1 -> (Cin, Cout), 3x3 -> HWIO.
    w1_oihw = 0.1 * jax.random.normal(ks[4], (hidden_channels, in_channels, 1, 1), jnp.float32)
    w2_oihw = 0.1 * jax.random.normal(ks[5], (hidden_channels, hidden_channels, 3, 3), jnp.float32)
    w3_oihw = 0.1 * jax.random.normal(ks[6], (down_channels, hidden_channels, 1, 1), jnp.float32)
    wd_oihw = 0.1 * jax.random.normal(ks[7], (down_channels, in_channels, 1, 1), jnp.float32)

    return {
        "s1": s1, "b1": b1, "w1": w1_oihw[:, :, 0, 0].T,                 # (Cin, Chid)
        "s2": s2, "b2": b2, "w2_hwio": jnp.transpose(w2_oihw, (2, 3, 1, 0)),  # (3,3,Chid,Chid)
        "s3": s3, "b3": b3, "w3": w3_oihw[:, :, 0, 0].T,                 # (Chid, Cdown)
        "s4": s4, "b4": b4, "wds": wd_oihw[:, :, 0, 0].T,                # (Cin, Cdown)
    }


def reference_forward(x, p):
    """Pure-JAX reference mirroring the kernel math (bf16 matmul operands, f32 accum)."""
    def bnrelu(t, s, b):
        return jnp.maximum(t * s.reshape(1, 1, 1, -1) + b.reshape(1, 1, 1, -1), 0.0)

    def mm(t, w):
        return jnp.einsum("nhwc,cd->nhwd", t.astype(jnp.bfloat16), w.astype(jnp.bfloat16),
                          preferred_element_type=jnp.float32)

    h = mm(bnrelu(x, p["s1"], p["b1"]), p["w1"])
    h = bnrelu(h, p["s2"], p["b2"])
    h = lax.conv_general_dilated(
        h.astype(jnp.bfloat16), p["w2_hwio"].astype(jnp.bfloat16), (1, 1), "SAME",
        dimension_numbers=("NHWC", "HWIO", "NHWC"),
        preferred_element_type=jnp.float32)
    h = mm(bnrelu(h, p["s3"], p["b3"]), p["w3"])
    idt = mm(bnrelu(x, p["s4"], p["b4"]), p["wds"])
    return h + idt


if __name__ == "__main__":
    N, H, W = 2, 16, 16
    in_channels, hidden_channels, down_channels = 4, 8, 8  # upsample=False, in != down

    key = jax.random.PRNGKey(0)
    kx, kp = jax.random.split(key)
    x = jax.random.normal(kx, (N, H, W, in_channels), jnp.float32)  # NHWC
    params = make_params(kp, in_channels, hidden_channels, down_channels)

    fwd = jax.jit(decoder_bottleneck_forward)
    out = jax.block_until_ready(fwd(x, params))

    ref = jax.block_until_ready(reference_forward(x, params))
    np.testing.assert_allclose(np.asarray(out), np.asarray(ref), rtol=2e-2, atol=2e-3)

    print("KERNEL_OK")
</pallas_src>

<mosaic_0001>
module attributes {stable_mosaic.version = 11 : i64} {
  func.func @_decoder_bottleneck_kernel(%arg0: i32, %arg1: memref<1x16x16x4xf32, #tpu.memory_space<vmem>>, %arg2: memref<1x128xf32, #tpu.memory_space<vmem>>, %arg3: memref<1x128xf32, #tpu.memory_space<vmem>>, %arg4: memref<128x128xbf16, #tpu.memory_space<vmem>>, %arg5: memref<1x128xf32, #tpu.memory_space<vmem>>, %arg6: memref<1x128xf32, #tpu.memory_space<vmem>>, %arg7: memref<1152x128xbf16, #tpu.memory_space<vmem>>, %arg8: memref<1x128xf32, #tpu.memory_space<vmem>>, %arg9: memref<1x128xf32, #tpu.memory_space<vmem>>, %arg10: memref<1x128xf32, #tpu.memory_space<vmem>>, %arg11: memref<1x128xf32, #tpu.memory_space<vmem>>, %arg12: memref<256x128xbf16, #tpu.memory_space<vmem>>, %arg13: memref<1x16x16x8xf32, #tpu.memory_space<vmem>>, %arg14: memref<18x32x128xf32, #tpu.memory_space<vmem>>) attributes {dimension_semantics = [#tpu.dimension_semantics<parallel>], iteration_bounds = array<i64: 2>, scalar_prefetch = 0 : i64, scratch_operands = 1 : i64, tpu.core_type = #tpu.core_type<tc>, window_params = [{transform_indices = @transform_0, window_bounds = array<i64: 1, 16, 16, 4>}, {pipeline_mode = #tpu.pipeline_mode<synchronous>, transform_indices = @transform_1, window_bounds = array<i64: 1, 128>}, {pipeline_mode = #tpu.pipeline_mode<synchronous>, transform_indices = @transform_2, window_bounds = array<i64: 1, 128>}, {pipeline_mode = #tpu.pipeline_mode<synchronous>, transform_indices = @transform_3, window_bounds = array<i64: 128, 128>}, {pipeline_mode = #tpu.pipeline_mode<synchronous>, transform_indices = @transform_4, window_bounds = array<i64: 1, 128>}, {pipeline_mode = #tpu.pipeline_mode<synchronous>, transform_indices = @transform_5, window_bounds = array<i64: 1, 128>}, {pipeline_mode = #tpu.pipeline_mode<synchronous>, transform_indices = @transform_6, window_bounds = array<i64: 1152, 128>}, {pipeline_mode = #tpu.pipeline_mode<synchronous>, transform_indices = @transform_7, window_bounds = array<i64: 1, 128>}, {pipeline_mode = #tpu.pipeline_mode<synchronous>, transform_indices = @transform_8, window_bounds = array<i64: 1, 128>}, {pipeline_mode = #tpu.pipeline_mode<synchronous>, transform_indices = @transform_9, window_bounds = array<i64: 1, 128>}, {pipeline_mode = #tpu.pipeline_mode<synchronous>, transform_indices = @transform_10, window_bounds = array<i64: 1, 128>}, {pipeline_mode = #tpu.pipeline_mode<synchronous>, transform_indices = @transform_11, window_bounds = array<i64: 256, 128>}, {transform_indices = @transform_12, window_bounds = array<i64: 1, 16, 16, 8>}]} {
    %c0 = arith.constant 0 : index
    %c0_0 = arith.constant 0 : index
    %c0_1 = arith.constant 0 : index
    %c0_2 = arith.constant 0 : index
    %0 = vector.load %arg1[%c0, %c0_0, %c0_1, %c0_2] : memref<1x16x16x4xf32, #tpu.memory_space<vmem>>, vector<1x16x16x4xf32>
    %1 = vector.shape_cast %0 : vector<1x16x16x4xf32> to vector<256x4xf32>
    %cst = arith.constant 0.000000e+00 : f32
    %2 = vector.broadcast %cst : f32 to vector<256x124xf32>
    %3 = tpu.concatenate %1, %2 in 1 : vector<256x4xf32>, vector<256x124xf32> -> vector<256x128xf32>
    %c0_3 = arith.constant 0 : index
    %c0_4 = arith.constant 0 : index
    %4 = vector.load %arg2[%c0_3, %c0_4] : memref<1x128xf32, #tpu.memory_space<vmem>>, vector<1x128xf32>
    %5 = vector.broadcast %4 : vector<1x128xf32> to vector<256x128xf32>
    %6 = arith.mulf %3, %5 : vector<256x128xf32>
    %c0_5 = arith.constant 0 : index
    %c0_6 = arith.constant 0 : index
    %7 = vector.load %arg3[%c0_5, %c0_6] : memref<1x128xf32, #tpu.memory_space<vmem>>, vector<1x128xf32>
    %8 = vector.broadcast %7 : vector<1x128xf32> to vector<256x128xf32>
    %9 = arith.addf %6, %8 : vector<256x128xf32>
    %cst_7 = arith.constant 0.000000e+00 : f32
    %10 = vector.broadcast %cst_7 : f32 to vector<256x128xf32>
    %11 = arith.maximumf %9, %10 : vector<256x128xf32>
    %12 = arith.truncf %11 : vector<256x128xf32> to vector<256x128xbf16>
    %c0_8 = arith.constant 0 : index
    %c0_9 = arith.constant 0 : index
    %13 = vector.load %arg4[%c0_8, %c0_9] : memref<128x128xbf16, #tpu.memory_space<vmem>>, vector<128x128xbf16>
    %cst_10 = arith.constant dense<0.000000e+00> : vector<256x128xf32>
    %14 = tpu.matmul %12, %13, %cst_10 {dimension_numbers = #tpu.dot_dimension_numbers<[1], [0], [0], [1], [0, 0, 1, 1], [], []>} : vector<256x128xbf16>, vector<128x128xbf16>, vector<256x128xf32> -> vector<256x128xf32>
    %c0_11 = arith.constant 0 : index
    %c0_12 = arith.constant 0 : index
    %15 = vector.load %arg5[%c0_11, %c0_12] : memref<1x128xf32, #tpu.memory_space<vmem>>, vector<1x128xf32>
    %16 = vector.broadcast %15 : vector<1x128xf32> to vector<256x128xf32>
    %17 = arith.mulf %14, %16 : vector<256x128xf32>
    %c0_13 = arith.constant 0 : index
    %c0_14 = arith.constant 0 : index
    %18 = vector.load %arg6[%c0_13, %c0_14] : memref<1x128xf32, #tpu.memory_space<vmem>>, vector<1x128xf32>
    %19 = vector.broadcast %18 : vector<1x128xf32> to vector<256x128xf32>
    %20 = arith.addf %17, %19 : vector<256x128xf32>
    %cst_15 = arith.constant 0.000000e+00 : f32
    %21 = vector.broadcast %cst_15 : f32 to vector<256x128xf32>
    %22 = arith.maximumf %20, %21 : vector<256x128xf32>
    %cst_16 = arith.constant 0.000000e+00 : f32
    %23 = vector.broadcast %cst_16 : f32 to vector<1x18x128xf32>
    %c0_17 = arith.constant 0 : index
    %c7 = arith.constant 7 : index
    %c0_18 = arith.constant 0 : index
    %24 = vector.load %arg14[%c0_17, %c7, %c0_18] : memref<18x32x128xf32, #tpu.memory_space<vmem>>, vector<1x18x128xf32>
    tpu.vector_store %arg14[%c0_17, %c7, %c0_18], %23 {strides = array<i32>} : memref<18x32x128xf32, #tpu.memory_space<vmem>>, vector<1x18x128xf32>,
    %cst_19 = arith.constant 0.000000e+00 : f32
    %25 = vector.broadcast %cst_19 : f32 to vector<1x18x128xf32>
    %c17 = arith.constant 17 : index
    %c7_20 = arith.constant 7 : index
    %c0_21 = arith.constant 0 : index
    %26 = vector.load %arg14[%c17, %c7_20, %c0_21] : memref<18x32x128xf32, #tpu.memory_space<vmem>>, vector<1x18x128xf32>
    tpu.vector_store %arg14[%c17, %c7_20, %c0_21], %25 {strides = array<i32>} : memref<18x32x128xf32, #tpu.memory_space<vmem>>, vector<1x18x128xf32>,
    %cst_22 = arith.constant 0.000000e+00 : f32
    %27 = vector.broadcast %cst_22 : f32 to vector<16x1x128xf32>
    %c1 = arith.constant 1 : index
    %c7_23 = arith.constant 7 : index
    %c0_24 = arith.constant 0 : index
    %28 = vector.load %arg14[%c1, %c7_23, %c0_24] : memref<18x32x128xf32, #tpu.memory_space<vmem>>, vector<16x1x128xf32>
    tpu.vector_store %arg14[%c1, %c7_23, %c0_24], %27 {strides = array<i32>} : memref<18x32x128xf32, #tpu.memory_space<vmem>>, vector<16x1x128xf32>,
    %cst_25 = arith.constant 0.000000e+00 : f32
    %29 = vector.broadcast %cst_25 : f32 to vector<16x1x128xf32>
    %c1_26 = arith.constant 1 : index
    %c24 = arith.constant 24 : index
    %c0_27 = arith.constant 0 : index
    %30 = vector.load %arg14[%c1_26, %c24, %c0_27] : memref<18x32x128xf32, #tpu.memory_space<vmem>>, vector<16x1x128xf32>
    tpu.vector_store %arg14[%c1_26, %c24, %c0_27], %29 {strides = array<i32>} : memref<18x32x128xf32, #tpu.memory_space<vmem>>, vector<16x1x128xf32>,
    %31 = vector.shape_cast %22 : vector<256x128xf32> to vector<16x16x128xf32>
    %c1_28 = arith.constant 1 : index
    %c8 = arith.constant 8 : index
    %c0_29 = arith.constant 0 : index
    %32 = vector.load %arg14[%c1_28, %c8, %c0_29] : memref<18x32x128xf32, #tpu.memory_space<vmem>>, vector<16x16x128xf32>
    tpu.vector_store %arg14[%c1_28, %c8, %c0_29], %31 {strides = array<i32>} : memref<18x32x128xf32, #tpu.memory_space<vmem>>, vector<16x16x128xf32>,
    %c0_30 = arith.constant 0 : index
    %c0_31 = arith.constant 0 : index
    %c0_32 = arith.constant 0 : index
    %33 = vector.load %arg14[%c0_30, %c0_31, %c0_32] : memref<18x32x128xf32, #tpu.memory_space<vmem>>, vector<16x32x128xf32>
    %34 = vector.extract_strided_slice %33 {offsets = [0, 7, 0], sizes = [16, 16, 128], strides = [1, 1, 1]} : vector<16x32x128xf32> to vector<16x16x128xf32>
    %35 = vector.shape_cast %34 : vector<16x16x128xf32> to vector<256x128xf32>
    %36 = arith.truncf %35 : vector<256x128xf32> to vector<256x128xbf16>
    %37 = vector.extract_strided_slice %33 {offsets = [0, 8, 0], sizes = [16, 16, 128], strides = [1, 1, 1]} : vector<16x32x128xf32> to vector<16x16x128xf32>
    %38 = vector.shape_cast %37 : vector<16x16x128xf32> to vector<256x128xf32>
    %39 = arith.truncf %38 : vector<256x128xf32> to vector<256x128xbf16>
    %40 = vector.extract_strided_slice %33 {offsets = [0, 9, 0], sizes = [16, 16, 128], strides = [1, 1, 1]} : vector<16x32x128xf32> to vector<16x16x128xf32>
    %41 = vector.shape_cast %40 : vector<16x16x128xf32> to vector<256x128xf32>
    %42 = arith.truncf %41 : vector<256x128xf32> to vector<256x128xbf16>
    %43 = tpu.concatenate %36, %39, %42 in 1 : vector<256x128xbf16>, vector<256x128xbf16>, vector<256x128xbf16> -> vector<256x384xbf16>
    %c0_33 = arith.constant 0 : index
    %c0_34 = arith.constant 0 : index
    %44 = vector.load %arg7[%c0_33, %c0_34] : memref<1152x128xbf16, #tpu.memory_space<vmem>>, vector<384x128xbf16>
    %cst_35 = arith.constant dense<0.000000e+00> : vector<256x128xf32>
    %45 = tpu.matmul %43, %44, %cst_35 {dimension_numbers = #tpu.dot_dimension_numbers<[1], [0], [0], [1], [0, 0, 1, 1], [], []>} : vector<256x384xbf16>, vector<384x128xbf16>, vector<256x128xf32> -> vector<256x128xf32>
    %c1_36 = arith.constant 1 : index
    %c0_37 = arith.constant 0 : index
    %c0_38 = arith.constant 0 : index
    %46 = vector.load %arg14[%c1_36, %c0_37, %c0_38] : memref<18x32x128xf32, #tpu.memory_space<vmem>>, vector<16x32x128xf32>
    %47 = vector.extract_strided_slice %46 {offsets = [0, 7, 0], sizes = [16, 16, 128], strides = [1, 1, 1]} : vector<16x32x128xf32> to vector<16x16x128xf32>
    %48 = vector.shape_cast %47 : vector<16x16x128xf32> to vector<256x128xf32>
    %49 = arith.truncf %48 : vector<256x128xf32> to vector<256x128xbf16>
    %50 = vector.extract_strided_slice %46 {offsets = [0, 8, 0], sizes = [16, 16, 128], strides = [1, 1, 1]} : vector<16x32x128xf32> to vector<16x16x128xf32>
    %51 = vector.shape_cast %50 : vector<16x16x128xf32> to vector<256x128xf32>
    %52 = arith.truncf %51 : vector<256x128xf32> to vector<256x128xbf16>
    %53 = vector.extract_strided_slice %46 {offsets = [0, 9, 0], sizes = [16, 16, 128], strides = [1, 1, 1]} : vector<16x32x128xf32> to vector<16x16x128xf32>
    %54 = vector.shape_cast %53 : vector<16x16x128xf32> to vector<256x128xf32>
    %55 = arith.truncf %54 : vector<256x128xf32> to vector<256x128xbf16>
    %56 = tpu.concatenate %49, %52, %55 in 1 : vector<256x128xbf16>, vector<256x128xbf16>, vector<256x128xbf16> -> vector<256x384xbf16>
    %c384 = arith.constant 384 : index
    %c0_39 = arith.constant 0 : index
    %57 = vector.load %arg7[%c384, %c0_39] : memref<1152x128xbf16, #tpu.memory_space<vmem>>, vector<384x128xbf16>
    %cst_40 = arith.constant dense<0.000000e+00> : vector<256x128xf32>
    %58 = tpu.matmul %56, %57, %cst_40 {dimension_numbers = #tpu.dot_dimension_numbers<[1], [0], [0], [1], [0, 0, 1, 1], [], []>} : vector<256x384xbf16>, vector<384x128xbf16>, vector<256x128xf32> -> vector<256x128xf32>
    %59 = arith.addf %45, %58 : vector<256x128xf32>
    %c2 = arith.constant 2 : index
    %c0_41 = arith.constant 0 : index
    %c0_42 = arith.constant 0 : index
    %60 = vector.load %arg14[%c2, %c0_41, %c0_42] : memref<18x32x128xf32, #tpu.memory_space<vmem>>, vector<16x32x128xf32>
    %61 = vector.extract_strided_slice %60 {offsets = [0, 7, 0], sizes = [16, 16, 128], strides = [1, 1, 1]} : vector<16x32x128xf32> to vector<16x16x128xf32>
    %62 = vector.shape_cast %61 : vector<16x16x128xf32> to vector<256x128xf32>
    %63 = arith.truncf %62 : vector<256x128xf32> to vector<256x128xbf16>
    %64 = vector.extract_strided_slice %60 {offsets = [0, 8, 0], sizes = [16, 16, 128], strides = [1, 1, 1]} : vector<16x32x128xf32> to vector<16x16x128xf32>
    %65 = vector.shape_cast %64 : vector<16x16x128xf32> to vector<256x128xf32>
    %66 = arith.truncf %65 : vector<256x128xf32> to vector<256x128xbf16>
    %67 = vector.extract_strided_slice %60 {offsets = [0, 9, 0], sizes = [16, 16, 128], strides = [1, 1, 1]} : vector<16x32x128xf32> to vector<16x16x128xf32>
    %68 = vector.shape_cast %67 : vector<16x16x128xf32> to vector<256x128xf32>
    %69 = arith.truncf %68 : vector<256x128xf32> to vector<256x128xbf16>
    %70 = tpu.concatenate %63, %66, %69 in 1 : vector<256x128xbf16>, vector<256x128xbf16>, vector<256x128xbf16> -> vector<256x384xbf16>
    %c768 = arith.constant 768 : index
    %c0_43 = arith.constant 0 : index
    %71 = vector.load %arg7[%c768, %c0_43] : memref<1152x128xbf16, #tpu.memory_space<vmem>>, vector<384x128xbf16>
    %cst_44 = arith.constant dense<0.000000e+00> : vector<256x128xf32>
    %72 = tpu.matmul %70, %71, %cst_44 {dimension_numbers = #tpu.dot_dimension_numbers<[1], [0], [0], [1], [0, 0, 1, 1], [], []>} : vector<256x384xbf16>, vector<384x128xbf16>, vector<256x128xf32> -> vector<256x128xf32>
    %73 = arith.addf %59, %72 : vector<256x128xf32>
    %c0_45 = arith.constant 0 : index
    %c0_46 = arith.constant 0 : index
    %74 = vector.load %arg8[%c0_45, %c0_46] : memref<1x128xf32, #tpu.memory_space<vmem>>, vector<1x128xf32>
    %75 = vector.broadcast %74 : vector<1x128xf32> to vector<256x128xf32>
    %76 = arith.mulf %73, %75 : vector<256x128xf32>
    %c0_47 = arith.constant 0 : index
    %c0_48 = arith.constant 0 : index
    %77 = vector.load %arg9[%c0_47, %c0_48] : memref<1x128xf32, #tpu.memory_space<vmem>>, vector<1x128xf32>
    %78 = vector.broadcast %77 : vector<1x128xf32> to vector<256x128xf32>
    %79 = arith.addf %76, %78 : vector<256x128xf32>
    %cst_49 = arith.constant 0.000000e+00 : f32
    %80 = vector.broadcast %cst_49 : f32 to vector<256x128xf32>
    %81 = arith.maximumf %79, %80 : vector<256x128xf32>
    %82 = arith.truncf %81 : vector<256x128xf32> to vector<256x128xbf16>
    %c0_50 = arith.constant 0 : index
    %c0_51 = arith.constant 0 : index
    %83 = vector.load %arg10[%c0_50, %c0_51] : memref<1x128xf32, #tpu.memory_space<vmem>>, vector<1x128xf32>
    %84 = vector.broadcast %83 : vector<1x128xf32> to vector<256x128xf32>
    %85 = arith.mulf %3, %84 : vector<256x128xf32>
    %c0_52 = arith.constant 0 : index
    %c0_53 = arith.constant 0 : index
    %86 = vector.load %arg11[%c0_52, %c0_53] : memref<1x128xf32, #tpu.memory_space<vmem>>, vector<1x128xf32>
    %87 = vector.broadcast %86 : vector<1x128xf32> to vector<256x128xf32>
    %88 = arith.addf %85, %87 : vector<256x128xf32>
    %cst_54 = arith.constant 0.000000e+00 : f32
    %89 = vector.broadcast %cst_54 : f32 to vector<256x128xf32>
    %90 = arith.maximumf %88, %89 : vector<256x128xf32>
    %91 = arith.truncf %90 : vector<256x128xf32> to vector<256x128xbf16>
    %92 = tpu.concatenate %82, %91 in 1 : vector<256x128xbf16>, vector<256x128xbf16> -> vector<256x256xbf16>
    %c0_55 = arith.constant 0 : index
    %c0_56 = arith.constant 0 : index
    %93 = vector.load %arg12[%c0_55, %c0_56] : memref<256x128xbf16, #tpu.memory_space<vmem>>, vector<256x128xbf16>
    %cst_57 = arith.constant dense<0.000000e+00> : vector<256x128xf32>
    %94 = tpu.matmul %92, %93, %cst_57 {dimension_numbers = #tpu.dot_dimension_numbers<[1], [0], [0], [1], [0, 0, 1, 1], [], []>} : vector<256x256xbf16>, vector<256x128xbf16>, vector<256x128xf32> -> vector<256x128xf32>
    %95 = vector.extract_strided_slice %94 {offsets = [0, 0], sizes = [256, 8], strides = [1, 1]} : vector<256x128xf32> to vector<256x8xf32>
    %96 = vector.shape_cast %95 : vector<256x8xf32> to vector<1x16x16x8xf32>
    %c0_58 = arith.constant 0 : index
    %c0_59 = arith.constant 0 : index
    %c0_60 = arith.constant 0 : index
    %c0_61 = arith.constant 0 : index
    %97 = vector.load %arg13[%c0_58, %c0_59, %c0_60, %c0_61] : memref<1x16x16x8xf32, #tpu.memory_space<vmem>>, vector<1x16x16x8xf32>
    tpu.vector_store %arg13[%c0_58, %c0_59, %c0_60, %c0_61], %96 {strides = array<i32>} : memref<1x16x16x8xf32, #tpu.memory_space<vmem>>, vector<1x16x16x8xf32>,
    return
  }
  func.func @transform_0(%arg0: i32) -> (i32, i32, i32, i32) {
    %c0_i32 = arith.constant 0 : i32
    %c0_i32_0 = arith.constant 0 : i32
    %c0_i32_1 = arith.constant 0 : i32
    %c0_i32_2 = arith.constant 0 : i32
    return %arg0, %c0_i32, %c0_i32_0, %c0_i32_1 : i32, i32, i32, i32
  }
  func.func @transform_1(%arg0: i32) -> (i32, i32) {
    %c0_i32 = arith.constant 0 : i32
    %c0_i32_0 = arith.constant 0 : i32
    %c0_i32_1 = arith.constant 0 : i32
    return %c0_i32, %c0_i32_0 : i32, i32
  }
  func.func @transform_2(%arg0: i32) -> (i32, i32) {
    %c0_i32 = arith.constant 0 : i32
    %c0_i32_0 = arith.constant 0 : i32
    %c0_i32_1 = arith.constant 0 : i32
    return %c0_i32, %c0_i32_0 : i32, i32
  }
  func.func @transform_3(%arg0: i32) -> (i32, i32) {
    %c0_i32 = arith.constant 0 : i32
    %c0_i32_0 = arith.constant 0 : i32
    %c0_i32_1 = arith.constant 0 : i32
    return %c0_i32, %c0_i32_0 : i32, i32
  }
  func.func @transform_4(%arg0: i32) -> (i32, i32) {
    %c0_i32 = arith.constant 0 : i32
    %c0_i32_0 = arith.constant 0 : i32
    %c0_i32_1 = arith.constant 0 : i32
    return %c0_i32, %c0_i32_0 : i32, i32
  }
  func.func @transform_5(%arg0: i32) -> (i32, i32) {
    %c0_i32 = arith.constant 0 : i32
    %c0_i32_0 = arith.constant 0 : i32
    %c0_i32_1 = arith.constant 0 : i32
    return %c0_i32, %c0_i32_0 : i32, i32
  }
  func.func @transform_6(%arg0: i32) -> (i32, i32) {
    %c0_i32 = arith.constant 0 : i32
    %c0_i32_0 = arith.constant 0 : i32
    %c0_i32_1 = arith.constant 0 : i32
    return %c0_i32, %c0_i32_0 : i32, i32
  }
  func.func @transform_7(%arg0: i32) -> (i32, i32) {
    %c0_i32 = arith.constant 0 : i32
    %c0_i32_0 = arith.constant 0 : i32
    %c0_i32_1 = arith.constant 0 : i32
    return %c0_i32, %c0_i32_0 : i32, i32
  }
  func.func @transform_8(%arg0: i32) -> (i32, i32) {
    %c0_i32 = arith.constant 0 : i32
    %c0_i32_0 = arith.constant 0 : i32
    %c0_i32_1 = arith.constant 0 : i32
    return %c0_i32, %c0_i32_0 : i32, i32
  }
  func.func @transform_9(%arg0: i32) -> (i32, i32) {
    %c0_i32 = arith.constant 0 : i32
    %c0_i32_0 = arith.constant 0 : i32
    %c0_i32_1 = arith.constant 0 : i32
    return %c0_i32, %c0_i32_0 : i32, i32
  }
  func.func @transform_10(%arg0: i32) -> (i32, i32) {
    %c0_i32 = arith.constant 0 : i32
    %c0_i32_0 = arith.constant 0 : i32
    %c0_i32_1 = arith.constant 0 : i32
    return %c0_i32, %c0_i32_0 : i32, i32
  }
  func.func @transform_11(%arg0: i32) -> (i32, i32) {
    %c0_i32 = arith.constant 0 : i32
    %c0_i32_0 = arith.constant 0 : i32
    %c0_i32_1 = arith.constant 0 : i32
    return %c0_i32, %c0_i32_0 : i32, i32
  }
  func.func @transform_12(%arg0: i32) -> (i32, i32, i32, i32) {
    %c0_i32 = arith.constant 0 : i32
    %c0_i32_0 = arith.constant 0 : i32
    %c0_i32_1 = arith.constant 0 : i32
    %c0_i32_2 = arith.constant 0 : i32
    return %arg0, %c0_i32, %c0_i32_0, %c0_i32_1 : i32, i32, i32, i32
  }
}

</mosaic_0001>

<llo_original>
// kernel: decoder_bottleneck_forward.1
$region0: #{decoder_bottleneck_forward.1}
  #allocation0 [shape = 'u32[]', space=smem, size = 0x4, offset = 0x4, fixed_abs, tag = 'smem constant byte address 0x4 - core index']
  #allocation1 [shape = 'u32[144,128]{1,0:T(1,128)}', space=vmem, size = 0x12000, scoped, tag = 'internal scratch']
  #allocation2 [shape = 'f32[18,32,128]{2,1,0:T(8,128)}', space=vmem, size = 0x48000, scoped, tag = 'scratch operand']
  %s0 = inlined_call_operand.vmem [shape: f32[2,16,16,4], index: 0, kind: input, shape index: {}]
  %s1 = inlined_call_operand.vmem [shape: f32[1,128], index: 1, kind: input, shape index: {}]
  %s2 = inlined_call_operand.vmem [shape: f32[1,128], index: 2, kind: input, shape index: {}]
  %s3 = inlined_call_operand.vmem [shape: bf16[128,128], index: 3, kind: input, shape index: {}]
  %s4 = inlined_call_operand.vmem [shape: f32[1,128], index: 4, kind: input, shape index: {}]
  %s5 = inlined_call_operand.vmem [shape: f32[1,128], index: 5, kind: input, shape index: {}]
  %s6 = inlined_call_operand.vmem [shape: bf16[1152,128], index: 6, kind: input, shape index: {}]
  %s7 = inlined_call_operand.vmem [shape: f32[1,128], index: 7, kind: input, shape index: {}]
  %s8 = inlined_call_operand.vmem [shape: f32[1,128], index: 8, kind: input, shape index: {}]
  %s9 = inlined_call_operand.vmem [shape: f32[1,128], index: 9, kind: input, shape index: {}]
  %s10 = inlined_call_operand.vmem [shape: f32[1,128], index: 10, kind: input, shape index: {}]
  %s11 = inlined_call_operand.vmem [shape: bf16[256,128], index: 11, kind: input, shape index: {}]
  %s12 = inlined_call_operand.vmem [shape: f32[2,16,16,8], index: 12, kind: output, shape index: {}]
  %s13 = sld [smem:[#allocation0]]
  $region81: #{decoder_bottleneck_forward.1} parent=0
    _
  %s15 = ssub.s32 1, %s13
  %s16 = scalar_select 0, %s15, %s13
  loop: start=0, step=1, limit=4
  $region2: #{decoder_bottleneck_forward.1} parent=0 // loop_pre_header
    _
  $region3: #{decoder_bottleneck_forward.1} parent=0 // loop_header
    %s18 = sphi 0, %s22
    %p19 = scmp.ge.s32.totalorder %s18, 4
    %s28 = sphi 0, %s30
    %s31 = sphi 0, %s28
    %s32 = sphi 0, %s31
    %s48 = sphi 0, %s32
    %s52 = sphi 0, %s52
    %s54 = sphi 0, %s52
    %s55 = sphi 0, %s54
    %s69 = sphi 0, %s55
    %s73 = sphi 0, %s73
    %s75 = sphi 0, %s73
    %s76 = sphi 0, %s75
    %s90 = sphi 0, %s76
    %s94 = sphi 0, %s94
    %s96 = sphi 0, %s94
    %s97 = sphi 0, %s96
    %s111 = sphi 0, %s97
    %s115 = sphi 0, %s115
    %s117 = sphi 0, %s115
    %s118 = sphi 0, %s117
    %s132 = sphi 0, %s118
    %s136 = sphi 0, %s136
    %s138 = sphi 0, %s136
    %s139 = sphi 0, %s138
    %s153 = sphi 0, %s139
    %s157 = sphi 0, %s157
    %s159 = sphi 0, %s157
    %s160 = sphi 0, %s159
    %s174 = sphi 0, %s160
    %s178 = sphi 0, %s178
    %s180 = sphi 0, %s178
    %s181 = sphi 0, %s180
    %s195 = sphi 0, %s181
    %s199 = sphi 0, %s199
    %s201 = sphi 0, %s199
    %s202 = sphi 0, %s201
    %s216 = sphi 0, %s202
    %s220 = sphi 0, %s220
    %s222 = sphi 0, %s220
    %s223 = sphi 0, %s222
    %s237 = sphi 0, %s223
    %s241 = sphi 0, %s241
    %s243 = sphi 0, %s241
    %s244 = sphi 0, %s243
    %s258 = sphi 0, %s244
    %s262 = sphi 0, %s262
    %s264 = sphi 0, %s262
    %s265 = sphi 0, %s264
    %s279 = sphi 0, %s265
    %s285 = sphi 0, %s287
    %s288 = sphi 0, %s285
    %s289 = sphi 0, %s288
    %s305 = sphi 0, %s289
  $region4: #{decoder_bottleneck_forward.1} parent=0 // loop_header_branch
    %21 = sbr.rel (%p19) target = $region8
  $region5: #{decoder_bottleneck_forward.1} parent=0 // loop_body
    %s23 = ssub.s32 %s18, 1
    %s24 = ssub.s32 %s18, 2
    %s25 = sadd.s32 %s18, 1
    %s26 = ssub.s32 %s18, %s25
    %p27 = scmp.eq.s32.totalorder %s26, 0
    %s29 = sadd.s32 %s28, 1
    %s30 = scalar_select %p27, %s28, %s29
    %p33 = pneg %p27
    %p34 = scmp.eq.s32.totalorder %s18, 1
    %p35 = por %p33, %p34
    %p36 = scmp.ne.s32.totalorder %s28, %s31
    %p37 = scmp.eq.s32.totalorder %s18, 0
    %p38 = por %p36, %p37
    %p39 = scmp.ne.s32.totalorder %s28, %s31
    %p40 = scmp.eq.s32.totalorder %s23, 1
    %p41 = por %p39, %p40
    %p42 = scmp.ne.s32.totalorder %s31, %s32
    %p43 = scmp.eq.s32.totalorder %s23, 0
    %p44 = por %p42, %p43
    %p45 = scmp.ne.s32.totalorder %s31, %s32
    %p46 = scmp.eq.s32.totalorder %s24, 1
    %p47 = por %p45, %p46
    %p49 = scmp.ne.s32.totalorder %s32, %s48
    %p50 = scmp.eq.s32.totalorder %s24, 0
    %p51 = por %p49, %p50
    %s53 = sadd.s32 %s52, 1
    %p56 = scmp.eq.s32.totalorder %s18, 1
    %p57 = scmp.ne.s32.totalorder %s52, %s54
    %p58 = scmp.eq.s32.totalorder %s18, 0
    %p59 = por %p57, %p58
    %p60 = scmp.ne.s32.totalorder %s52, %s54
    %p61 = scmp.eq.s32.totalorder %s23, 1
    %p62 = por %p60, %p61
    %p63 = scmp.ne.s32.totalorder %s54, %s55
    %p64 = scmp.eq.s32.totalorder %s23, 0
    %p65 = por %p63, %p64
    %p66 = scmp.ne.s32.totalorder %s54, %s55
    %p67 = scmp.eq.s32.totalorder %s24, 1
    %p68 = por %p66, %p67
    %p70 = scmp.ne.s32.totalorder %s55, %s69
    %p71 = scmp.eq.s32.totalorder %s24, 0
    %p72 = por %p70, %p71
    %s74 = sadd.s32 %s73, 1
    %p77 = scmp.eq.s32.totalorder %s18, 1
    %p78 = scmp.ne.s32.totalorder %s73, %s75
    %p79 = scmp.eq.s32.totalorder %s18, 0
    %p80 = por %p78, %p79
    %p81 = scmp.ne.s32.totalorder %s73, %s75
    %p82 = scmp.eq.s32.totalorder %s23, 1
    %p83 = por %p81, %p82
    %p84 = scmp.ne.s32.totalorder %s75, %s76
    %p85 = scmp.eq.s32.totalorder %s23, 0
    %p86 = por %p84, %p85
    %p87 = scmp.ne.s32.totalorder %s75, %s76
    %p88 = scmp.eq.s32.totalorder %s24, 1
    %p89 = por %p87, %p88
    %p91 = scmp.ne.s32.totalorder %s76, %s90
    %p92 = scmp.eq.s32.totalorder %s24, 0
    %p93 = por %p91, %p92
    %s95 = sadd.s32 %s94, 1
    %p98 = scmp.eq.s32.totalorder %s18, 1
    %p99 = scmp.ne.s32.totalorder %s94, %s96
    %p100 = scmp.eq.s32.totalorder %s18, 0
    %p101 = por %p99, %p100
    %p102 = scmp.ne.s32.totalorder %s94, %s96
    %p103 = scmp.eq.s32.totalorder %s23, 1
    %p104 = por %p102, %p103
    %p105 = scmp.ne.s32.totalorder %s96, %s97
    %p106 = scmp.eq.s32.totalorder %s23, 0
    %p107 = por %p105, %p106
    %p108 = scmp.ne.s32.totalorder %s96, %s97
    %p109 = scmp.eq.s32.totalorder %s24, 1
    %p110 = por %p108, %p109
    %p112 = scmp.ne.s32.totalorder %s97, %s111
    %p113 = scmp.eq.s32.totalorder %s24, 0
    %p114 = por %p112, %p113
    %s116 = sadd.s32 %s115, 1
    %p119 = scmp.eq.s32.totalorder %s18, 1
    %p120 = scmp.ne.s32.totalorder %s115, %s117
    %p121 = scmp.eq.s32.totalorder %s18, 0
    %p122 = por %p120, %p121
    %p123 = scmp.ne.s32.totalorder %s115, %s117
    %p124 = scmp.eq.s32.totalorder %s23, 1
    %p125 = por %p123, %p124
    %p126 = scmp.ne.s32.totalorder %s117, %s118
    %p127 = scmp.eq.s32.totalorder %s23, 0
    %p128 = por %p126, %p127
    %p129 = scmp.ne.s32.totalorder %s117, %s118
    %p130 = scmp.eq.s32.totalorder %s24, 1
    %p131 = por %p129, %p130
    %p133 = scmp.ne.s32.totalorder %s118, %s132
    %p134 = scmp.eq.s32.totalorder %s24, 0
    %p135 = por %p133, %p134
    %s137 = sadd.s32 %s136, 1
    %p140 = scmp.eq.s32.totalorder %s18, 1
    %p141 = scmp.ne.s32.totalorder %s136, %s138
    %p142 = scmp.eq.s32.totalorder %s18, 0
    %p143 = por %p141, %p142
    %p144 = scmp.ne.s32.totalorder %s136, %s138
    %p145 = scmp.eq.s32.totalorder %s23, 1
    %p146 = por %p144, %p145
    %p147 = scmp.ne.s32.totalorder %s138, %s139
    %p148 = scmp.eq.s32.totalorder %s23, 0
    %p149 = por %p147, %p148
    %p150 = scmp.ne.s32.totalorder %s138, %s139
    %p151 = scmp.eq.s32.totalorder %s24, 1
    %p152 = por %p150, %p151
    %p154 = scmp.ne.s32.totalorder %s139, %s153
    %p155 = scmp.eq.s32.totalorder %s24, 0
    %p156 = por %p154, %p155
    %s158 = sadd.s32 %s157, 1
    %p161 = scmp.eq.s32.totalorder %s18, 1
    %p162 = scmp.ne.s32.totalorder %s157, %s159
    %p163 = scmp.eq.s32.totalorder %s18, 0
    %p164 = por %p162, %p163
    %p165 = scmp.ne.s32.totalorder %s157, %s159
    %p166 = scmp.eq.s32.totalorder %s23, 1
    %p167 = por %p165, %p166
    %p168 = scmp.ne.s32.totalorder %s159, %s160
    %p169 = scmp.eq.s32.totalorder %s23, 0
    %p170 = por %p168, %p169
    %p171 = scmp.ne.s32.totalorder %s159, %s160
    %p172 = scmp.eq.s32.totalorder %s24, 1
    %p173 = por %p171, %p172
    %p175 = scmp.ne.s32.totalorder %s160, %s174
    %p176 = scmp.eq.s32.totalorder %s24, 0
    %p177 = por %p175, %p176
    %s179 = sadd.s32 %s178, 1
    %p182 = scmp.eq.s32.totalorder %s18, 1
    %p183 = scmp.ne.s32.totalorder %s178, %s180
    %p184 = scmp.eq.s32.totalorder %s18, 0
    %p185 = por %p183, %p184
    %p186 = scmp.ne.s32.totalorder %s178, %s180
    %p187 = scmp.eq.s32.totalorder %s23, 1
    %p188 = por %p186, %p187
    %p189 = scmp.ne.s32.totalorder %s180, %s181
    %p190 = scmp.eq.s32.totalorder %s23, 0
    %p191 = por %p189, %p190
    %p192 = scmp.ne.s32.totalorder %s180, %s181
    %p193 = scmp.eq.s32.totalorder %s24, 1
    %p194 = por %p192, %p193
    %p196 = scmp.ne.s32.totalorder %s181, %s195
    %p197 = scmp.eq.s32.totalorder %s24, 0
    %p198 = por %p196, %p197
    %s200 = sadd.s32 %s199, 1
    %p203 = scmp.eq.s32.totalorder %s18, 1
    %p204 = scmp.ne.s32.totalorder %s199, %s201
    %p205 = scmp.eq.s32.totalorder %s18, 0
    %p206 = por %p204, %p205
    %p207 = scmp.ne.s32.totalorder %s199, %s201
    %p208 = scmp.eq.s32.totalorder %s23, 1
    %p209 = por %p207, %p208
    %p210 = scmp.ne.s32.totalorder %s201, %s202
    %p211 = scmp.eq.s32.totalorder %s23, 0
    %p212 = por %p210, %p211
    %p213 = scmp.ne.s32.totalorder %s201, %s202
    %p214 = scmp.eq.s32.totalorder %s24, 1
    %p215 = por %p213, %p214
    %p217 = scmp.ne.s32.totalorder %s202, %s216
    %p218 = scmp.eq.s32.totalorder %s24, 0
    %p219 = por %p217, %p218
    %s221 = sadd.s32 %s220, 1
    %p224 = scmp.eq.s32.totalorder %s18, 1
    %p225 = scmp.ne.s32.totalorder %s220, %s222
    %p226 = scmp.eq.s32.totalorder %s18, 0
    %p227 = por %p225, %p226
    %p228 = scmp.ne.s32.totalorder %s220, %s222
    %p229 = scmp.eq.s32.totalorder %s23, 1
    %p230 = por %p228, %p229
    %p231 = scmp.ne.s32.totalorder %s222, %s223
    %p232 = scmp.eq.s32.totalorder %s23, 0
    %p233 = por %p231, %p232
    %p234 = scmp.ne.s32.totalorder %s222, %s223
    %p235 = scmp.eq.s32.totalorder %s24, 1
    %p236 = por %p234, %p235
    %p238 = scmp.ne.s32.totalorder %s223, %s237
    %p239 = scmp.eq.s32.totalorder %s24, 0
    %p240 = por %p238, %p239
    %s242 = sadd.s32 %s241, 1
    %p245 = scmp.eq.s32.totalorder %s18, 1
    %p246 = scmp.ne.s32.totalorder %s241, %s243
    %p247 = scmp.eq.s32.totalorder %s18, 0
    %p248 = por %p246, %p247
    %p249 = scmp.ne.s32.totalorder %s241, %s243
    %p250 = scmp.eq.s32.totalorder %s23, 1
    %p251 = por %p249, %p250
    %p252 = scmp.ne.s32.totalorder %s243, %s244
    %p253 = scmp.eq.s32.totalorder %s23, 0
    %p254 = por %p252, %p253
    %p255 = scmp.ne.s32.totalorder %s243, %s244
    %p256 = scmp.eq.s32.totalorder %s24, 1
    %p257 = por %p255, %p256
    %p259 = scmp.ne.s32.totalorder %s244, %s258
    %p260 = scmp.eq.s32.totalorder %s24, 0
    %p261 = por %p259, %p260
    %s263 = sadd.s32 %s262, 1
    %p266 = scmp.eq.s32.totalorder %s18, 1
    %p267 = scmp.ne.s32.totalorder %s262, %s264
    %p268 = scmp.eq.s32.totalorder %s18, 0
    %p269 = por %p267, %p268
    %p270 = scmp.ne.s32.totalorder %s262, %s264
    %p271 = scmp.eq.s32.totalorder %s23, 1
    %p272 = por %p270, %p271
    %p273 = scmp.ne.s32.totalorder %s264, %s265
    %p274 = scmp.eq.s32.totalorder %s23, 0
    %p275 = por %p273, %p274
    %p276 = scmp.ne.s32.totalorder %s264, %s265
    %p277 = scmp.eq.s32.totalorder %s24, 1
    %p278 = por %p276, %p277
    %p280 = scmp.ne.s32.totalorder %s265, %s279
    %p281 = scmp.eq.s32.totalorder %s24, 0
    %p282 = por %p280, %p281
    %s283 = ssub.s32 %s18, %s25
    %p284 = scmp.eq.s32.totalorder %s283, 0
    %s286 = sadd.s32 %s285, 1
    %s287 = scalar_select %p284, %s285, %s286
    %p290 = pneg %p284
    %p291 = scmp.eq.s32.totalorder %s18, 1
    %p292 = por %p290, %p291
    %p293 = scmp.ne.s32.totalorder %s285, %s288
    %p294 = scmp.eq.s32.totalorder %s18, 0
    %p295 = por %p293, %p294
    %p296 = scmp.ne.s32.totalorder %s285, %s288
    %p297 = scmp.eq.s32.totalorder %s23, 1
    %p298 = por %p296, %p297
    %p299 = scmp.ne.s32.totalorder %s288, %s289
    %p300 = scmp.eq.s32.totalorder %s23, 0
    %p301 = por %p299, %p300
    %p302 = scmp.ne.s32.totalorder %s288, %s289
    %p303 = scmp.eq.s32.totalorder %s24, 1
    %p304 = por %p302, %p303
    %p306 = scmp.ne.s32.totalorder %s289, %s305
    %p307 = scmp.eq.s32.totalorder %s24, 0
    %p308 = por %p306, %p307
    %p309 = scmp.le.s32.totalorder 1, %s18
    %p310 = scmp.lt.s32.totalorder %s18, 3
    %p311 = pnand %p309, %p310
    %p312 = pneg %p311
    // Predicated region
    $region9: #{decoder_bottleneck_forward.1} parent=5 // pred_check
      _
    $region10: #{decoder_bottleneck_forward.1} parent=5 // pred_check_branch
      %314 = sbr.rel (%p311) target = $region12
    $region11: #{decoder_bottleneck_forward.1} parent=5 // pred_region
      %s315 = ssub.s32 %s18, 1
      // Predicated region
      $region13: #{decoder_bottleneck_forward.1} parent=11 // pred_check
        %p316 = pneg %p65
      $region14: #{decoder_bottleneck_forward.1} parent=11 // pred_check_branch
        %318 = sbr.rel (%p316) target = $region16
      $region15: #{decoder_bottleneck_forward.1} parent=11 // pred_region
        _
      $region16: #{decoder_bottleneck_forward.1} parent=11 // pred_fallthru
        _
      // Predicated region
      $region17: #{decoder_bottleneck_forward.1} parent=11 // pred_check
        %p319 = pneg %p86
      $region18: #{decoder_bottleneck_forward.1} parent=11 // pred_check_branch
        %321 = sbr.rel (%p319) target = $region20
      $region19: #{decoder_bottleneck_forward.1} parent=11 // pred_region
        _
      $region20: #{decoder_bottleneck_forward.1} parent=11 // pred_fallthru
        _
      // Predicated region
      $region21: #{decoder_bottleneck_forward.1} parent=11 // pred_check
        %p322 = pneg %p107
      $region22: #{decoder_bottleneck_forward.1} parent=11 // pred_check_branch
        %324 = sbr.rel (%p322) target = $region24
      $region23: #{decoder_bottleneck_forward.1} parent=11 // pred_region
        _
      $region24: #{decoder_bottleneck_forward.1} parent=11 // pred_fallthru
        _
      // Predicated region
      $region25: #{decoder_bottleneck_forward.1} parent=11 // pred_check
        %p325 = pneg %p128
      $region26: #{decoder_bottleneck_forward.1} parent=11 // pred_check_branch
        %327 = sbr.rel (%p325) target = $region28
      $region27: #{decoder_bottleneck_forward.1} parent=11 // pred_region
        _
      $region28: #{decoder_bottleneck_forward.1} parent=11 // pred_fallthru
        _
      // Predicated region
      $region29: #{decoder_bottleneck_forward.1} parent=11 // pred_check
        %p328 = pneg %p149
      $region30: #{decoder_bottleneck_forward.1} parent=11 // pred_check_branch
        %330 = sbr.rel (%p328) target = $region32
      $region31: #{decoder_bottleneck_forward.1} parent=11 // pred_region
        _
      $region32: #{decoder_bottleneck_forward.1} parent=11 // pred_fallthru
        _
      // Predicated region
      $region33: #{decoder_bottleneck_forward.1} parent=11 // pred_check
        %p331 = pneg %p170
      $region34: #{decoder_bottleneck_forward.1} parent=11 // pred_check_branch
        %333 = sbr.rel (%p331) target = $region36
      $region35: #{decoder_bottleneck_forward.1} parent=11 // pred_region
        _
      $region36: #{decoder_bottleneck_forward.1} parent=11 // pred_fallthru
        _
      // Predicated region
      $region37: #{decoder_bottleneck_forward.1} parent=11 // pred_check
        %p334 = pneg %p191
      $region38: #{decoder_bottleneck_forward.1} parent=11 // pred_check_branch
        %336 = sbr.rel (%p334) target = $region40
      $region39: #{decoder_bottleneck_forward.1} parent=11 // pred_region
        _
      $region40: #{decoder_bottleneck_forward.1} parent=11 // pred_fallthru
        _
      // Predicated region
      $region41: #{decoder_bottleneck_forward.1} parent=11 // pred_check
        %p337 = pneg %p212
      $region42: #{decoder_bottleneck_forward.1} parent=11 // pred_check_branch
        %339 = sbr.rel (%p337) target = $region44
      $region43: #{decoder_bottleneck_forward.1} parent=11 // pred_region
        _
      $region44: #{decoder_bottleneck_forward.1} parent=11 // pred_fallthru
        _
      // Predicated region
      $region45: #{decoder_bottleneck_forward.1} parent=11 // pred_check
        %p340 = pneg %p233
      $region46: #{decoder_bottleneck_forward.1} parent=11 // pred_check_branch
        %342 = sbr.rel (%p340) target = $region48
      $region47: #{decoder_bottleneck_forward.1} parent=11 // pred_region
        _
      $region48: #{decoder_bottleneck_forward.1} parent=11 // pred_fallthru
        _
      // Predicated region
      $region49: #{decoder_bottleneck_forward.1} parent=11 // pred_check
        %p343 = pneg %p254
      $region50: #{decoder_bottleneck_forward.1} parent=11 // pred_check_branch
        %345 = sbr.rel (%p343) target = $region52
      $region51: #{decoder_bottleneck_forward.1} parent=11 // pred_region
        _
      $region52: #{decoder_bottleneck_forward.1} parent=11 // pred_fallthru
        _
      // Predicated region
      $region53: #{decoder_bottleneck_forward.1} parent=11 // pred_check
        %p346 = pneg %p275
      $region54: #{decoder_bottleneck_forward.1} parent=11 // pred_check_branch
        %348 = sbr.rel (%p346) target = $region56
      $region55: #{decoder_bottleneck_forward.1} parent=11 // pred_region
        _
      $region56: #{decoder_bottleneck_forward.1} parent=11 // pred_fallthru
        _
    $region12: #{decoder_bottleneck_forward.1} parent=5 // pred_fallthru
      _
    %p349 = scmp.lt.s32.totalorder %s18, 2
    // Predicated region
    $region57: #{decoder_bottleneck_forward.1} parent=5 // pred_check
      %p350 = pneg %p349
    $region58: #{decoder_bottleneck_forward.1} parent=5 // pred_check_branch
      %352 = sbr.rel (%p350) target = $region60
    $region59: #{decoder_bottleneck_forward.1} parent=5 // pred_region
      // Predicated region
      $region61: #{decoder_bottleneck_forward.1} parent=59 // pred_check
        %p353 = pneg %p38
      $region62: #{decoder_bottleneck_forward.1} parent=59 // pred_check_branch
        %355 = sbr.rel (%p353) target = $region64
      $region63: #{decoder_bottleneck_forward.1} parent=59 // pred_region
        %p356 = scmp.lt.s32.totalorder %s18, 1
        %s357 = scalar_select %p356, %s18, 1
        %s358 = smul.addr %s357, 32
        %s359 = smul.addr %s358, 8
        %s360 = scalar_lea.vmem %s0, %s359
      $region64: #{decoder_bottleneck_forward.1} parent=59 // pred_fallthru
        _
    $region60: #{decoder_bottleneck_forward.1} parent=5 // pred_fallthru
      _
    %p361 = scmp.le.s32.totalorder 1, %s18
    %p362 = scmp.lt.s32.totalorder %s18, 3
    %p363 = pnand %p361, %p362
    %p364 = pneg %p363
    // Predicated region
    $region65: #{decoder_bottleneck_forward.1} parent=5 // pred_check
      _
    $region66: #{decoder_bottleneck_forward.1} parent=5 // pred_check_branch
      %366 = sbr.rel (%p363) target = $region68
    $region67: #{decoder_bottleneck_forward.1} parent=5 // pred_region
      %s367 = ssub.s32 %s18, 1
      %p368 = scmp.lt.s32.totalorder %s23, 1
      %s369 = scalar_select %p368, %s23, 1
      %s370 = smul.addr %s369, 32
      %s371 = smul.addr %s370, 8
      %s372 = scalar_lea.vmem %s0, %s371
      %p373 = pneg %p44
      %p374 = pneg %p41
      %p375 = pneg %p65
      %p376 = pneg %p62
      %p377 = pneg %p86
      %p378 = pneg %p83
      %p379 = pneg %p107
      %p380 = pneg %p104
      %p381 = pneg %p128
      %p382 = pneg %p125
      %p383 = pneg %p149
      %p384 = pneg %p146
      %p385 = pneg %p170
      %p386 = pneg %p167
      %p387 = pneg %p191
      %p388 = pneg %p188
      %p389 = pneg %p212
      %p390 = pneg %p209
      %p391 = pneg %p233
      %p392 = pneg %p230
      %p393 = pneg %p254
      %p394 = pneg %p251
      %p395 = pneg %p275
      %p396 = pneg %p272
      %p397 = pneg %p301
      %p398 = pneg %p298
      %p399 = scmp.lt.s32.totalorder %s23, 1
      %s400 = scalar_select %p399, %s23, 1
      %s401 = smul.addr %s400, 32
      %s402 = smul.addr %s401, 8
      %s403 = scalar_lea.vmem %s12, %s402
      %p404 = scmp.lt.s32.totalorder %s23, 1
      %s405 = scalar_select %p404, %s23, 1
      %s406 = smul.addr %s405, 32
      %s407 = smul.addr %s406, 8
      %s408 = scalar_lea.vmem %s0, %s407
      %p409 = scmp.lt.s32.totalorder %s23, 1
      %s410 = scalar_select %p409, %s23, 1
      %s411 = smul.addr %s410, 32
      %s412 = smul.addr %s411, 8
      %s413 = scalar_lea.vmem %s12, %s412
      %v415 = vld [vmem:[%s408] sm:$0xff]
      %v416 = vld [vmem:[%s408 + $0x8] sm:$0xff]
      %v417 = vld [vmem:[%s408 + $0x10] sm:$0xff]
      %v418 = vld [vmem:[%s408 + $0x18] sm:$0xff]
      %v419 = vld [vmem:[%s408 + $0x20] sm:$0xff]
      %v420 = vld [vmem:[%s408 + $0x28] sm:$0xff]
      %v421 = vld [vmem:[%s408 + $0x30] sm:$0xff]
      %v422 = vld [vmem:[%s408 + $0x38] sm:$0xff]
      %v423 = vld [vmem:[%s408 + $0x40] sm:$0xff]
      %v424 = vld [vmem:[%s408 + $0x48] sm:$0xff]
      %v425 = vld [vmem:[%s408 + $0x50] sm:$0xff]
      %v426 = vld [vmem:[%s408 + $0x58] sm:$0xff]
      %v427 = vld [vmem:[%s408 + $0x60] sm:$0xff]
      %v428 = vld [vmem:[%s408 + $0x68] sm:$0xff]
      %v429 = vld [vmem:[%s408 + $0x70] sm:$0xff]
      %v430 = vld [vmem:[%s408 + $0x78] sm:$0xff]
      %v431 = vld [vmem:[%s408 + $0x80] sm:$0xff]
      %v432 = vld [vmem:[%s408 + $0x88] sm:$0xff]
      %v433 = vld [vmem:[%s408 + $0x90] sm:$0xff]
      %v434 = vld [vmem:[%s408 + $0x98] sm:$0xff]
      %v435 = vld [vmem:[%s408 + $0xa0] sm:$0xff]
      %v436 = vld [vmem:[%s408 + $0xa8] sm:$0xff]
      %v437 = vld [vmem:[%s408 + $0xb0] sm:$0xff]
      %v438 = vld [vmem:[%s408 + $0xb8] sm:$0xff]
      %v439 = vld [vmem:[%s408 + $0xc0] sm:$0xff]
      %v440 = vld [vmem:[%s408 + $0xc8] sm:$0xff]
      %v441 = vld [vmem:[%s408 + $0xd0] sm:$0xff]
      %v442 = vld [vmem:[%s408 + $0xd8] sm:$0xff]
      %v443 = vld [vmem:[%s408 + $0xe0] sm:$0xff]
      %v444 = vld [vmem:[%s408 + $0xe8] sm:$0xff]
      %v445 = vld [vmem:[%s408 + $0xf0] sm:$0xff]
      %v446 = vld [vmem:[%s408 + $0xf8] sm:$0xff]
      %vm447 = vcmask 31744
      %v448 = vsel %vm447, %v415, 0.0
      %v449 = vsel %vm447, %v416, 0.0
      %v450 = vsel %vm447, %v417, 0.0
      %v451 = vsel %vm447, %v418, 0.0
      %v452 = vsel %vm447, %v419, 0.0
      %v453 = vsel %vm447, %v420, 0.0
      %v454 = vsel %vm447, %v421, 0.0
      %v455 = vsel %vm447, %v422, 0.0
      %v456 = vsel %vm447, %v423, 0.0
      %v457 = vsel %vm447, %v424, 0.0
      %v458 = vsel %vm447, %v425, 0.0
      %v459 = vsel %vm447, %v426, 0.0
      %v460 = vsel %vm447, %v427, 0.0
      %v461 = vsel %vm447, %v428, 0.0
      %v462 = vsel %vm447, %v429, 0.0
      %v463 = vsel %vm447, %v430, 0.0
      %v464 = vsel %vm447, %v431, 0.0
      %v465 = vsel %vm447, %v432, 0.0
      %v466 = vsel %vm447, %v433, 0.0
      %v467 = vsel %vm447, %v434, 0.0
      %v468 = vsel %vm447, %v435, 0.0
      %v469 = vsel %vm447, %v436, 0.0
      %v470 = vsel %vm447, %v437, 0.0
      %v471 = vsel %vm447, %v438, 0.0
      %v472 = vsel %vm447, %v439, 0.0
      %v473 = vsel %vm447, %v440, 0.0
      %v474 = vsel %vm447, %v441, 0.0
      %v475 = vsel %vm447, %v442, 0.0
      %v476 = vsel %vm447, %v443, 0.0
      %v477 = vsel %vm447, %v444, 0.0
      %v478 = vsel %vm447, %v445, 0.0
      %v479 = vsel %vm447, %v446, 0.0
      %v480 = vld [vmem:[%s1] sm:$0x1]
      %v482 = vlaneseq
      %v483 = vshrl.u32 %v482, 7
      %v484 = vsub.s32 0, %v483
      %v485 = vrot.slane %v480, %v484
      %v487 = vmul.f32 %v448, %v485
      %v488 = vmul.f32 %v449, %v485
      %v489 = vmul.f32 %v450, %v485
      %v490 = vmul.f32 %v451, %v485
      %v491 = vmul.f32 %v452, %v485
      %v492 = vmul.f32 %v453, %v485
      %v493 = vmul.f32 %v454, %v485
      %v494 = vmul.f32 %v455, %v485
      %v495 = vmul.f32 %v456, %v485
      %v496 = vmul.f32 %v457, %v485
      %v497 = vmul.f32 %v458, %v485
      %v498 = vmul.f32 %v459, %v485
      %v499 = vmul.f32 %v460, %v485
      %v500 = vmul.f32 %v461, %v485
      %v501 = vmul.f32 %v462, %v485
      %v502 = vmul.f32 %v463, %v485
      %v503 = vmul.f32 %v464, %v485
      %v504 = vmul.f32 %v465, %v485
      %v505 = vmul.f32 %v466, %v485
      %v506 = vmul.f32 %v467, %v485
      %v507 = vmul.f32 %v468, %v485
      %v508 = vmul.f32 %v469, %v485
      %v509 = vmul.f32 %v470, %v485
      %v510 = vmul.f32 %v471, %v485
      %v511 = vmul.f32 %v472, %v485
      %v512 = vmul.f32 %v473, %v485
      %v513 = vmul.f32 %v474, %v485
      %v514 = vmul.f32 %v475, %v485
      %v515 = vmul.f32 %v476, %v485
      %v516 = vmul.f32 %v477, %v485
      %v517 = vmul.f32 %v478, %v485
      %v518 = vmul.f32 %v479, %v485
      %v519 = vld [vmem:[%s2] sm:$0x1]
      %v521 = vlaneseq
      %v522 = vshrl.u32 %v521, 7
      %v523 = vsub.s32 0, %v522
      %v524 = vrot.slane %v519, %v523
      %v526 = vadd.f32 %v487, %v524
      %v527 = vadd.f32 %v488, %v524
      %v528 = vadd.f32 %v489, %v524
      %v529 = vadd.f32 %v490, %v524
      %v530 = vadd.f32 %v491, %v524
      %v531 = vadd.f32 %v492, %v524
      %v532 = vadd.f32 %v493, %v524
      %v533 = vadd.f32 %v494, %v524
      %v534 = vadd.f32 %v495, %v524
      %v535 = vadd.f32 %v496, %v524
      %v536 = vadd.f32 %v497, %v524
      %v537 = vadd.f32 %v498, %v524
      %v538 = vadd.f32 %v499, %v524
      %v539 = vadd.f32 %v500, %v524
      %v540 = vadd.f32 %v501, %v524
      %v541 = vadd.f32 %v502, %v524
      %v542 = vadd.f32 %v503, %v524
      %v543 = vadd.f32 %v504, %v524
      %v544 = vadd.f32 %v505, %v524
      %v545 = vadd.f32 %v506, %v524
      %v546 = vadd.f32 %v507, %v524
      %v547 = vadd.f32 %v508, %v524
      %v548 = vadd.f32 %v509, %v524
      %v549 = vadd.f32 %v510, %v524
      %v550 = vadd.f32 %v511, %v524
      %v551 = vadd.f32 %v512, %v524
      %v552 = vadd.f32 %v513, %v524
      %v553 = vadd.f32 %v514, %v524
      %v554 = vadd.f32 %v515, %v524
      %v555 = vadd.f32 %v516, %v524
      %v556 = vadd.f32 %v517, %v524
      %v557 = vadd.f32 %v518, %v524
      %v558 = vmax.f32 %v526, 0.0
      %v559 = vmax.f32 %v527, 0.0
      %v560 = vmax.f32 %v528, 0.0
      %v561 = vmax.f32 %v529, 0.0
      %v562 = vmax.f32 %v530, 0.0
      %v563 = vmax.f32 %v531, 0.0
      %v564 = vmax.f32 %v532, 0.0
      %v565 = vmax.f32 %v533, 0.0
      %v566 = vmax.f32 %v534, 0.0
      %v567 = vmax.f32 %v535, 0.0
      %v568 = vmax.f32 %v536, 0.0
      %v569 = vmax.f32 %v537, 0.0
      %v570 = vmax.f32 %v538, 0.0
      %v571 = vmax.f32 %v539, 0.0
      %v572 = vmax.f32 %v540, 0.0
      %v573 = vmax.f32 %v541, 0.0
      %v574 = vmax.f32 %v542, 0.0
      %v575 = vmax.f32 %v543, 0.0
      %v576 = vmax.f32 %v544, 0.0
      %v577 = vmax.f32 %v545, 0.0
      %v578 = vmax.f32 %v546, 0.0
      %v579 = vmax.f32 %v547, 0.0
      %v580 = vmax.f32 %v548, 0.0
      %v581 = vmax.f32 %v549, 0.0
      %v582 = vmax.f32 %v550, 0.0
      %v583 = vmax.f32 %v551, 0.0
      %v584 = vmax.f32 %v552, 0.0
      %v585 = vmax.f32 %v553, 0.0
      %v586 = vmax.f32 %v554, 0.0
      %v587 = vmax.f32 %v555, 0.0
      %v588 = vmax.f32 %v556, 0.0
      %v589 = vmax.f32 %v557, 0.0
      %v590 = vpack.c.bf16 %v559, %v558
      %v591 = vpack.c.bf16 %v561, %v560
      %v592 = vpack.c.bf16 %v563, %v562
      %v593 = vpack.c.bf16 %v565, %v564
      %v594 = vpack.c.bf16 %v567, %v566
      %v595 = vpack.c.bf16 %v569, %v568
      %v596 = vpack.c.bf16 %v571, %v570
      %v597 = vpack.c.bf16 %v573, %v572
      %v598 = vpack.c.bf16 %v575, %v574
      %v599 = vpack.c.bf16 %v577, %v576
      %v600 = vpack.c.bf16 %v579, %v578
      %v601 = vpack.c.bf16 %v581, %v580
      %v602 = vpack.c.bf16 %v583, %v582
      %v603 = vpack.c.bf16 %v585, %v584
      %v604 = vpack.c.bf16 %v587, %v586
      %v605 = vpack.c.bf16 %v589, %v588
      %v606 = vld [vmem:[%s3] sm:$0xf]
      %v607 = vld [vmem:[%s3 + $0x4] sm:$0xf]
      %v608 = vld [vmem:[%s3 + $0x8] sm:$0xf]
      %v609 = vld [vmem:[%s3 + $0xc] sm:$0xf]
      %v610 = vld [vmem:[%s3 + $0x10] sm:$0xf]
      %v611 = vld [vmem:[%s3 + $0x14] sm:$0xf]
      %v612 = vld [vmem:[%s3 + $0x18] sm:$0xf]
      %v613 = vld [vmem:[%s3 + $0x1c] sm:$0xf]
      %v614 = vld [vmem:[%s3 + $0x20] sm:$0xf]
      %v615 = vld [vmem:[%s3 + $0x24] sm:$0xf]
      %v616 = vld [vmem:[%s3 + $0x28] sm:$0xf]
      %v617 = vld [vmem:[%s3 + $0x2c] sm:$0xf]
      %v618 = vld [vmem:[%s3 + $0x30] sm:$0xf]
      %v619 = vld [vmem:[%s3 + $0x34] sm:$0xf]
      %v620 = vld [vmem:[%s3 + $0x38] sm:$0xf]
      %v621 = vld [vmem:[%s3 + $0x3c] sm:$0xf]
      %v638 = vunpack.c.l.b16 %v606
      %v639 = vunpack.c.l.b16 %v607
      %v640 = vunpack.c.l.b16 %v608
      %v641 = vunpack.c.l.b16 %v609
      %v642 = vunpack.c.l.b16 %v610
      %v643 = vunpack.c.l.b16 %v611
      %v644 = vunpack.c.l.b16 %v612
      %v645 = vunpack.c.l.b16 %v613
      %v646 = vunpack.c.l.b16 %v614
      %v647 = vunpack.c.l.b16 %v615
      %v648 = vunpack.c.l.b16 %v616
      %v649 = vunpack.c.l.b16 %v617
      %v650 = vunpack.c.l.b16 %v618
      %v651 = vunpack.c.l.b16 %v619
      %v652 = vunpack.c.l.b16 %v620
      %v653 = vunpack.c.l.b16 %v621
      %v654 = vpack.c.b16 %v639, %v638
      %v655 = vpack.c.b16 %v641, %v640
      %v656 = vpack.c.b16 %v643, %v642
      %v657 = vpack.c.b16 %v645, %v644
      %v658 = vpack.c.b16 %v647, %v646
      %v659 = vpack.c.b16 %v649, %v648
      %v660 = vpack.c.b16 %v651, %v650
      %v661 = vpack.c.b16 %v653, %v652
      %670 = vmatprep.subr.bf16.mxu0 0
      %671 = vmatpush1.bf16.msra.mxu0 %v654
      %672 = vmatprep.subr.bf16.mxu0 0
      %673 = vmatpush1.bf16.msra.mxu0 %v655
      %674 = vmatprep.subr.bf16.mxu0 0
      %675 = vmatpush1.bf16.msra.mxu0 %v656
      %676 = vmatprep.subr.bf16.mxu0 0
      %677 = vmatpush1.bf16.msra.mxu0 %v657
      %678 = vmatprep.subr.bf16.mxu0 0
      %679 = vmatpush1.bf16.msra.mxu0 %v658
      %680 = vmatprep.subr.bf16.mxu0 0
      %681 = vmatpush1.bf16.msra.mxu0 %v659
      %682 = vmatprep.subr.bf16.mxu0 0
      %683 = vmatpush1.bf16.msra.mxu0 %v660
      %684 = vmatprep.subr.bf16.mxu0 0
      %685 = vmatpush1.bf16.msra.mxu0 %v661
      %686 = vmatprep.subr.bf16.mxu0 0
      %687 = vmatpush1.bf16.msra.mxu0 0
      %688 = vmatprep.subr.bf16.mxu0 0
      %689 = vmatpush1.bf16.msra.mxu0 0
      %690 = vmatprep.subr.bf16.mxu0 0
      %691 = vmatpush1.bf16.msra.mxu0 0
      %692 = vmatprep.subr.bf16.mxu0 0
      %693 = vmatpush1.bf16.msra.mxu0 0
      %694 = vmatprep.subr.bf16.mxu0 0
      %695 = vmatpush1.bf16.msra.mxu0 0
      %696 = vmatprep.subr.bf16.mxu0 0
      %697 = vmatpush1.bf16.msra.mxu0 0
      %698 = vmatprep.subr.bf16.mxu0 0
      %699 = vmatpush1.bf16.msra.mxu0 0
      %700 = vmatprep.subr.bf16.mxu0 0
      %701 = vmatpush1.bf16.msra.mxu0 0
      %702 = vmatprep.mubr.bf16.mxu0 0
      %703 = vmatmul.mubr.bf16.gmra.mrb[0].mxu0 %v590
      %v704 = vpop.f32.mrb[0].mxu0
      %v705 = vadd.f32 0.0, %v704
      %v706 = vpop.f32.mrb[0].mxu0
      %v707 = vpop.f32.mrb[0].mxu0
      %v708 = vadd.f32 0.0, %v707
      %v709 = vpop.f32.mrb[0].mxu0
      %710 = vmatprep.mubr.bf16.mxu0 0
      %711 = vmatmul.mubr.bf16.gmra.mrb[0].mxu0 %v591
      %v712 = vpop.f32.mrb[0].mxu0
      %v713 = vadd.f32 0.0, %v712
      %v714 = vpop.f32.mrb[0].mxu0
      %v715 = vpop.f32.mrb[0].mxu0
      %v716 = vadd.f32 0.0, %v715
      %v717 = vpop.f32.mrb[0].mxu0
      %718 = vmatprep.mubr.bf16.mxu0 0
      %719 = vmatmul.mubr.bf16.gmra.mrb[0].mxu0 %v592
      %v720 = vpop.f32.mrb[0].mxu0
      %v721 = vadd.f32 0.0, %v720
      %v722 = vpop.f32.mrb[0].mxu0
      %v723 = vpop.f32.mrb[0].mxu0
      %v724 = vadd.f32 0.0, %v723
      %v725 = vpop.f32.mrb[0].mxu0
      %726 = vmatprep.mubr.bf16.mxu0 0
      %727 = vmatmul.mubr.bf16.gmra.mrb[0].mxu0 %v593
      %v728 = vpop.f32.mrb[0].mxu0
      %v729 = vadd.f32 0.0, %v728
      %v730 = vpop.f32.mrb[0].mxu0
      %v731 = vpop.f32.mrb[0].mxu0
      %v732 = vadd.f32 0.0, %v731
      %v733 = vpop.f32.mrb[0].mxu0
      %734 = vmatprep.mubr.bf16.mxu0 0
      %735 = vmatmul.mubr.bf16.gmra.mrb[0].mxu0 %v594
      %v736 = vpop.f32.mrb[0].mxu0
      %v737 = vadd.f32 0.0, %v736
      %v738 = vpop.f32.mrb[0].mxu0
      %v739 = vpop.f32.mrb[0].mxu0
      %v740 = vadd.f32 0.0, %v739
      %v741 = vpop.f32.mrb[0].mxu0
      %742 = vmatprep.mubr.bf16.mxu0 0
      %743 = vmatmul.mubr.bf16.gmra.mrb[0].mxu0 %v595
      %v744 = vpop.f32.mrb[0].mxu0
      %v745 = vadd.f32 0.0, %v744
      %v746 = vpop.f32.mrb[0].mxu0
      %v747 = vpop.f32.mrb[0].mxu0
      %v748 = vadd.f32 0.0, %v747
      %v749 = vpop.f32.mrb[0].mxu0
      %750 = vmatprep.mubr.bf16.mxu0 0
      %751 = vmatmul.mubr.bf16.gmra.mrb[0].mxu0 %v596
      %v752 = vpop.f32.mrb[0].mxu0
      %v753 = vadd.f32 0.0, %v752
      %v754 = vpop.f32.mrb[0].mxu0
      %v755 = vpop.f32.mrb[0].mxu0
      %v756 = vadd.f32 0.0, %v755
      %v757 = vpop.f32.mrb[0].mxu0
      %758 = vmatprep.mubr.bf16.mxu0 0
      %759 = vmatmul.mubr.bf16.gmra.mrb[0].mxu0 %v597
      %v760 = vpop.f32.mrb[0].mxu0
      %v761 = vadd.f32 0.0, %v760
      %v762 = vpop.f32.mrb[0].mxu0
      %v763 = vpop.f32.mrb[0].mxu0
      %v764 = vadd.f32 0.0, %v763
      %v765 = vpop.f32.mrb[0].mxu0
      %766 = vmatprep.mubr.bf16.mxu0 0
      %767 = vmatmul.mubr.bf16.gmra.mrb[0].mxu0 %v598
      %v768 = vpop.f32.mrb[0].mxu0
      %v769 = vadd.f32 0.0, %v768
      %v770 = vpop.f32.mrb[0].mxu0
      %v771 = vpop.f32.mrb[0].mxu0
      %v772 = vadd.f32 0.0, %v771
      %v773 = vpop.f32.mrb[0].mxu0
      %774 = vmatprep.mubr.bf16.mxu0 0
      %775 = vmatmul.mubr.bf16.gmra.mrb[0].mxu0 %v599
      %v776 = vpop.f32.mrb[0].mxu0
      %v777 = vadd.f32 0.0, %v776
      %v778 = vpop.f32.mrb[0].mxu0
      %v779 = vpop.f32.mrb[0].mxu0
      %v780 = vadd.f32 0.0, %v779
      %v781 = vpop.f32.mrb[0].mxu0
      %782 = vmatprep.mubr.bf16.mxu0 0
      %783 = vmatmul.mubr.bf16.gmra.mrb[0].mxu0 %v600
      %v784 = vpop.f32.mrb[0].mxu0
      %v785 = vadd.f32 0.0, %v784
      %v786 = vpop.f32.mrb[0].mxu0
      %v787 = vpop.f32.mrb[0].mxu0
      %v788 = vadd.f32 0.0, %v787
      %v789 = vpop.f32.mrb[0].mxu0
      %790 = vmatprep.mubr.bf16.mxu0 0
      %791 = vmatmul.mubr.bf16.gmra.mrb[0].mxu0 %v601
      %v792 = vpop.f32.mrb[0].mxu0
      %v793 = vadd.f32 0.0, %v792
      %v794 = vpop.f32.mrb[0].mxu0
      %v795 = vpop.f32.mrb[0].mxu0
      %v796 = vadd.f32 0.0, %v795
      %v797 = vpop.f32.mrb[0].mxu0
      %798 = vmatprep.mubr.bf16.mxu0 0
      %799 = vmatmul.mubr.bf16.gmra.mrb[0].mxu0 %v602
      %v800 = vpop.f32.mrb[0].mxu0
      %v801 = vadd.f32 0.0, %v800
      %v802 = vpop.f32.mrb[0].mxu0
      %v803 = vpop.f32.mrb[0].mxu0
      %v804 = vadd.f32 0.0, %v803
      %v805 = vpop.f32.mrb[0].mxu0
      %806 = vmatprep.mubr.bf16.mxu0 0
      %807 = vmatmul.mubr.bf16.gmra.mrb[0].mxu0 %v603
      %v808 = vpop.f32.mrb[0].mxu0
      %v809 = vadd.f32 0.0, %v808
      %v810 = vpop.f32.mrb[0].mxu0
      %v811 = vpop.f32.mrb[0].mxu0
      %v812 = vadd.f32 0.0, %v811
      %v813 = vpop.f32.mrb[0].mxu0
      %814 = vmatprep.mubr.bf16.mxu0 0
      %815 = vmatmul.mubr.bf16.gmra.mrb[0].mxu0 %v604
      %v816 = vpop.f32.mrb[0].mxu0
      %v817 = vadd.f32 0.0, %v816
      %v818 = vpop.f32.mrb[0].mxu0
      %v819 = vpop.f32.mrb[0].mxu0
      %v820 = vadd.f32 0.0, %v819
      %v821 = vpop.f32.mrb[0].mxu0
      %822 = vmatprep.mubr.bf16.mxu0 0
      %823 = vmatmul.mubr.bf16.gmra.mrb[0].mxu0 %v605
      %v824 = vpop.f32.mrb[0].mxu0
      %v825 = vadd.f32 0.0, %v824
      %v826 = vpop.f32.mrb[0].mxu0
      %v827 = vpop.f32.mrb[0].mxu0
      %v828 = vadd.f32 0.0, %v827
      %v829 = vpop.f32.mrb[0].mxu0
      %830 = vdwg.mxu0
      %v831 = vld [vmem:[%s4] sm:$0x1]
      %v833 = vlaneseq
      %v834 = vshrl.u32 %v833, 7
      %v835 = vsub.s32 0, %v834
      %v836 = vrot.slane %v831, %v835
      %v838 = vmul.f32 %v705, %v836
      %v839 = vmul.f32 %v708, %v836
      %v840 = vmul.f32 %v713, %v836
      %v841 = vmul.f32 %v716, %v836
      %v842 = vmul.f32 %v721, %v836
      %v843 = vmul.f32 %v724, %v836
      %v844 = vmul.f32 %v729, %v836
      %v845 = vmul.f32 %v732, %v836
      %v846 = vmul.f32 %v737, %v836
      %v847 = vmul.f32 %v740, %v836
      %v848 = vmul.f32 %v745, %v836
      %v849 = vmul.f32 %v748, %v836
      %v850 = vmul.f32 %v753, %v836
      %v851 = vmul.f32 %v756, %v836
      %v852 = vmul.f32 %v761, %v836
      %v853 = vmul.f32 %v764, %v836
      %v854 = vmul.f32 %v769, %v836
      %v855 = vmul.f32 %v772, %v836
      %v856 = vmul.f32 %v777, %v836
      %v857 = vmul.f32 %v780, %v836
      %v858 = vmul.f32 %v785, %v836
      %v859 = vmul.f32 %v788, %v836
      %v860 = vmul.f32 %v793, %v836
      %v861 = vmul.f32 %v796, %v836
      %v862 = vmul.f32 %v801, %v836
      %v863 = vmul.f32 %v804, %v836
      %v864 = vmul.f32 %v809, %v836
      %v865 = vmul.f32 %v812, %v836
      %v866 = vmul.f32 %v817, %v836
      %v867 = vmul.f32 %v820, %v836
      %v868 = vmul.f32 %v825, %v836
      %v869 = vmul.f32 %v828, %v836
      %v870 = vld [vmem:[%s5] sm:$0x1]
      %v872 = vlaneseq
      %v873 = vshrl.u32 %v872, 7
      %v874 = vsub.s32 0, %v873
      %v875 = vrot.slane %v870, %v874
      %v877 = vadd.f32 %v838, %v875
      %v878 = vadd.f32 %v839, %v875
      %v879 = vadd.f32 %v840, %v875
      %v880 = vadd.f32 %v841, %v875
      %v881 = vadd.f32 %v842, %v875
      %v882 = vadd.f32 %v843, %v875
      %v883 = vadd.f32 %v844, %v875
      %v884 = vadd.f32 %v845, %v875
      %v885 = vadd.f32 %v846, %v875
      %v886 = vadd.f32 %v847, %v875
      %v887 = vadd.f32 %v848, %v875
      %v888 = vadd.f32 %v849, %v875
      %v889 = vadd.f32 %v850, %v875
      %v890 = vadd.f32 %v851, %v875
      %v891 = vadd.f32 %v852, %v875
      %v892 = vadd.f32 %v853, %v875
      %v893 = vadd.f32 %v854, %v875
      %v894 = vadd.f32 %v855, %v875
      %v895 = vadd.f32 %v856, %v875
      %v896 = vadd.f32 %v857, %v875
      %v897 = vadd.f32 %v858, %v875
      %v898 = vadd.f32 %v859, %v875
      %v899 = vadd.f32 %v860, %v875
      %v900 = vadd.f32 %v861, %v875
      %v901 = vadd.f32 %v862, %v875
      %v902 = vadd.f32 %v863, %v875
      %v903 = vadd.f32 %v864, %v875
      %v904 = vadd.f32 %v865, %v875
      %v905 = vadd.f32 %v866, %v875
      %v906 = vadd.f32 %v867, %v875
      %v907 = vadd.f32 %v868, %v875
      %v908 = vadd.f32 %v869, %v875
      %v909 = vmax.f32 %v877, 0.0
      %v910 = vmax.f32 %v878, 0.0
      %v911 = vmax.f32 %v879, 0.0
      %v912 = vmax.f32 %v880, 0.0
      %v913 = vmax.f32 %v881, 0.0
      %v914 = vmax.f32 %v882, 0.0
      %v915 = vmax.f32 %v883, 0.0
      %v916 = vmax.f32 %v884, 0.0
      %v917 = vmax.f32 %v885, 0.0
      %v918 = vmax.f32 %v886, 0.0
      %v919 = vmax.f32 %v887, 0.0
      %v920 = vmax.f32 %v888, 0.0
      %v921 = vmax.f32 %v889, 0.0
      %v922 = vmax.f32 %v890, 0.0
      %v923 = vmax.f32 %v891, 0.0
      %v924 = vmax.f32 %v892, 0.0
      %v925 = vmax.f32 %v893, 0.0
      %v926 = vmax.f32 %v894, 0.0
      %v927 = vmax.f32 %v895, 0.0
      %v928 = vmax.f32 %v896, 0.0
      %v929 = vmax.f32 %v897, 0.0
      %v930 = vmax.f32 %v898, 0.0
      %v931 = vmax.f32 %v899, 0.0
      %v932 = vmax.f32 %v900, 0.0
      %v933 = vmax.f32 %v901, 0.0
      %v934 = vmax.f32 %v902, 0.0
      %v935 = vmax.f32 %v903, 0.0
      %v936 = vmax.f32 %v904, 0.0
      %v937 = vmax.f32 %v905, 0.0
      %v938 = vmax.f32 %v906, 0.0
      %v939 = vmax.f32 %v907, 0.0
      %v940 = vmax.f32 %v908, 0.0
      %941 = vst [vmem:[#allocation2 + $0x7] sm:$0xff] 0.0
      %942 = vst [vmem:[#allocation2 + $0xf] sm:$0xff] 0.0
      %943 = vst [vmem:[#allocation2 + $0x17] sm:$0x3] 0.0
      %s944 = scalar_lea.vmem [#allocation2], 544
      %945 = vst [vmem:[%s944 + $0x7] sm:$0xff] 0.0
      %946 = vst [vmem:[%s944 + $0xf] sm:$0xff] 0.0
      %947 = vst [vmem:[%s944 + $0x17] sm:$0x3] 0.0
      %s948 = scalar_lea.vmem [#allocation2], 32
      %949 = vst [vmem:[%s948 + $0x7] sm:$0x1] 0.0
      %950 = vst [vmem:[%s948 + $0x27] sm:$0x1] 0.0
      %951 = vst [vmem:[%s948 + $0x47] sm:$0x1] 0.0
      %952 = vst [vmem:[%s948 + $0x67] sm:$0x1] 0.0
      %953 = vst [vmem:[%s948 + $0x87] sm:$0x1] 0.0
      %954 = vst [vmem:[%s948 + $0xa7] sm:$0x1] 0.0
      %955 = vst [vmem:[%s948 + $0xc7] sm:$0x1] 0.0
      %956 = vst [vmem:[%s948 + $0xe7] sm:$0x1] 0.0
      %957 = vst [vmem:[%s948 + $0x107] sm:$0x1] 0.0
      %958 = vst [vmem:[%s948 + $0x127] sm:$0x1] 0.0
      %959 = vst [vmem:[%s948 + $0x147] sm:$0x1] 0.0
      %960 = vst [vmem:[%s948 + $0x167] sm:$0x1] 0.0
      %961 = vst [vmem:[%s948 + $0x187] sm:$0x1] 0.0
      %962 = vst [vmem:[%s948 + $0x1a7] sm:$0x1] 0.0
      %963 = vst [vmem:[%s948 + $0x1c7] sm:$0x1] 0.0
      %964 = vst [vmem:[%s948 + $0x1e7] sm:$0x1] 0.0
      %965 = vst [vmem:[%s948 + $0x18] sm:$0x1] 0.0
      %966 = vst [vmem:[%s948 + $0x38] sm:$0x1] 0.0
      %967 = vst [vmem:[%s948 + $0x58] sm:$0x1] 0.0
      %968 = vst [vmem:[%s948 + $0x78] sm:$0x1] 0.0
      %969 = vst [vmem:[%s948 + $0x98] sm:$0x1] 0.0
      %970 = vst [vmem:[%s948 + $0xb8] sm:$0x1] 0.0
      %971 = vst [vmem:[%s948 + $0xd8] sm:$0x1] 0.0
      %972 = vst [vmem:[%s948 + $0xf8] sm:$0x1] 0.0
      %973 = vst [vmem:[%s948 + $0x118] sm:$0x1] 0.0
      %974 = vst [vmem:[%s948 + $0x138] sm:$0x1] 0.0
      %975 = vst [vmem:[%s948 + $0x158] sm:$0x1] 0.0
      %976 = vst [vmem:[%s948 + $0x178] sm:$0x1] 0.0
      %977 = vst [vmem:[%s948 + $0x198] sm:$0x1] 0.0
      %978 = vst [vmem:[%s948 + $0x1b8] sm:$0x1] 0.0
      %979 = vst [vmem:[%s948 + $0x1d8] sm:$0x1] 0.0
      %980 = vst [vmem:[%s948 + $0x1f8] sm:$0x1] 0.0
      %981 = vst [vmem:[%s948 + $0x8] sm:$0xff] %v909
      %982 = vst [vmem:[%s948 + $0x10] sm:$0xff] %v910
      %983 = vst [vmem:[%s948 + $0x28] sm:$0xff] %v911
      %984 = vst [vmem:[%s948 + $0x30] sm:$0xff] %v912
      %985 = vst [vmem:[%s948 + $0x48] sm:$0xff] %v913
      %986 = vst [vmem:[%s948 + $0x50] sm:$0xff] %v914
      %987 = vst [vmem:[%s948 + $0x68] sm:$0xff] %v915
      %988 = vst [vmem:[%s948 + $0x70] sm:$0xff] %v916
      %989 = vst [vmem:[%s948 + $0x88] sm:$0xff] %v917
      %990 = vst [vmem:[%s948 + $0x90] sm:$0xff] %v918
      %991 = vst [vmem:[%s948 + $0xa8] sm:$0xff] %v919
      %992 = vst [vmem:[%s948 + $0xb0] sm:$0xff] %v920
      %993 = vst [vmem:[%s948 + $0xc8] sm:$0xff] %v921
      %994 = vst [vmem:[%s948 + $0xd0] sm:$0xff] %v922
      %995 = vst [vmem:[%s948 + $0xe8] sm:$0xff] %v923
      %996 = vst [vmem:[%s948 + $0xf0] sm:$0xff] %v924
      %997 = vst [vmem:[%s948 + $0x108] sm:$0xff] %v925
      %998 = vst [vmem:[%s948 + $0x110] sm:$0xff] %v926
      %999 = vst [vmem:[%s948 + $0x128] sm:$0xff] %v927
      %1000 = vst [vmem:[%s948 + $0x130] sm:$0xff] %v928
      %1001 = vst [vmem:[%s948 + $0x148] sm:$0xff] %v929
      %1002 = vst [vmem:[%s948 + $0x150] sm:$0xff] %v930
      %1003 = vst [vmem:[%s948 + $0x168] sm:$0xff] %v931
      %1004 = vst [vmem:[%s948 + $0x170] sm:$0xff] %v932
      %1005 = vst [vmem:[%s948 + $0x188] sm:$0xff] %v933
      %1006 = vst [vmem:[%s948 + $0x190] sm:$0xff] %v934
      %1007 = vst [vmem:[%s948 + $0x1a8] sm:$0xff] %v935
      %1008 = vst [vmem:[%s948 + $0x1b0] sm:$0xff] %v936
      %1009 = vst [vmem:[%s948 + $0x1c8] sm:$0xff] %v937
      %1010 = vst [vmem:[%s948 + $0x1d0] sm:$0xff] %v938
      %1011 = vst [vmem:[%s948 + $0x1e8] sm:$0xff] %v939
      %1012 = vst [vmem:[%s948 + $0x1f0] sm:$0xff] %v940
      %v1013 = vld [vmem:[#allocation2] sm:$0xff]
      %v1014 = vld [vmem:[#allocation2 + $0x8] sm:$0xff]
      %v1015 = vld [vmem:[#allocation2 + $0x10] sm:$0xff]
      %v1016 = vld [vmem:[#allocation2 + $0x18] sm:$0xff]
      %v1017 = vld [vmem:[#allocation2 + $0x20] sm:$0xff]
      %v1018 = vld [vmem:[#allocation2 + $0x28] sm:$0xff]
      %v1019 = vld [vmem:[#allocation2 + $0x30] sm:$0xff]
      %v1020 = vld [vmem:[#allocation2 + $0x38] sm:$0xff]
      %v1021 = vld [vmem:[#allocation2 + $0x40] sm:$0xff]
      %v1022 = vld [vmem:[#allocation2 + $0x48] sm:$0xff]
      %v1023 = vld [vmem:[#allocation2 + $0x50] sm:$0xff]
      %v1024 = vld [vmem:[#allocation2 + $0x58] sm:$0xff]
      %v1025 = vld [vmem:[#allocation2 + $0x60] sm:$0xff]
      %v1026 = vld [vmem:[#allocation2 + $0x68] sm:$0xff]
      %v1027 = vld [vmem:[#allocation2 + $0x70] sm:$0xff]
      %v1028 = vld [vmem:[#allocation2 + $0x78] sm:$0xff]
      %v1029 = vld [vmem:[#allocation2 + $0x80] sm:$0xff]
      %v1030 = vld [vmem:[#allocation2 + $0x88] sm:$0xff]
      %v1031 = vld [vmem:[#allocation2 + $0x90] sm:$0xff]
      %v1032 = vld [vmem:[#allocation2 + $0x98] sm:$0xff]
      %v1033 = vld [vmem:[#allocation2 + $0xa0] sm:$0xff]
      %v1034 = vld [vmem:[#allocation2 + $0xa8] sm:$0xff]
      %v1035 = vld [vmem:[#allocation2 + $0xb0] sm:$0xff]
      %v1036 = vld [vmem:[#allocation2 + $0xb8] sm:$0xff]
      %v1037 = vld [vmem:[#allocation2 + $0xc0] sm:$0xff]
      %v1038 = vld [vmem:[#allocation2 + $0xc8] sm:$0xff]
      %v1039 = vld [vmem:[#allocation2 + $0xd0] sm:$0xff]
      %v1040 = vld [vmem:[#allocation2 + $0xd8] sm:$0xff]
      %v1041 = vld [vmem:[#allocation2 + $0xe0] sm:$0xff]
      %v1042 = vld [vmem:[#allocation2 + $0xe8] sm:$0xff]
      %v1043 = vld [vmem:[#allocation2 + $0xf0] sm:$0xff]
      %v1044 = vld [vmem:[#allocation2 + $0xf8] sm:$0xff]
      %v1045 = vld [vmem:[#allocation2 + $0x100] sm:$0xff]
      %v1046 = vld [vmem:[#allocation2 + $0x108] sm:$0xff]
      %v1047 = vld [vmem:[#allocation2 + $0x110] sm:$0xff]
      %v1048 = vld [vmem:[#allocation2 + $0x118] sm:$0xff]
      %v1049 = vld [vmem:[#allocation2 + $0x120] sm:$0xff]
      %v1050 = vld [vmem:[#allocation2 + $0x128] sm:$0xff]
      %v1051 = vld [vmem:[#allocation2 + $0x130] sm:$0xff]
      %v1052 = vld [vmem:[#allocation2 + $0x138] sm:$0xff]
      %v1053 = vld [vmem:[#allocation2 + $0x140] sm:$0xff]
      %v1054 = vld [vmem:[#allocation2 + $0x148] sm:$0xff]
      %v1055 = vld [vmem:[#allocation2 + $0x150] sm:$0xff]
      %v1056 = vld [vmem:[#allocation2 + $0x158] sm:$0xff]
      %v1057 = vld [vmem:[#allocation2 + $0x160] sm:$0xff]
      %v1058 = vld [vmem:[#allocation2 + $0x168] sm:$0xff]
      %v1059 = vld [vmem:[#allocation2 + $0x170] sm:$0xff]
      %v1060 = vld [vmem:[#allocation2 + $0x178] sm:$0xff]
      %v1061 = vld [vmem:[#allocation2 + $0x180] sm:$0xff]
      %v1062 = vld [vmem:[#allocation2 + $0x188] sm:$0xff]
      %v1063 = vld [vmem:[#allocation2 + $0x190] sm:$0xff]
      %v1064 = vld [vmem:[#allocation2 + $0x198] sm:$0xff]
      %v1065 = vld [vmem:[#allocation2 + $0x1a0] sm:$0xff]
      %v1066 = vld [vmem:[#allocation2 + $0x1a8] sm:$0xff]
      %v1067 = vld [vmem:[#allocation2 + $0x1b0] sm:$0xff]
      %v1068 = vld [vmem:[#allocation2 + $0x1b8] sm:$0xff]
      %v1069 = vld [vmem:[#allocation2 + $0x1c0] sm:$0xff]
      %v1070 = vld [vmem:[#allocation2 + $0x1c8] sm:$0xff]
      %v1071 = vld [vmem:[#allocation2 + $0x1d0] sm:$0xff]
      %v1072 = vld [vmem:[#allocation2 + $0x1d8] sm:$0xff]
      %v1073 = vld [vmem:[#allocation2 + $0x1e0] sm:$0xff]
      %v1074 = vld [vmem:[#allocation2 + $0x1e8] sm:$0xff]
      %v1075 = vld [vmem:[#allocation2 + $0x1f0] sm:$0xff]
      %v1076 = vld [vmem:[#allocation2 + $0x1f8] sm:$0xff]
      %vm1125 = vcmask 1040384
      %v1126 = vrot.slane %v1013, 7
      %v1127 = vrot.slane %v1014, 7
      %v1128 = vsel %vm1125, %v1126, %v1127
      %v1129 = vrot.slane %v1015, 7
      %v1130 = vsel %vm1125, %v1127, %v1129
      %v1131 = vrot.slane %v1017, 7
      %v1132 = vrot.slane %v1018, 7
      %v1133 = vsel %vm1125, %v1131, %v1132
      %v1134 = vrot.slane %v1019, 7
      %v1135 = vsel %vm1125, %v1132, %v1134
      %v1136 = vrot.slane %v1021, 7
      %v1137 = vrot.slane %v1022, 7
      %v1138 = vsel %vm1125, %v1136, %v1137
      %v1139 = vrot.slane %v1023, 7
      %v1140 = vsel %vm1125, %v1137, %v1139
      %v1141 = vrot.slane %v1025, 7
      %v1142 = vrot.slane %v1026, 7
      %v1143 = vsel %vm1125, %v1141, %v1142
      %v1144 = vrot.slane %v1027, 7
      %v1145 = vsel %vm1125, %v1142, %v1144
      %v1146 = vrot.slane %v1029, 7
      %v1147 = vrot.slane %v1030, 7
      %v1148 = vsel %vm1125, %v1146, %v1147
      %v1149 = vrot.slane %v1031, 7
      %v1150 = vsel %vm1125, %v1147, %v1149
      %v1151 = vrot.slane %v1033, 7
      %v1152 = vrot.slane %v1034, 7
      %v1153 = vsel %vm1125, %v1151, %v1152
      %v1154 = vrot.slane %v1035, 7
      %v1155 = vsel %vm1125, %v1152, %v1154
      %v1156 = vrot.slane %v1037, 7
      %v1157 = vrot.slane %v1038, 7
      %v1158 = vsel %vm1125, %v1156, %v1157
      %v1159 = vrot.slane %v1039, 7
      %v1160 = vsel %vm1125, %v1157, %v1159
      %v1161 = vrot.slane %v1041, 7
      %v1162 = vrot.slane %v1042, 7
      %v1163 = vsel %vm1125, %v1161, %v1162
      %v1164 = vrot.slane %v1043, 7
      %v1165 = vsel %vm1125, %v1162, %v1164
      %v1166 = vrot.slane %v1045, 7
      %v1167 = vrot.slane %v1046, 7
      %v1168 = vsel %vm1125, %v1166, %v1167
      %v1169 = vrot.slane %v1047, 7
      %v1170 = vsel %vm1125, %v1167, %v1169
      %v1171 = vrot.slane %v1049, 7
      %v1172 = vrot.slane %v1050, 7
      %v1173 = vsel %vm1125, %v1171, %v1172
      %v1174 = vrot.slane %v1051, 7
      %v1175 = vsel %vm1125, %v1172, %v1174
      %v1176 = vrot.slane %v1053, 7
      %v1177 = vrot.slane %v1054, 7
      %v1178 = vsel %vm1125, %v1176, %v1177
      %v1179 = vrot.slane %v1055, 7
      %v1180 = vsel %vm1125, %v1177, %v1179
      %v1181 = vrot.slane %v1057, 7
      %v1182 = vrot.slane %v1058, 7
      %v1183 = vsel %vm1125, %v1181, %v1182
      %v1184 = vrot.slane %v1059, 7
      %v1185 = vsel %vm1125, %v1182, %v1184
      %v1186 = vrot.slane %v1061, 7
      %v1187 = vrot.slane %v1062, 7
      %v1188 = vsel %vm1125, %v1186, %v1187
      %v1189 = vrot.slane %v1063, 7
      %v1190 = vsel %vm1125, %v1187, %v1189
      %v1191 = vrot.slane %v1065, 7
      %v1192 = vrot.slane %v1066, 7
      %v1193 = vsel %vm1125, %v1191, %v1192
      %v1194 = vrot.slane %v1067, 7
      %v1195 = vsel %vm1125, %v1192, %v1194
      %v1196 = vrot.slane %v1069, 7
      %v1197 = vrot.slane %v1070, 7
      %v1198 = vsel %vm1125, %v1196, %v1197
      %v1199 = vrot.slane %v1071, 7
      %v1200 = vsel %vm1125, %v1197, %v1199
      %v1201 = vrot.slane %v1073, 7
      %v1202 = vrot.slane %v1074, 7
      %v1203 = vsel %vm1125, %v1201, %v1202
      %v1204 = vrot.slane %v1075, 7
      %v1205 = vsel %vm1125, %v1202, %v1204
      %v1238 = vpack.c.bf16 %v1130, %v1128
      %v1239 = vpack.c.bf16 %v1135, %v1133
      %v1240 = vpack.c.bf16 %v1140, %v1138
      %v1241 = vpack.c.bf16 %v1145, %v1143
      %v1242 = vpack.c.bf16 %v1150, %v1148
      %v1243 = vpack.c.bf16 %v1155, %v1153
      %v1244 = vpack.c.bf16 %v1160, %v1158
      %v1245 = vpack.c.bf16 %v1165, %v1163
      %v1246 = vpack.c.bf16 %v1170, %v1168
      %v1247 = vpack.c.bf16 %v1175, %v1173
      %v1248 = vpack.c.bf16 %v1180, %v1178
      %v1249 = vpack.c.bf16 %v1185, %v1183
      %v1250 = vpack.c.bf16 %v1190, %v1188
      %v1251 = vpack.c.bf16 %v1195, %v1193
      %v1252 = vpack.c.bf16 %v1200, %v1198
      %v1253 = vpack.c.bf16 %v1205, %v1203
      %v1254 = vpack.c.bf16 %v1015, %v1014
      %v1255 = vpack.c.bf16 %v1019, %v1018
      %v1256 = vpack.c.bf16 %v1023, %v1022
      %v1257 = vpack.c.bf16 %v1027, %v1026
      %v1258 = vpack.c.bf16 %v1031, %v1030
      %v1259 = vpack.c.bf16 %v1035, %v1034
      %v1260 = vpack.c.bf16 %v1039, %v1038
      %v1261 = vpack.c.bf16 %v1043, %v1042
      %v1262 = vpack.c.bf16 %v1047, %v1046
      %v1263 = vpack.c.bf16 %v1051, %v1050
      %v1264 = vpack.c.bf16 %v1055, %v1054
      %v1265 = vpack.c.bf16 %v1059, %v1058
      %v1266 = vpack.c.bf16 %v1063, %v1062
      %v1267 = vpack.c.bf16 %v1067, %v1066
      %v1268 = vpack.c.bf16 %v1071, %v1070
      %v1269 = vpack.c.bf16 %v1075, %v1074
      %vm1286 = vcmask 1046528
      %v1287 = vrot.slane %v1014, 1
      %v1288 = vrot.slane %v1015, 1
      %v1289 = vsel %vm1286, %v1287, %v1288
      %v1290 = vrot.slane %v1016, 1
      %v1291 = vsel %vm1286, %v1288, %v1290
      %v1292 = vrot.slane %v1018, 1
      %v1293 = vrot.slane %v1019, 1
      %v1294 = vsel %vm1286, %v1292, %v1293
      %v1295 = vrot.slane %v1020, 1
      %v1296 = vsel %vm1286, %v1293, %v1295
      %v1297 = vrot.slane %v1022, 1
      %v1298 = vrot.slane %v1023, 1
      %v1299 = vsel %vm1286, %v1297, %v1298
      %v1300 = vrot.slane %v1024, 1
      %v1301 = vsel %vm1286, %v1298, %v1300
      %v1302 = vrot.slane %v1026, 1
      %v1303 = vrot.slane %v1027, 1
      %v1304 = vsel %vm1286, %v1302, %v1303
      %v1305 = vrot.slane %v1028, 1
      %v1306 = vsel %vm1286, %v1303, %v1305
      %v1307 = vrot.slane %v1030, 1
      %v1308 = vrot.slane %v1031, 1
      %v1309 = vsel %vm1286, %v1307, %v1308
      %v1310 = vrot.slane %v1032, 1
      %v1311 = vsel %vm1286, %v1308, %v1310
      %v1312 = vrot.slane %v1034, 1
      %v1313 = vrot.slane %v1035, 1
      %v1314 = vsel %vm1286, %v1312, %v1313
      %v1315 = vrot.slane %v1036, 1
      %v1316 = vsel %vm1286, %v1313, %v1315
      %v1317 = vrot.slane %v1038, 1
      %v1318 = vrot.slane %v1039, 1
      %v1319 = vsel %vm1286, %v1317, %v1318
      %v1320 = vrot.slane %v1040, 1
      %v1321 = vsel %vm1286, %v1318, %v1320
      %v1322 = vrot.slane %v1042, 1
      %v1323 = vrot.slane %v1043, 1
      %v1324 = vsel %vm1286, %v1322, %v1323
      %v1325 = vrot.slane %v1044, 1
      %v1326 = vsel %vm1286, %v1323, %v1325
      %v1327 = vrot.slane %v1046, 1
      %v1328 = vrot.slane %v1047, 1
      %v1329 = vsel %vm1286, %v1327, %v1328
      %v1330 = vrot.slane %v1048, 1
      %v1331 = vsel %vm1286, %v1328, %v1330
      %v1332 = vrot.slane %v1050, 1
      %v1333 = vrot.slane %v1051, 1
      %v1334 = vsel %vm1286, %v1332, %v1333
      %v1335 = vrot.slane %v1052, 1
      %v1336 = vsel %vm1286, %v1333, %v1335
      %v1337 = vrot.slane %v1054, 1
      %v1338 = vrot.slane %v1055, 1
      %v1339 = vsel %vm1286, %v1337, %v1338
      %v1340 = vrot.slane %v1056, 1
      %v1341 = vsel %vm1286, %v1338, %v1340
      %v1342 = vrot.slane %v1058, 1
      %v1343 = vrot.slane %v1059, 1
      %v1344 = vsel %vm1286, %v1342, %v1343
      %v1345 = vrot.slane %v1060, 1
      %v1346 = vsel %vm1286, %v1343, %v1345
      %v1347 = vrot.slane %v1062, 1
      %v1348 = vrot.slane %v1063, 1
      %v1349 = vsel %vm1286, %v1347, %v1348
      %v1350 = vrot.slane %v1064, 1
      %v1351 = vsel %vm1286, %v1348, %v1350
      %v1352 = vrot.slane %v1066, 1
      %v1353 = vrot.slane %v1067, 1
      %v1354 = vsel %vm1286, %v1352, %v1353
      %v1355 = vrot.slane %v1068, 1
      %v1356 = vsel %vm1286, %v1353, %v1355
      %v1357 = vrot.slane %v1070, 1
      %v1358 = vrot.slane %v1071, 1
      %v1359 = vsel %vm1286, %v1357, %v1358
      %v1360 = vrot.slane %v1072, 1
      %v1361 = vsel %vm1286, %v1358, %v1360
      %v1362 = vrot.slane %v1074, 1
      %v1363 = vrot.slane %v1075, 1
      %v1364 = vsel %vm1286, %v1362, %v1363
      %v1365 = vrot.slane %v1076, 1
      %v1366 = vsel %vm1286, %v1363, %v1365
      %v1399 = vpack.c.bf16 %v1291, %v1289
      %v1400 = vpack.c.bf16 %v1296, %v1294
      %v1401 = vpack.c.bf16 %v1301, %v1299
      %v1402 = vpack.c.bf16 %v1306, %v1304
      %v1403 = vpack.c.bf16 %v1311, %v1309
      %v1404 = vpack.c.bf16 %v1316, %v1314
      %v1405 = vpack.c.bf16 %v1321, %v1319
      %v1406 = vpack.c.bf16 %v1326, %v1324
      %v1407 = vpack.c.bf16 %v1331, %v1329
      %v1408 = vpack.c.bf16 %v1336, %v1334
      %v1409 = vpack.c.bf16 %v1341, %v1339
      %v1410 = vpack.c.bf16 %v1346, %v1344
      %v1411 = vpack.c.bf16 %v1351, %v1349
      %v1412 = vpack.c.bf16 %v1356, %v1354
      %v1413 = vpack.c.bf16 %v1361, %v1359
      %v1414 = vpack.c.bf16 %v1366, %v1364
      %v1415 = vld [vmem:[%s6] sm:$0xf]
      %v1416 = vld [vmem:[%s6 + $0x4] sm:$0xf]
      %v1417 = vld [vmem:[%s6 + $0x8] sm:$0xf]
      %v1418 = vld [vmem:[%s6 + $0xc] sm:$0xf]
      %v1419 = vld [vmem:[%s6 + $0x10] sm:$0xf]
      %v1420 = vld [vmem:[%s6 + $0x14] sm:$0xf]
      %v1421 = vld [vmem:[%s6 + $0x18] sm:$0xf]
      %v1422 = vld [vmem:[%s6 + $0x1c] sm:$0xf]
      %v1423 = vld [vmem:[%s6 + $0x20] sm:$0xf]
      %v1424 = vld [vmem:[%s6 + $0x24] sm:$0xf]
      %v1425 = vld [vmem:[%s6 + $0x28] sm:$0xf]
      %v1426 = vld [vmem:[%s6 + $0x2c] sm:$0xf]
      %v1427 = vld [vmem:[%s6 + $0x30] sm:$0xf]
      %v1428 = vld [vmem:[%s6 + $0x34] sm:$0xf]
      %v1429 = vld [vmem:[%s6 + $0x38] sm:$0xf]
      %v1430 = vld [vmem:[%s6 + $0x3c] sm:$0xf]
      %v1431 = vld [vmem:[%s6 + $0x40] sm:$0xf]
      %v1432 = vld [vmem:[%s6 + $0x44] sm:$0xf]
      %v1433 = vld [vmem:[%s6 + $0x48] sm:$0xf]
      %v1434 = vld [vmem:[%s6 + $0x4c] sm:$0xf]
      %v1435 = vld [vmem:[%s6 + $0x50] sm:$0xf]
      %v1436 = vld [vmem:[%s6 + $0x54] sm:$0xf]
      %v1437 = vld [vmem:[%s6 + $0x58] sm:$0xf]
      %v1438 = vld [vmem:[%s6 + $0x5c] sm:$0xf]
      %v1439 = vld [vmem:[%s6 + $0x60] sm:$0xf]
      %v1440 = vld [vmem:[%s6 + $0x64] sm:$0xf]
      %v1441 = vld [vmem:[%s6 + $0x68] sm:$0xf]
      %v1442 = vld [vmem:[%s6 + $0x6c] sm:$0xf]
      %v1443 = vld [vmem:[%s6 + $0x70] sm:$0xf]
      %v1444 = vld [vmem:[%s6 + $0x74] sm:$0xf]
      %v1445 = vld [vmem:[%s6 + $0x78] sm:$0xf]
      %v1446 = vld [vmem:[%s6 + $0x7c] sm:$0xf]
      %v1447 = vld [vmem:[%s6 + $0x80] sm:$0xf]
      %v1448 = vld [vmem:[%s6 + $0x84] sm:$0xf]
      %v1449 = vld [vmem:[%s6 + $0x88] sm:$0xf]
      %v1450 = vld [vmem:[%s6 + $0x8c] sm:$0xf]
      %v1451 = vld [vmem:[%s6 + $0x90] sm:$0xf]
      %v1452 = vld [vmem:[%s6 + $0x94] sm:$0xf]
      %v1453 = vld [vmem:[%s6 + $0x98] sm:$0xf]
      %v1454 = vld [vmem:[%s6 + $0x9c] sm:$0xf]
      %v1455 = vld [vmem:[%s6 + $0xa0] sm:$0xf]
      %v1456 = vld [vmem:[%s6 + $0xa4] sm:$0xf]
      %v1457 = vld [vmem:[%s6 + $0xa8] sm:$0xf]
      %v1458 = vld [vmem:[%s6 + $0xac] sm:$0xf]
      %v1459 = vld [vmem:[%s6 + $0xb0] sm:$0xf]
      %v1460 = vld [vmem:[%s6 + $0xb4] sm:$0xf]
      %v1461 = vld [vmem:[%s6 + $0xb8] sm:$0xf]
      %v1462 = vld [vmem:[%s6 + $0xbc] sm:$0xf]
      %v1463 = vld [vmem:[%s948] sm:$0xff]
      %v1464 = vld [vmem:[%s948 + $0x8] sm:$0xff]
      %v1465 = vld [vmem:[%s948 + $0x10] sm:$0xff]
      %v1466 = vld [vmem:[%s948 + $0x18] sm:$0xff]
      %v1467 = vld [vmem:[%s948 + $0x20] sm:$0xff]
      %v1468 = vld [vmem:[%s948 + $0x28] sm:$0xff]
      %v1469 = vld [vmem:[%s948 + $0x30] sm:$0xff]
      %v1470 = vld [vmem:[%s948 + $0x38] sm:$0xff]
      %v1471 = vld [vmem:[%s948 + $0x40] sm:$0xff]
      %v1472 = vld [vmem:[%s948 + $0x48] sm:$0xff]
      %v1473 = vld [vmem:[%s948 + $0x50] sm:$0xff]
      %v1474 = vld [vmem:[%s948 + $0x58] sm:$0xff]
      %v1475 = vld [vmem:[%s948 + $0x60] sm:$0xff]
      %v1476 = vld [vmem:[%s948 + $0x68] sm:$0xff]
      %v1477 = vld [vmem:[%s948 + $0x70] sm:$0xff]
      %v1478 = vld [vmem:[%s948 + $0x78] sm:$0xff]
      %v1479 = vld [vmem:[%s948 + $0x80] sm:$0xff]
      %v1480 = vld [vmem:[%s948 + $0x88] sm:$0xff]
      %v1481 = vld [vmem:[%s948 + $0x90] sm:$0xff]
      %v1482 = vld [vmem:[%s948 + $0x98] sm:$0xff]
      %v1483 = vld [vmem:[%s948 + $0xa0] sm:$0xff]
      %v1484 = vld [vmem:[%s948 + $0xa8] sm:$0xff]
      %v1485 = vld [vmem:[%s948 + $0xb0] sm:$0xff]
      %v1486 = vld [vmem:[%s948 + $0xb8] sm:$0xff]
      %v1487 = vld [vmem:[%s948 + $0xc0] sm:$0xff]
      %v1488 = vld [vmem:[%s948 + $0xc8] sm:$0xff]
      %v1489 = vld [vmem:[%s948 + $0xd0] sm:$0xff]
      %v1490 = vld [vmem:[%s948 + $0xd8] sm:$0xff]
      %v1491 = vld [vmem:[%s948 + $0xe0] sm:$0xff]
      %v1492 = vld [vmem:[%s948 + $0xe8] sm:$0xff]
      %v1493 = vld [vmem:[%s948 + $0xf0] sm:$0xff]
      %v1494 = vld [vmem:[%s948 + $0xf8] sm:$0xff]
      %v1495 = vld [vmem:[%s948 + $0x100] sm:$0xff]
      %v1496 = vld [vmem:[%s948 + $0x108] sm:$0xff]
      %v1497 = vld [vmem:[%s948 + $0x110] sm:$0xff]
      %v1498 = vld [vmem:[%s948 + $0x118] sm:$0xff]
      %v1499 = vld [vmem:[%s948 + $0x120] sm:$0xff]
      %v1500 = vld [vmem:[%s948 + $0x128] sm:$0xff]
      %v1501 = vld [vmem:[%s948 + $0x130] sm:$0xff]
      %v1502 = vld [vmem:[%s948 + $0x138] sm:$0xff]
      %v1503 = vld [vmem:[%s948 + $0x140] sm:$0xff]
      %v1504 = vld [vmem:[%s948 + $0x148] sm:$0xff]
      %v1505 = vld [vmem:[%s948 + $0x150] sm:$0xff]
      %v1506 = vld [vmem:[%s948 + $0x158] sm:$0xff]
      %v1507 = vld [vmem:[%s948 + $0x160] sm:$0xff]
      %v1508 = vld [vmem:[%s948 + $0x168] sm:$0xff]
      %v1509 = vld [vmem:[%s948 + $0x170] sm:$0xff]
      %v1510 = vld [vmem:[%s948 + $0x178] sm:$0xff]
      %v1511 = vld [vmem:[%s948 + $0x180] sm:$0xff]
      %v1512 = vld [vmem:[%s948 + $0x188] sm:$0xff]
      %v1513 = vld [vmem:[%s948 + $0x190] sm:$0xff]
      %v1514 = vld [vmem:[%s948 + $0x198] sm:$0xff]
      %v1515 = vld [vmem:[%s948 + $0x1a0] sm:$0xff]
      %v1516 = vld [vmem:[%s948 + $0x1a8] sm:$0xff]
      %v1517 = vld [vmem:[%s948 + $0x1b0] sm:$0xff]
      %v1518 = vld [vmem:[%s948 + $0x1b8] sm:$0xff]
      %v1519 = vld [vmem:[%s948 + $0x1c0] sm:$0xff]
      %v1520 = vld [vmem:[%s948 + $0x1c8] sm:$0xff]
      %v1521 = vld [vmem:[%s948 + $0x1d0] sm:$0xff]
      %v1522 = vld [vmem:[%s948 + $0x1d8] sm:$0xff]
      %v1523 = vld [vmem:[%s948 + $0x1e0] sm:$0xff]
      %v1524 = vld [vmem:[%s948 + $0x1e8] sm:$0xff]
      %v1525 = vld [vmem:[%s948 + $0x1f0] sm:$0xff]
      %v1526 = vld [vmem:[%s948 + $0x1f8] sm:$0xff]
      %v1575 = vrot.slane %v1463, 7
      %v1576 = vrot.slane %v1464, 7
      %v1577 = vsel %vm1125, %v1575, %v1576
      %v1578 = vrot.slane %v1465, 7
      %v1579 = vsel %vm1125, %v1576, %v1578
      %v1580 = vrot.slane %v1467, 7
      %v1581 = vrot.slane %v1468, 7
      %v1582 = vsel %vm1125, %v1580, %v1581
      %v1583 = vrot.slane %v1469, 7
      %v1584 = vsel %vm1125, %v1581, %v1583
      %v1585 = vrot.slane %v1471, 7
      %v1586 = vrot.slane %v1472, 7
      %v1587 = vsel %vm1125, %v1585, %v1586
      %v1588 = vrot.slane %v1473, 7
      %v1589 = vsel %vm1125, %v1586, %v1588
      %v1590 = vrot.slane %v1475, 7
      %v1591 = vrot.slane %v1476, 7
      %v1592 = vsel %vm1125, %v1590, %v1591
      %v1593 = vrot.slane %v1477, 7
      %v1594 = vsel %vm1125, %v1591, %v1593
      %v1595 = vrot.slane %v1479, 7
      %v1596 = vrot.slane %v1480, 7
      %v1597 = vsel %vm1125, %v1595, %v1596
      %v1598 = vrot.slane %v1481, 7
      %v1599 = vsel %vm1125, %v1596, %v1598
      %v1600 = vrot.slane %v1483, 7
      %v1601 = vrot.slane %v1484, 7
      %v1602 = vsel %vm1125, %v1600, %v1601
      %v1603 = vrot.slane %v1485, 7
      %v1604 = vsel %vm1125, %v1601, %v1603
      %v1605 = vrot.slane %v1487, 7
      %v1606 = vrot.slane %v1488, 7
      %v1607 = vsel %vm1125, %v1605, %v1606
      %v1608 = vrot.slane %v1489, 7
      %v1609 = vsel %vm1125, %v1606, %v1608
      %v1610 = vrot.slane %v1491, 7
      %v1611 = vrot.slane %v1492, 7
      %v1612 = vsel %vm1125, %v1610, %v1611
      %v1613 = vrot.slane %v1493, 7
      %v1614 = vsel %vm1125, %v1611, %v1613
      %v1615 = vrot.slane %v1495, 7
      %v1616 = vrot.slane %v1496, 7
      %v1617 = vsel %vm1125, %v1615, %v1616
      %v1618 = vrot.slane %v1497, 7
      %v1619 = vsel %vm1125, %v1616, %v1618
      %v1620 = vrot.slane %v1499, 7
      %v1621 = vrot.slane %v1500, 7
      %v1622 = vsel %vm1125, %v1620, %v1621
      %v1623 = vrot.slane %v1501, 7
      %v1624 = vsel %vm1125, %v1621, %v1623
      %v1625 = vrot.slane %v1503, 7
      %v1626 = vrot.slane %v1504, 7
      %v1627 = vsel %vm1125, %v1625, %v1626
      %v1628 = vrot.slane %v1505, 7
      %v1629 = vsel %vm1125, %v1626, %v1628
      %v1630 = vrot.slane %v1507, 7
      %v1631 = vrot.slane %v1508, 7
      %v1632 = vsel %vm1125, %v1630, %v1631
      %v1633 = vrot.slane %v1509, 7
      %v1634 = vsel %vm1125, %v1631, %v1633
      %v1635 = vrot.slane %v1511, 7
      %v1636 = vrot.slane %v1512, 7
      %v1637 = vsel %vm1125, %v1635, %v1636
      %v1638 = vrot.slane %v1513, 7
      %v1639 = vsel %vm1125, %v1636, %v1638
      %v1640 = vrot.slane %v1515, 7
      %v1641 = vrot.slane %v1516, 7
      %v1642 = vsel %vm1125, %v1640, %v1641
      %v1643 = vrot.slane %v1517, 7
      %v1644 = vsel %vm1125, %v1641, %v1643
      %v1645 = vrot.slane %v1519, 7
      %v1646 = vrot.slane %v1520, 7
      %v1647 = vsel %vm1125, %v1645, %v1646
      %v1648 = vrot.slane %v1521, 7
      %v1649 = vsel %vm1125, %v1646, %v1648
      %v1650 = vrot.slane %v1523, 7
      %v1651 = vrot.slane %v1524, 7
      %v1652 = vsel %vm1125, %v1650, %v1651
      %v1653 = vrot.slane %v1525, 7
      %v1654 = vsel %vm1125, %v1651, %v1653
      %v1687 = vpack.c.bf16 %v1579, %v1577
      %v1688 = vpack.c.bf16 %v1584, %v1582
      %v1689 = vpack.c.bf16 %v1589, %v1587
      %v1690 = vpack.c.bf16 %v1594, %v1592
      %v1691 = vpack.c.bf16 %v1599, %v1597
      %v1692 = vpack.c.bf16 %v1604, %v1602
      %v1693 = vpack.c.bf16 %v1609, %v1607
      %v1694 = vpack.c.bf16 %v1614, %v1612
      %v1695 = vpack.c.bf16 %v1619, %v1617
      %v1696 = vpack.c.bf16 %v1624, %v1622
      %v1697 = vpack.c.bf16 %v1629, %v1627
      %v1698 = vpack.c.bf16 %v1634, %v1632
      %v1699 = vpack.c.bf16 %v1639, %v1637
      %v1700 = vpack.c.bf16 %v1644, %v1642
      %v1701 = vpack.c.bf16 %v1649, %v1647
      %v1702 = vpack.c.bf16 %v1654, %v1652
      %v1703 = vpack.c.bf16 %v1465, %v1464
      %v1704 = vpack.c.bf16 %v1469, %v1468
      %v1705 = vpack.c.bf16 %v1473, %v1472
      %v1706 = vpack.c.bf16 %v1477, %v1476
      %v1707 = vpack.c.bf16 %v1481, %v1480
      %v1708 = vpack.c.bf16 %v1485, %v1484
      %v1709 = vpack.c.bf16 %v1489, %v1488
      %v1710 = vpack.c.bf16 %v1493, %v1492
      %v1711 = vpack.c.bf16 %v1497, %v1496
      %v1712 = vpack.c.bf16 %v1501, %v1500
      %v1713 = vpack.c.bf16 %v1505, %v1504
      %v1714 = vpack.c.bf16 %v1509, %v1508
      %v1715 = vpack.c.bf16 %v1513, %v1512
      %v1716 = vpack.c.bf16 %v1517, %v1516
      %v1717 = vpack.c.bf16 %v1521, %v1520
      %v1718 = vpack.c.bf16 %v1525, %v1524
      %v1735 = vrot.slane %v1464, 1
      %v1736 = vrot.slane %v1465, 1
      %v1737 = vsel %vm1286, %v1735, %v1736
      %v1738 = vrot.slane %v1466, 1
      %v1739 = vsel %vm1286, %v1736, %v1738
      %v1740 = vrot.slane %v1468, 1
      %v1741 = vrot.slane %v1469, 1
      %v1742 = vsel %vm1286, %v1740, %v1741
      %v1743 = vrot.slane %v1470, 1
      %v1744 = vsel %vm1286, %v1741, %v1743
      %v1745 = vrot.slane %v1472, 1
      %v1746 = vrot.slane %v1473, 1
      %v1747 = vsel %vm1286, %v1745, %v1746
      %v1748 = vrot.slane %v1474, 1
      %v1749 = vsel %vm1286, %v1746, %v1748
      %v1750 = vrot.slane %v1476, 1
      %v1751 = vrot.slane %v1477, 1
      %v1752 = vsel %vm1286, %v1750, %v1751
      %v1753 = vrot.slane %v1478, 1
      %v1754 = vsel %vm1286, %v1751, %v1753
      %v1755 = vrot.slane %v1480, 1
      %v1756 = vrot.slane %v1481, 1
      %v1757 = vsel %vm1286, %v1755, %v1756
      %v1758 = vrot.slane %v1482, 1
      %v1759 = vsel %vm1286, %v1756, %v1758
      %v1760 = vrot.slane %v1484, 1
      %v1761 = vrot.slane %v1485, 1
      %v1762 = vsel %vm1286, %v1760, %v1761
      %v1763 = vrot.slane %v1486, 1
      %v1764 = vsel %vm1286, %v1761, %v1763
      %v1765 = vrot.slane %v1488, 1
      %v1766 = vrot.slane %v1489, 1
      %v1767 = vsel %vm1286, %v1765, %v1766
      %v1768 = vrot.slane %v1490, 1
      %v1769 = vsel %vm1286, %v1766, %v1768
      %v1770 = vrot.slane %v1492, 1
      %v1771 = vrot.slane %v1493, 1
      %v1772 = vsel %vm1286, %v1770, %v1771
      %v1773 = vrot.slane %v1494, 1
      %v1774 = vsel %vm1286, %v1771, %v1773
      %v1775 = vrot.slane %v1496, 1
      %v1776 = vrot.slane %v1497, 1
      %v1777 = vsel %vm1286, %v1775, %v1776
      %v1778 = vrot.slane %v1498, 1
      %v1779 = vsel %vm1286, %v1776, %v1778
      %v1780 = vrot.slane %v1500, 1
      %v1781 = vrot.slane %v1501, 1
      %v1782 = vsel %vm1286, %v1780, %v1781
      %v1783 = vrot.slane %v1502, 1
      %v1784 = vsel %vm1286, %v1781, %v1783
      %v1785 = vrot.slane %v1504, 1
      %v1786 = vrot.slane %v1505, 1
      %v1787 = vsel %vm1286, %v1785, %v1786
      %v1788 = vrot.slane %v1506, 1
      %v1789 = vsel %vm1286, %v1786, %v1788
      %v1790 = vrot.slane %v1508, 1
      %v1791 = vrot.slane %v1509, 1
      %v1792 = vsel %vm1286, %v1790, %v1791
      %v1793 = vrot.slane %v1510, 1
      %v1794 = vsel %vm1286, %v1791, %v1793
      %v1795 = vrot.slane %v1512, 1
      %v1796 = vrot.slane %v1513, 1
      %v1797 = vsel %vm1286, %v1795, %v1796
      %v1798 = vrot.slane %v1514, 1
      %v1799 = vsel %vm1286, %v1796, %v1798
      %v1800 = vrot.slane %v1516, 1
      %v1801 = vrot.slane %v1517, 1
      %v1802 = vsel %vm1286, %v1800, %v1801
      %v1803 = vrot.slane %v1518, 1
      %v1804 = vsel %vm1286, %v1801, %v1803
      %v1805 = vrot.slane %v1520, 1
      %v1806 = vrot.slane %v1521, 1
      %v1807 = vsel %vm1286, %v1805, %v1806
      %v1808 = vrot.slane %v1522, 1
      %v1809 = vsel %vm1286, %v1806, %v1808
      %v1810 = vrot.slane %v1524, 1
      %v1811 = vrot.slane %v1525, 1
      %v1812 = vsel %vm1286, %v1810, %v1811
      %v1813 = vrot.slane %v1526, 1
      %v1814 = vsel %vm1286, %v1811, %v1813
      %v1847 = vpack.c.bf16 %v1739, %v1737
      %v1848 = vpack.c.bf16 %v1744, %v1742
      %v1849 = vpack.c.bf16 %v1749, %v1747
      %v1850 = vpack.c.bf16 %v1754, %v1752
      %v1851 = vpack.c.bf16 %v1759, %v1757
      %v1852 = vpack.c.bf16 %v1764, %v1762
      %v1853 = vpack.c.bf16 %v1769, %v1767
      %v1854 = vpack.c.bf16 %v1774, %v1772
      %v1855 = vpack.c.bf16 %v1779, %v1777
      %v1856 = vpack.c.bf16 %v1784, %v1782
      %v1857 = vpack.c.bf16 %v1789, %v1787
      %v1858 = vpack.c.bf16 %v1794, %v1792
      %v1859 = vpack.c.bf16 %v1799, %v1797
      %v1860 = vpack.c.bf16 %v1804, %v1802
      %v1861 = vpack.c.bf16 %v1809, %v1807
      %v1862 = vpack.c.bf16 %v1814, %v1812
      %v1863 = vld [vmem:[%s6 + $0xc0] sm:$0xf]
      %v1864 = vld [vmem:[%s6 + $0xc4] sm:$0xf]
      %v1865 = vld [vmem:[%s6 + $0xc8] sm:$0xf]
      %v1866 = vld [vmem:[%s6 + $0xcc] sm:$0xf]
      %v1867 = vld [vmem:[%s6 + $0xd0] sm:$0xf]
      %v1868 = vld [vmem:[%s6 + $0xd4] sm:$0xf]
      %v1869 = vld [vmem:[%s6 + $0xd8] sm:$0xf]
      %v1870 = vld [vmem:[%s6 + $0xdc] sm:$0xf]
      %v1871 = vld [vmem:[%s6 + $0xe0] sm:$0xf]
      %v1872 = vld [vmem:[%s6 + $0xe4] sm:$0xf]
      %v1873 = vld [vmem:[%s6 + $0xe8] sm:$0xf]
      %v1874 = vld [vmem:[%s6 + $0xec] sm:$0xf]
      %v1875 = vld [vmem:[%s6 + $0xf0] sm:$0xf]
      %v1876 = vld [vmem:[%s6 + $0xf4] sm:$0xf]
      %v1877 = vld [vmem:[%s6 + $0xf8] sm:$0xf]
      %v1878 = vld [vmem:[%s6 + $0xfc] sm:$0xf]
      %v1879 = vld [vmem:[%s6 + $0x100] sm:$0xf]
      %v1880 = vld [vmem:[%s6 + $0x104] sm:$0xf]
      %v1881 = vld [vmem:[%s6 + $0x108] sm:$0xf]
      %v1882 = vld [vmem:[%s6 + $0x10c] sm:$0xf]
      %v1883 = vld [vmem:[%s6 + $0x110] sm:$0xf]
      %v1884 = vld [vmem:[%s6 + $0x114] sm:$0xf]
      %v1885 = vld [vmem:[%s6 + $0x118] sm:$0xf]
      %v1886 = vld [vmem:[%s6 + $0x11c] sm:$0xf]
      %v1887 = vld [vmem:[%s6 + $0x120] sm:$0xf]
      %v1888 = vld [vmem:[%s6 + $0x124] sm:$0xf]
      %v1889 = vld [vmem:[%s6 + $0x128] sm:$0xf]
      %v1890 = vld [vmem:[%s6 + $0x12c] sm:$0xf]
      %v1891 = vld [vmem:[%s6 + $0x130] sm:$0xf]
      %v1892 = vld [vmem:[%s6 + $0x134] sm:$0xf]
      %v1893 = vld [vmem:[%s6 + $0x138] sm:$0xf]
      %v1894 = vld [vmem:[%s6 + $0x13c] sm:$0xf]
      %v1895 = vld [vmem:[%s6 + $0x140] sm:$0xf]
      %v1896 = vld [vmem:[%s6 + $0x144] sm:$0xf]
      %v1897 = vld [vmem:[%s6 + $0x148] sm:$0xf]
      %v1898 = vld [vmem:[%s6 + $0x14c] sm:$0xf]
      %v1899 = vld [vmem:[%s6 + $0x150] sm:$0xf]
      %v1900 = vld [vmem:[%s6 + $0x154] sm:$0xf]
      %v1901 = vld [vmem:[%s6 + $0x158] sm:$0xf]
      %v1902 = vld [vmem:[%s6 + $0x15c] sm:$0xf]
      %v1903 = vld [vmem:[%s6 + $0x160] sm:$0xf]
      %v1904 = vld [vmem:[%s6 + $0x164] sm:$0xf]
      %v1905 = vld [vmem:[%s6 + $0x168] sm:$0xf]
      %v1906 = vld [vmem:[%s6 + $0x16c] sm:$0xf]
      %v1907 = vld [vmem:[%s6 + $0x170] sm:$0xf]
      %v1908 = vld [vmem:[%s6 + $0x174] sm:$0xf]
      %v1909 = vld [vmem:[%s6 + $0x178] sm:$0xf]
      %v1910 = vld [vmem:[%s6 + $0x17c] sm:$0xf]
      %v1959 = vunpack.c.l.b16 %v1863
      %v1960 = vunpack.c.l.b16 %v1864
      %v1961 = vunpack.c.l.b16 %v1865
      %v1962 = vunpack.c.l.b16 %v1866
      %v1963 = vunpack.c.l.b16 %v1867
      %v1964 = vunpack.c.l.b16 %v1868
      %v1965 = vunpack.c.l.b16 %v1869
      %v1966 = vunpack.c.l.b16 %v1870
      %v1967 = vunpack.c.l.b16 %v1871
      %v1968 = vunpack.c.l.b16 %v1872
      %v1969 = vunpack.c.l.b16 %v1873
      %v1970 = vunpack.c.l.b16 %v1874
      %v1971 = vunpack.c.l.b16 %v1875
      %v1972 = vunpack.c.l.b16 %v1876
      %v1973 = vunpack.c.l.b16 %v1877
      %v1974 = vunpack.c.l.b16 %v1878
      %v1975 = vunpack.c.l.b16 %v1879
      %v1976 = vunpack.c.l.b16 %v1880
      %v1977 = vunpack.c.l.b16 %v1881
      %v1978 = vunpack.c.l.b16 %v1882
      %v1979 = vunpack.c.l.b16 %v1883
      %v1980 = vunpack.c.l.b16 %v1884
      %v1981 = vunpack.c.l.b16 %v1885
      %v1982 = vunpack.c.l.b16 %v1886
      %v1983 = vunpack.c.l.b16 %v1887
      %v1984 = vunpack.c.l.b16 %v1888
      %v1985 = vunpack.c.l.b16 %v1889
      %v1986 = vunpack.c.l.b16 %v1890
      %v1987 = vunpack.c.l.b16 %v1891
      %v1988 = vunpack.c.l.b16 %v1892
      %v1989 = vunpack.c.l.b16 %v1893
      %v1990 = vunpack.c.l.b16 %v1894
      %v1991 = vunpack.c.l.b16 %v1895
      %v1992 = vunpack.c.l.b16 %v1896
      %v1993 = vunpack.c.l.b16 %v1897
      %v1994 = vunpack.c.l.b16 %v1898
      %v1995 = vunpack.c.l.b16 %v1899
      %v1996 = vunpack.c.l.b16 %v1900
      %v1997 = vunpack.c.l.b16 %v1901
      %v1998 = vunpack.c.l.b16 %v1902
      %v1999 = vunpack.c.l.b16 %v1903
      %v2000 = vunpack.c.l.b16 %v1904
      %v2001 = vunpack.c.l.b16 %v1905
      %v2002 = vunpack.c.l.b16 %v1906
      %v2003 = vunpack.c.l.b16 %v1907
      %v2004 = vunpack.c.l.b16 %v1908
      %v2005 = vunpack.c.l.b16 %v1909
      %v2006 = vunpack.c.l.b16 %v1910
      %v2007 = vpack.c.b16 %v1960, %v1959
      %v2008 = vpack.c.b16 %v1962, %v1961
      %v2009 = vpack.c.b16 %v1964, %v1963
      %v2010 = vpack.c.b16 %v1966, %v1965
      %v2011 = vpack.c.b16 %v1968, %v1967
      %v2012 = vpack.c.b16 %v1970, %v1969
      %v2013 = vpack.c.b16 %v1972, %v1971
      %v2014 = vpack.c.b16 %v1974, %v1973
      %v2015 = vpack.c.b16 %v1976, %v1975
      %v2016 = vpack.c.b16 %v1978, %v1977
      %v2017 = vpack.c.b16 %v1980, %v1979
      %v2018 = vpack.c.b16 %v1982, %v1981
      %v2019 = vpack.c.b16 %v1984, %v1983
      %v2020 = vpack.c.b16 %v1986, %v1985
      %v2021 = vpack.c.b16 %v1988, %v1987
      %v2022 = vpack.c.b16 %v1990, %v1989
      %v2023 = vpack.c.b16 %v1992, %v1991
      %v2024 = vpack.c.b16 %v1994, %v1993
      %v2025 = vpack.c.b16 %v1996, %v1995
      %v2026 = vpack.c.b16 %v1998, %v1997
      %v2027 = vpack.c.b16 %v2000, %v1999
      %v2028 = vpack.c.b16 %v2002, %v2001
      %v2029 = vpack.c.b16 %v2004, %v2003
      %v2030 = vpack.c.b16 %v2006, %v2005
      %2055 = vmatprep.subr.bf16.mxu0 0
      %2056 = vmatpush1.bf16.msra.mxu0 %v2007
      %2057 = vmatprep.subr.bf16.mxu0 0
      %2058 = vmatpush1.bf16.msra.mxu0 %v2008
      %2059 = vmatprep.subr.bf16.mxu0 0
      %2060 = vmatpush1.bf16.msra.mxu0 %v2009
      %2061 = vmatprep.subr.bf16.mxu0 0
      %2062 = vmatpush1.bf16.msra.mxu0 %v2010
      %2063 = vmatprep.subr.bf16.mxu0 0
      %2064 = vmatpush1.bf16.msra.mxu0 %v2011
      %2065 = vmatprep.subr.bf16.mxu0 0
      %2066 = vmatpush1.bf16.msra.mxu0 %v2012
      %2067 = vmatprep.subr.bf16.mxu0 0
      %2068 = vmatpush1.bf16.msra.mxu0 %v2013
      %2069 = vmatprep.subr.bf16.mxu0 0
      %2070 = vmatpush1.bf16.msra.mxu0 %v2014
      %2071 = vmatprep.subr.bf16.mxu0 0
      %2072 = vmatpush1.bf16.msra.mxu0 %v2015
      %2073 = vmatprep.subr.bf16.mxu0 0
      %2074 = vmatpush1.bf16.msra.mxu0 %v2016
      %2075 = vmatprep.subr.bf16.mxu0 0
      %2076 = vmatpush1.bf16.msra.mxu0 %v2017
      %2077 = vmatprep.subr.bf16.mxu0 0
      %2078 = vmatpush1.bf16.msra.mxu0 %v2018
      %2079 = vmatprep.subr.bf16.mxu0 0
      %2080 = vmatpush1.bf16.msra.mxu0 %v2019
      %2081 = vmatprep.subr.bf16.mxu0 0
      %2082 = vmatpush1.bf16.msra.mxu0 %v2020
      %2083 = vmatprep.subr.bf16.mxu0 0
      %2084 = vmatpush1.bf16.msra.mxu0 %v2021
      %2085 = vmatprep.subr.bf16.mxu0 0
      %2086 = vmatpush1.bf16.msra.mxu0 %v2022
      %2087 = vmatprep.mubr.bf16.mxu0 %v1703
      %2088 = vmatmul.mubr.bf16.gmra.mrb[0].mxu0 %v1687
      %v2089 = vpop.f32.mrb[0].mxu0
      %v2090 = vadd.f32 0.0, %v2089
      %v2091 = vpop.f32.mrb[0].mxu0
      %v2092 = vpop.f32.mrb[0].mxu0
      %v2093 = vadd.f32 0.0, %v2092
      %v2094 = vpop.f32.mrb[0].mxu0
      %2095 = vmatprep.mubr.bf16.mxu0 %v1704
      %2096 = vmatmul.mubr.bf16.gmra.mrb[0].mxu0 %v1688
      %v2097 = vpop.f32.mrb[0].mxu0
      %v2098 = vadd.f32 0.0, %v2097
      %v2099 = vpop.f32.mrb[0].mxu0
      %v2100 = vpop.f32.mrb[0].mxu0
      %v2101 = vadd.f32 0.0, %v2100
      %v2102 = vpop.f32.mrb[0].mxu0
      %2103 = vmatprep.mubr.bf16.mxu0 %v1705
      %2104 = vmatmul.mubr.bf16.gmra.mrb[0].mxu0 %v1689
      %v2105 = vpop.f32.mrb[0].mxu0
      %v2106 = vadd.f32 0.0, %v2105
      %v2107 = vpop.f32.mrb[0].mxu0
      %v2108 = vpop.f32.mrb[0].mxu0
      %v2109 = vadd.f32 0.0, %v2108
      %v2110 = vpop.f32.mrb[0].mxu0
      %2111 = vmatprep.mubr.bf16.mxu0 %v1706
      %2112 = vmatmul.mubr.bf16.gmra.mrb[0].mxu0 %v1690
      %v2113 = vpop.f32.mrb[0].mxu0
      %v2114 = vadd.f32 0.0, %v2113
      %v2115 = vpop.f32.mrb[0].mxu0
      %v2116 = vpop.f32.mrb[0].mxu0
      %v2117 = vadd.f32 0.0, %v2116
      %v2118 = vpop.f32.mrb[0].mxu0
      %2119 = vmatprep.mubr.bf16.mxu0 %v1707
      %2120 = vmatmul.mubr.bf16.gmra.mrb[0].mxu0 %v1691
      %v2121 = vpop.f32.mrb[0].mxu0
      %v2122 = vadd.f32 0.0, %v2121
      %v2123 = vpop.f32.mrb[0].mxu0
      %v2124 = vpop.f32.mrb[0].mxu0
      %v2125 = vadd.f32 0.0, %v2124
      %v2126 = vpop.f32.mrb[0].mxu0
      %2127 = vmatprep.mubr.bf16.mxu0 %v1708
      %2128 = vmatmul.mubr.bf16.gmra.mrb[0].mxu0 %v1692
      %v2129 = vpop.f32.mrb[0].mxu0
      %v2130 = vadd.f32 0.0, %v2129
      %v2131 = vpop.f32.mrb[0].mxu0
      %v2132 = vpop.f32.mrb[0].mxu0
      %v2133 = vadd.f32 0.0, %v2132
      %v2134 = vpop.f32.mrb[0].mxu0
      %2135 = vmatprep.mubr.bf16.mxu0 %v1709
      %2136 = vmatmul.mubr.bf16.gmra.mrb[0].mxu0 %v1693
      %v2137 = vpop.f32.mrb[0].mxu0
      %v2138 = vadd.f32 0.0, %v2137
      %v2139 = vpop.f32.mrb[0].mxu0
      %v2140 = vpop.f32.mrb[0].mxu0
      %v2141 = vadd.f32 0.0, %v2140
      %v2142 = vpop.f32.mrb[0].mxu0
      %2143 = vmatprep.mubr.bf16.mxu0 %v1710
      %2144 = vmatmul.mubr.bf16.gmra.mrb[0].mxu0 %v1694
      %v2145 = vpop.f32.mrb[0].mxu0
      %v2146 = vadd.f32 0.0, %v2145
      %v2147 = vpop.f32.mrb[0].mxu0
      %v2148 = vpop.f32.mrb[0].mxu0
      %v2149 = vadd.f32 0.0, %v2148
      %v2150 = vpop.f32.mrb[0].mxu0
      %2151 = vmatprep.mubr.bf16.mxu0 %v1711
      %2152 = vmatmul.mubr.bf16.gmra.mrb[0].mxu0 %v1695
      %v2153 = vpop.f32.mrb[0].mxu0
      %v2154 = vadd.f32 0.0, %v2153
      %v2155 = vpop.f32.mrb[0].mxu0
      %v2156 = vpop.f32.mrb[0].mxu0
      %v2157 = vadd.f32 0.0, %v2156
      %v2158 = vpop.f32.mrb[0].mxu0
      %2159 = vmatprep.mubr.bf16.mxu0 %v1712
      %2160 = vmatmul.mubr.bf16.gmra.mrb[0].mxu0 %v1696
      %v2161 = vpop.f32.mrb[0].mxu0
      %v2162 = vadd.f32 0.0, %v2161
      %v2163 = vpop.f32.mrb[0].mxu0
      %v2164 = vpop.f32.mrb[0].mxu0
      %v2165 = vadd.f32 0.0, %v2164
      %v2166 = vpop.f32.mrb[0].mxu0
      %2167 = vmatprep.mubr.bf16.mxu0 %v1713
      %2168 = vmatmul.mubr.bf16.gmra.mrb[0].mxu0 %v1697
      %v2169 = vpop.f32.mrb[0].mxu0
      %v2170 = vadd.f32 0.0, %v2169
      %v2171 = vpop.f32.mrb[0].mxu0
      %v2172 = vpop.f32.mrb[0].mxu0
      %v2173 = vadd.f32 0.0, %v2172
      %v2174 = vpop.f32.mrb[0].mxu0
      %2175 = vmatprep.mubr.bf16.mxu0 %v1714
      %2176 = vmatmul.mubr.bf16.gmra.mrb[0].mxu0 %v1698
      %v2177 = vpop.f32.mrb[0].mxu0
      %v2178 = vadd.f32 0.0, %v2177
      %v2179 = vpop.f32.mrb[0].mxu0
      %v2180 = vpop.f32.mrb[0].mxu0
      %v2181 = vadd.f32 0.0, %v2180
      %v2182 = vpop.f32.mrb[0].mxu0
      %2183 = vmatprep.mubr.bf16.mxu0 %v1715
      %2184 = vmatmul.mubr.bf16.gmra.mrb[0].mxu0 %v1699
      %v2185 = vpop.f32.mrb[0].mxu0
      %v2186 = vadd.f32 0.0, %v2185
      %v2187 = vpop.f32.mrb[0].mxu0
      %v2188 = vpop.f32.mrb[0].mxu0
      %v2189 = vadd.f32 0.0, %v2188
      %v2190 = vpop.f32.mrb[0].mxu0
      %2191 = vmatprep.mubr.bf16.mxu0 %v1716
      %2192 = vmatmul.mubr.bf16.gmra.mrb[0].mxu0 %v1700
      %v2193 = vpop.f32.mrb[0].mxu0
      %v2194 = vadd.f32 0.0, %v2193
      %v2195 = vpop.f32.mrb[0].mxu0
      %v2196 = vpop.f32.mrb[0].mxu0
      %v2197 = vadd.f32 0.0, %v2196
      %v2198 = vpop.f32.mrb[0].mxu0
      %2199 = vmatprep.mubr.bf16.mxu0 %v1717
      %2200 = vmatmul.mubr.bf16.gmra.mrb[0].mxu0 %v1701
      %v2201 = vpop.f32.mrb[0].mxu0
      %v2202 = vadd.f32 0.0, %v2201
      %v2203 = vpop.f32.mrb[0].mxu0
      %v2204 = vpop.f32.mrb[0].mxu0
      %v2205 = vadd.f32 0.0, %v2204
      %v2206 = vpop.f32.mrb[0].mxu0
      %2207 = vmatprep.mubr.bf16.mxu0 %v1718
      %2208 = vmatmul.mubr.bf16.gmra.mrb[0].mxu0 %v1702
      %v2209 = vpop.f32.mrb[0].mxu0
      %v2210 = vadd.f32 0.0, %v2209
      %v2211 = vpop.f32.mrb[0].mxu0
      %v2212 = vpop.f32.mrb[0].mxu0
      %v2213 = vadd.f32 0.0, %v2212
      %v2214 = vpop.f32.mrb[0].mxu0
      %2215 = vdwg.mxu0
      %2216 = vmatprep.subr.bf16.mxu0 0
      %2217 = vmatpush1.bf16.msra.mxu0 %v2023
      %2218 = vmatprep.subr.bf16.mxu0 0
      %2219 = vmatpush1.bf16.msra.mxu0 %v2024
      %2220 = vmatprep.subr.bf16.mxu0 0
      %2221 = vmatpush1.bf16.msra.mxu0 %v2025
      %2222 = vmatprep.subr.bf16.mxu0 0
      %2223 = vmatpush1.bf16.msra.mxu0 %v2026
      %2224 = vmatprep.subr.bf16.mxu0 0
      %2225 = vmatpush1.bf16.msra.mxu0 %v2027
      %2226 = vmatprep.subr.bf16.mxu0 0
      %2227 = vmatpush1.bf16.msra.mxu0 %v2028
      %2228 = vmatprep.subr.bf16.mxu0 0
      %2229 = vmatpush1.bf16.msra.mxu0 %v2029
      %2230 = vmatprep.subr.bf16.mxu0 0
      %2231 = vmatpush1.bf16.msra.mxu0 %v2030
      %2232 = vmatprep.subr.bf16.mxu0 0
      %2233 = vmatpush1.bf16.msra.mxu0 0
      %2234 = vmatprep.subr.bf16.mxu0 0
      %2235 = vmatpush1.bf16.msra.mxu0 0
      %2236 = vmatprep.subr.bf16.mxu0 0
      %2237 = vmatpush1.bf16.msra.mxu0 0
      %2238 = vmatprep.subr.bf16.mxu0 0
      %2239 = vmatpush1.bf16.msra.mxu0 0
      %2240 = vmatprep.subr.bf16.mxu0 0
      %2241 = vmatpush1.bf16.msra.mxu0 0
      %2242 = vmatprep.subr.bf16.mxu0 0
      %2243 = vmatpush1.bf16.msra.mxu0 0
      %2244 = vmatprep.subr.bf16.mxu0 0
      %2245 = vmatpush1.bf16.msra.mxu0 0
      %2246 = vmatprep.subr.bf16.mxu0 0
      %2247 = vmatpush1.bf16.msra.mxu0 0
      %2248 = vmatprep.mubr.bf16.mxu0 0
      %2249 = vmatmul.mubr.bf16.gmra.mrb[0].mxu0 %v1847
      %v2250 = vpop.f32.mrb[0].mxu0
      %v2251 = vadd.f32 %v2090, %v2250
      %v2252 = vpop.f32.mrb[0].mxu0
      %v2253 = vpop.f32.mrb[0].mxu0
      %v2254 = vadd.f32 %v2093, %v2253
      %v2255 = vpop.f32.mrb[0].mxu0
      %2256 = vmatprep.mubr.bf16.mxu0 0
      %2257 = vmatmul.mubr.bf16.gmra.mrb[0].mxu0 %v1848
      %v2258 = vpop.f32.mrb[0].mxu0
      %v2259 = vadd.f32 %v2098, %v2258
      %v2260 = vpop.f32.mrb[0].mxu0
      %v2261 = vpop.f32.mrb[0].mxu0
      %v2262 = vadd.f32 %v2101, %v2261
      %v2263 = vpop.f32.mrb[0].mxu0
      %2264 = vmatprep.mubr.bf16.mxu0 0
      %2265 = vmatmul.mubr.bf16.gmra.mrb[0].mxu0 %v1849
      %v2266 = vpop.f32.mrb[0].mxu0
      %v2267 = vadd.f32 %v2106, %v2266
      %v2268 = vpop.f32.mrb[0].mxu0
      %v2269 = vpop.f32.mrb[0].mxu0
      %v2270 = vadd.f32 %v2109, %v2269
      %v2271 = vpop.f32.mrb[0].mxu0
      %2272 = vmatprep.mubr.bf16.mxu0 0
      %2273 = vmatmul.mubr.bf16.gmra.mrb[0].mxu0 %v1850
      %v2274 = vpop.f32.mrb[0].mxu0
      %v2275 = vadd.f32 %v2114, %v2274
      %v2276 = vpop.f32.mrb[0].mxu0
      %v2277 = vpop.f32.mrb[0].mxu0
      %v2278 = vadd.f32 %v2117, %v2277
      %v2279 = vpop.f32.mrb[0].mxu0
      %2280 = vmatprep.mubr.bf16.mxu0 0
      %2281 = vmatmul.mubr.bf16.gmra.mrb[0].mxu0 %v1851
      %v2282 = vpop.f32.mrb[0].mxu0
      %v2283 = vadd.f32 %v2122, %v2282
      %v2284 = vpop.f32.mrb[0].mxu0
      %v2285 = vpop.f32.mrb[0].mxu0
      %v2286 = vadd.f32 %v2125, %v2285
      %v2287 = vpop.f32.mrb[0].mxu0
      %2288 = vmatprep.mubr.bf16.mxu0 0
      %2289 = vmatmul.mubr.bf16.gmra.mrb[0].mxu0 %v1852
      %v2290 = vpop.f32.mrb[0].mxu0
      %v2291 = vadd.f32 %v2130, %v2290
      %v2292 = vpop.f32.mrb[0].mxu0
      %v2293 = vpop.f32.mrb[0].mxu0
      %v2294 = vadd.f32 %v2133, %v2293
      %v2295 = vpop.f32.mrb[0].mxu0
      %2296 = vmatprep.mubr.bf16.mxu0 0
      %2297 = vmatmul.mubr.bf16.gmra.mrb[0].mxu0 %v1853
      %v2298 = vpop.f32.mrb[0].mxu0
      %v2299 = vadd.f32 %v2138, %v2298
      %v2300 = vpop.f32.mrb[0].mxu0
      %v2301 = vpop.f32.mrb[0].mxu0
      %v2302 = vadd.f32 %v2141, %v2301
      %v2303 = vpop.f32.mrb[0].mxu0
      %2304 = vmatprep.mubr.bf16.mxu0 0
      %2305 = vmatmul.mubr.bf16.gmra.mrb[0].mxu0 %v1854
      %v2306 = vpop.f32.mrb[0].mxu0
      %v2307 = vadd.f32 %v2146, %v2306
      %v2308 = vpop.f32.mrb[0].mxu0
      %v2309 = vpop.f32.mrb[0].mxu0
      %v2310 = vadd.f32 %v2149, %v2309
      %v2311 = vpop.f32.mrb[0].mxu0
      %2312 = vmatprep.mubr.bf16.mxu0 0
      %2313 = vmatmul.mubr.bf16.gmra.mrb[0].mxu0 %v1855
      %v2314 = vpop.f32.mrb[0].mxu0
      %v2315 = vadd.f32 %v2154, %v2314
      %v2316 = vpop.f32.mrb[0].mxu0
      %v2317 = vpop.f32.mrb[0].mxu0
      %v2318 = vadd.f32 %v2157, %v2317
      %v2319 = vpop.f32.mrb[0].mxu0
      %2320 = vmatprep.mubr.bf16.mxu0 0
      %2321 = vmatmul.mubr.bf16.gmra.mrb[0].mxu0 %v1856
      %v2322 = vpop.f32.mrb[0].mxu0
      %v2323 = vadd.f32 %v2162, %v2322
      %v2324 = vpop.f32.mrb[0].mxu0
      %v2325 = vpop.f32.mrb[0].mxu0
      %v2326 = vadd.f32 %v2165, %v2325
      %v2327 = vpop.f32.mrb[0].mxu0
      %2328 = vmatprep.mubr.bf16.mxu0 0
      %2329 = vmatmul.mubr.bf16.gmra.mrb[0].mxu0 %v1857
      %v2330 = vpop.f32.mrb[0].mxu0
      %v2331 = vadd.f32 %v2170, %v2330
      %v2332 = vpop.f32.mrb[0].mxu0
      %v2333 = vpop.f32.mrb[0].mxu0
      %v2334 = vadd.f32 %v2173, %v2333
      %v2335 = vpop.f32.mrb[0].mxu0
      %2336 = vmatprep.mubr.bf16.mxu0 0
      %2337 = vmatmul.mubr.bf16.gmra.mrb[0].mxu0 %v1858
      %v2338 = vpop.f32.mrb[0].mxu0
      %v2339 = vadd.f32 %v2178, %v2338
      %v2340 = vpop.f32.mrb[0].mxu0
      %v2341 = vpop.f32.mrb[0].mxu0
      %v2342 = vadd.f32 %v2181, %v2341
      %v2343 = vpop.f32.mrb[0].mxu0
      %2344 = vmatprep.mubr.bf16.mxu0 0
      %2345 = vmatmul.mubr.bf16.gmra.mrb[0].mxu0 %v1859
      %v2346 = vpop.f32.mrb[0].mxu0
      %v2347 = vadd.f32 %v2186, %v2346
      %v2348 = vpop.f32.mrb[0].mxu0
      %v2349 = vpop.f32.mrb[0].mxu0
      %v2350 = vadd.f32 %v2189, %v2349
      %v2351 = vpop.f32.mrb[0].mxu0
      %2352 = vmatprep.mubr.bf16.mxu0 0
      %2353 = vmatmul.mubr.bf16.gmra.mrb[0].mxu0 %v1860
      %v2354 = vpop.f32.mrb[0].mxu0
      %v2355 = vadd.f32 %v2194, %v2354
      %v2356 = vpop.f32.mrb[0].mxu0
      %v2357 = vpop.f32.mrb[0].mxu0
      %v2358 = vadd.f32 %v2197, %v2357
      %v2359 = vpop.f32.mrb[0].mxu0
      %2360 = vmatprep.mubr.bf16.mxu0 0
      %2361 = vmatmul.mubr.bf16.gmra.mrb[0].mxu0 %v1861
      %v2362 = vpop.f32.mrb[0].mxu0
      %v2363 = vadd.f32 %v2202, %v2362
      %v2364 = vpop.f32.mrb[0].mxu0
      %v2365 = vpop.f32.mrb[0].mxu0
      %v2366 = vadd.f32 %v2205, %v2365
      %v2367 = vpop.f32.mrb[0].mxu0
      %2368 = vmatprep.mubr.bf16.mxu0 0
      %2369 = vmatmul.mubr.bf16.gmra.mrb[0].mxu0 %v1862
      %v2370 = vpop.f32.mrb[0].mxu0
      %v2371 = vadd.f32 %v2210, %v2370
      %v2372 = vpop.f32.mrb[0].mxu0
      %v2373 = vpop.f32.mrb[0].mxu0
      %v2374 = vadd.f32 %v2213, %v2373
      %v2375 = vpop.f32.mrb[0].mxu0
      %2376 = vdwg.mxu0
      %v2425 = vunpack.c.l.b16 %v1415
      %v2426 = vunpack.c.l.b16 %v1416
      %v2427 = vunpack.c.l.b16 %v1417
      %v2428 = vunpack.c.l.b16 %v1418
      %v2429 = vunpack.c.l.b16 %v1419
      %v2430 = vunpack.c.l.b16 %v1420
      %v2431 = vunpack.c.l.b16 %v1421
      %v2432 = vunpack.c.l.b16 %v1422
      %v2433 = vunpack.c.l.b16 %v1423
      %v2434 = vunpack.c.l.b16 %v1424
      %v2435 = vunpack.c.l.b16 %v1425
      %v2436 = vunpack.c.l.b16 %v1426
      %v2437 = vunpack.c.l.b16 %v1427
      %v2438 = vunpack.c.l.b16 %v1428
      %v2439 = vunpack.c.l.b16 %v1429
      %v2440 = vunpack.c.l.b16 %v1430
      %v2441 = vunpack.c.l.b16 %v1431
      %v2442 = vunpack.c.l.b16 %v1432
      %v2443 = vunpack.c.l.b16 %v1433
      %v2444 = vunpack.c.l.b16 %v1434
      %v2445 = vunpack.c.l.b16 %v1435
      %v2446 = vunpack.c.l.b16 %v1436
      %v2447 = vunpack.c.l.b16 %v1437
      %v2448 = vunpack.c.l.b16 %v1438
      %v2449 = vunpack.c.l.b16 %v1439
      %v2450 = vunpack.c.l.b16 %v1440
      %v2451 = vunpack.c.l.b16 %v1441
      %v2452 = vunpack.c.l.b16 %v1442
      %v2453 = vunpack.c.l.b16 %v1443
      %v2454 = vunpack.c.l.b16 %v1444
      %v2455 = vunpack.c.l.b16 %v1445
      %v2456 = vunpack.c.l.b16 %v1446
      %v2457 = vunpack.c.l.b16 %v1447
      %v2458 = vunpack.c.l.b16 %v1448
      %v2459 = vunpack.c.l.b16 %v1449
      %v2460 = vunpack.c.l.b16 %v1450
      %v2461 = vunpack.c.l.b16 %v1451
      %v2462 = vunpack.c.l.b16 %v1452
      %v2463 = vunpack.c.l.b16 %v1453
      %v2464 = vunpack.c.l.b16 %v1454
      %v2465 = vunpack.c.l.b16 %v1455
      %v2466 = vunpack.c.l.b16 %v1456
      %v2467 = vunpack.c.l.b16 %v1457
      %v2468 = vunpack.c.l.b16 %v1458
      %v2469 = vunpack.c.l.b16 %v1459
      %v2470 = vunpack.c.l.b16 %v1460
      %v2471 = vunpack.c.l.b16 %v1461
      %v2472 = vunpack.c.l.b16 %v1462
      %v2473 = vpack.c.b16 %v2426, %v2425
      %v2474 = vpack.c.b16 %v2428, %v2427
      %v2475 = vpack.c.b16 %v2430, %v2429
      %v2476 = vpack.c.b16 %v2432, %v2431
      %v2477 = vpack.c.b16 %v2434, %v2433
      %v2478 = vpack.c.b16 %v2436, %v2435
      %v2479 = vpack.c.b16 %v2438, %v2437
      %v2480 = vpack.c.b16 %v2440, %v2439
      %v2481 = vpack.c.b16 %v2442, %v2441
      %v2482 = vpack.c.b16 %v2444, %v2443
      %v2483 = vpack.c.b16 %v2446, %v2445
      %v2484 = vpack.c.b16 %v2448, %v2447
      %v2485 = vpack.c.b16 %v2450, %v2449
      %v2486 = vpack.c.b16 %v2452, %v2451
      %v2487 = vpack.c.b16 %v2454, %v2453
      %v2488 = vpack.c.b16 %v2456, %v2455
      %v2489 = vpack.c.b16 %v2458, %v2457
      %v2490 = vpack.c.b16 %v2460, %v2459
      %v2491 = vpack.c.b16 %v2462, %v2461
      %v2492 = vpack.c.b16 %v2464, %v2463
      %v2493 = vpack.c.b16 %v2466, %v2465
      %v2494 = vpack.c.b16 %v2468, %v2467
      %v2495 = vpack.c.b16 %v2470, %v2469
      %v2496 = vpack.c.b16 %v2472, %v2471
      %2521 = vmatprep.subr.bf16.mxu0 0
      %2522 = vmatpush1.bf16.msra.mxu0 %v2473
      %2523 = vmatprep.subr.bf16.mxu0 0
      %2524 = vmatpush1.bf16.msra.mxu0 %v2474
      %2525 = vmatprep.subr.bf16.mxu0 0
      %2526 = vmatpush1.bf16.msra.mxu0 %v2475
      %2527 = vmatprep.subr.bf16.mxu0 0
      %2528 = vmatpush1.bf16.msra.mxu0 %v2476
      %2529 = vmatprep.subr.bf16.mxu0 0
      %2530 = vmatpush1.bf16.msra.mxu0 %v2477
      %2531 = vmatprep.subr.bf16.mxu0 0
      %2532 = vmatpush1.bf16.msra.mxu0 %v2478
      %2533 = vmatprep.subr.bf16.mxu0 0
      %2534 = vmatpush1.bf16.msra.mxu0 %v2479
      %2535 = vmatprep.subr.bf16.mxu0 0
      %2536 = vmatpush1.bf16.msra.mxu0 %v2480
      %2537 = vmatprep.subr.bf16.mxu0 0
      %2538 = vmatpush1.bf16.msra.mxu0 %v2481
      %2539 = vmatprep.subr.bf16.mxu0 0
      %2540 = vmatpush1.bf16.msra.mxu0 %v2482
      %2541 = vmatprep.subr.bf16.mxu0 0
      %2542 = vmatpush1.bf16.msra.mxu0 %v2483
      %2543 = vmatprep.subr.bf16.mxu0 0
      %2544 = vmatpush1.bf16.msra.mxu0 %v2484
      %2545 = vmatprep.subr.bf16.mxu0 0
      %2546 = vmatpush1.bf16.msra.mxu0 %v2485
      %2547 = vmatprep.subr.bf16.mxu0 0
      %2548 = vmatpush1.bf16.msra.mxu0 %v2486
      %2549 = vmatprep.subr.bf16.mxu0 0
      %2550 = vmatpush1.bf16.msra.mxu0 %v2487
      %2551 = vmatprep.subr.bf16.mxu0 0
      %2552 = vmatpush1.bf16.msra.mxu0 %v2488
      %2553 = vmatprep.mubr.bf16.mxu0 %v1254
      %2554 = vmatmul.mubr.bf16.gmra.mrb[0].mxu0 %v1238
      %v2555 = vpop.f32.mrb[0].mxu0
      %v2556 = vadd.f32 %v2251, %v2555
      %v2557 = vpop.f32.mrb[0].mxu0
      %v2558 = vpop.f32.mrb[0].mxu0
      %v2559 = vadd.f32 %v2254, %v2558
      %v2560 = vpop.f32.mrb[0].mxu0
      %2561 = vmatprep.mubr.bf16.mxu0 %v1255
      %2562 = vmatmul.mubr.bf16.gmra.mrb[0].mxu0 %v1239
      %v2563 = vpop.f32.mrb[0].mxu0
      %v2564 = vadd.f32 %v2259, %v2563
      %v2565 = vpop.f32.mrb[0].mxu0
      %v2566 = vpop.f32.mrb[0].mxu0
      %v2567 = vadd.f32 %v2262, %v2566
      %v2568 = vpop.f32.mrb[0].mxu0
      %2569 = vmatprep.mubr.bf16.mxu0 %v1256
      %2570 = vmatmul.mubr.bf16.gmra.mrb[0].mxu0 %v1240
      %v2571 = vpop.f32.mrb[0].mxu0
      %v2572 = vadd.f32 %v2267, %v2571
      %v2573 = vpop.f32.mrb[0].mxu0
      %v2574 = vpop.f32.mrb[0].mxu0
      %v2575 = vadd.f32 %v2270, %v2574
      %v2576 = vpop.f32.mrb[0].mxu0
      %2577 = vmatprep.mubr.bf16.mxu0 %v1257
      %2578 = vmatmul.mubr.bf16.gmra.mrb[0].mxu0 %v1241
      %v2579 = vpop.f32.mrb[0].mxu0
      %v2580 = vadd.f32 %v2275, %v2579
      %v2581 = vpop.f32.mrb[0].mxu0
      %v2582 = vpop.f32.mrb[0].mxu0
      %v2583 = vadd.f32 %v2278, %v2582
      %v2584 = vpop.f32.mrb[0].mxu0
      %2585 = vmatprep.mubr.bf16.mxu0 %v1258
      %2586 = vmatmul.mubr.bf16.gmra.mrb[0].mxu0 %v1242
      %v2587 = vpop.f32.mrb[0].mxu0
      %v2588 = vadd.f32 %v2283, %v2587
      %v2589 = vpop.f32.mrb[0].mxu0
      %v2590 = vpop.f32.mrb[0].mxu0
      %v2591 = vadd.f32 %v2286, %v2590
      %v2592 = vpop.f32.mrb[0].mxu0
      %2593 = vmatprep.mubr.bf16.mxu0 %v1259
      %2594 = vmatmul.mubr.bf16.gmra.mrb[0].mxu0 %v1243
      %v2595 = vpop.f32.mrb[0].mxu0
      %v2596 = vadd.f32 %v2291, %v2595
      %v2597 = vpop.f32.mrb[0].mxu0
      %v2598 = vpop.f32.mrb[0].mxu0
      %v2599 = vadd.f32 %v2294, %v2598
      %v2600 = vpop.f32.mrb[0].mxu0
      %2601 = vmatprep.mubr.bf16.mxu0 %v1260
      %2602 = vmatmul.mubr.bf16.gmra.mrb[0].mxu0 %v1244
      %v2603 = vpop.f32.mrb[0].mxu0
      %v2604 = vadd.f32 %v2299, %v2603
      %v2605 = vpop.f32.mrb[0].mxu0
      %v2606 = vpop.f32.mrb[0].mxu0
      %v2607 = vadd.f32 %v2302, %v2606
      %v2608 = vpop.f32.mrb[0].mxu0
      %2609 = vmatprep.mubr.bf16.mxu0 %v1261
      %2610 = vmatmul.mubr.bf16.gmra.mrb[0].mxu0 %v1245
      %v2611 = vpop.f32.mrb[0].mxu0
      %v2612 = vadd.f32 %v2307, %v2611
      %v2613 = vpop.f32.mrb[0].mxu0
      %v2614 = vpop.f32.mrb[0].mxu0
      %v2615 = vadd.f32 %v2310, %v2614
      %v2616 = vpop.f32.mrb[0].mxu0
      %2617 = vmatprep.mubr.bf16.mxu0 %v1262
      %2618 = vmatmul.mubr.bf16.gmra.mrb[0].mxu0 %v1246
      %v2619 = vpop.f32.mrb[0].mxu0
      %v2620 = vadd.f32 %v2315, %v2619
      %v2621 = vpop.f32.mrb[0].mxu0
      %v2622 = vpop.f32.mrb[0].mxu0
      %v2623 = vadd.f32 %v2318, %v2622
      %v2624 = vpop.f32.mrb[0].mxu0
      %2625 = vmatprep.mubr.bf16.mxu0 %v1263
      %2626 = vmatmul.mubr.bf16.gmra.mrb[0].mxu0 %v1247
      %v2627 = vpop.f32.mrb[0].mxu0
      %v2628 = vadd.f32 %v2323, %v2627
      %v2629 = vpop.f32.mrb[0].mxu0
      %v2630 = vpop.f32.mrb[0].mxu0
      %v2631 = vadd.f32 %v2326, %v2630
      %v2632 = vpop.f32.mrb[0].mxu0
      %2633 = vmatprep.mubr.bf16.mxu0 %v1264
      %2634 = vmatmul.mubr.bf16.gmra.mrb[0].mxu0 %v1248
      %v2635 = vpop.f32.mrb[0].mxu0
      %v2636 = vadd.f32 %v2331, %v2635
      %v2637 = vpop.f32.mrb[0].mxu0
      %v2638 = vpop.f32.mrb[0].mxu0
      %v2639 = vadd.f32 %v2334, %v2638
      %v2640 = vpop.f32.mrb[0].mxu0
      %2641 = vmatprep.mubr.bf16.mxu0 %v1265
      %2642 = vmatmul.mubr.bf16.gmra.mrb[0].mxu0 %v1249
      %v2643 = vpop.f32.mrb[0].mxu0
      %v2644 = vadd.f32 %v2339, %v2643
      %v2645 = vpop.f32.mrb[0].mxu0
      %v2646 = vpop.f32.mrb[0].mxu0
      %v2647 = vadd.f32 %v2342, %v2646
      %v2648 = vpop.f32.mrb[0].mxu0
      %2649 = vmatprep.mubr.bf16.mxu0 %v1266
      %2650 = vmatmul.mubr.bf16.gmra.mrb[0].mxu0 %v1250
      %v2651 = vpop.f32.mrb[0].mxu0
      %v2652 = vadd.f32 %v2347, %v2651
      %v2653 = vpop.f32.mrb[0].mxu0
      %v2654 = vpop.f32.mrb[0].mxu0
      %v2655 = vadd.f32 %v2350, %v2654
      %v2656 = vpop.f32.mrb[0].mxu0
      %2657 = vmatprep.mubr.bf16.mxu0 %v1267
      %2658 = vmatmul.mubr.bf16.gmra.mrb[0].mxu0 %v1251
      %v2659 = vpop.f32.mrb[0].mxu0
      %v2660 = vadd.f32 %v2355, %v2659
      %v2661 = vpop.f32.mrb[0].mxu0
      %v2662 = vpop.f32.mrb[0].mxu0
      %v2663 = vadd.f32 %v2358, %v2662
      %v2664 = vpop.f32.mrb[0].mxu0
      %2665 = vmatprep.mubr.bf16.mxu0 %v1268
      %2666 = vmatmul.mubr.bf16.gmra.mrb[0].mxu0 %v1252
      %v2667 = vpop.f32.mrb[0].mxu0
      %v2668 = vadd.f32 %v2363, %v2667
      %v2669 = vpop.f32.mrb[0].mxu0
      %v2670 = vpop.f32.mrb[0].mxu0
      %v2671 = vadd.f32 %v2366, %v2670
      %v2672 = vpop.f32.mrb[0].mxu0
      %2673 = vmatprep.mubr.bf16.mxu0 %v1269
      %2674 = vmatmul.mubr.bf16.gmra.mrb[0].mxu0 %v1253
      %v2675 = vpop.f32.mrb[0].mxu0
      %v2676 = vadd.f32 %v2371, %v2675
      %v2677 = vpop.f32.mrb[0].mxu0
      %v2678 = vpop.f32.mrb[0].mxu0
      %v2679 = vadd.f32 %v2374, %v2678
      %v2680 = vpop.f32.mrb[0].mxu0
      %2681 = vdwg.mxu0
      %2682 = vmatprep.subr.bf16.mxu0 0
      %2683 = vmatpush1.bf16.msra.mxu0 %v2489
      %2684 = vmatprep.subr.bf16.mxu0 0
      %2685 = vmatpush1.bf16.msra.mxu0 %v2490
      %2686 = vmatprep.subr.bf16.mxu0 0
      %2687 = vmatpush1.bf16.msra.mxu0 %v2491
      %2688 = vmatprep.subr.bf16.mxu0 0
      %2689 = vmatpush1.bf16.msra.mxu0 %v2492
      %2690 = vmatprep.subr.bf16.mxu0 0
      %2691 = vmatpush1.bf16.msra.mxu0 %v2493
      %2692 = vmatprep.subr.bf16.mxu0 0
      %2693 = vmatpush1.bf16.msra.mxu0 %v2494
      %2694 = vmatprep.subr.bf16.mxu0 0
      %2695 = vmatpush1.bf16.msra.mxu0 %v2495
      %2696 = vmatprep.subr.bf16.mxu0 0
      %2697 = vmatpush1.bf16.msra.mxu0 %v2496
      %2698 = vmatprep.subr.bf16.mxu0 0
      %2699 = vmatpush1.bf16.msra.mxu0 0
      %2700 = vmatprep.subr.bf16.mxu0 0
      %2701 = vmatpush1.bf16.msra.mxu0 0
      %2702 = vmatprep.subr.bf16.mxu0 0
      %2703 = vmatpush1.bf16.msra.mxu0 0
      %2704 = vmatprep.subr.bf16.mxu0 0
      %2705 = vmatpush1.bf16.msra.mxu0 0
      %2706 = vmatprep.subr.bf16.mxu0 0
      %2707 = vmatpush1.bf16.msra.mxu0 0
      %2708 = vmatprep.subr.bf16.mxu0 0
      %2709 = vmatpush1.bf16.msra.mxu0 0
      %2710 = vmatprep.subr.bf16.mxu0 0
      %2711 = vmatpush1.bf16.msra.mxu0 0
      %2712 = vmatprep.subr.bf16.mxu0 0
      %2713 = vmatpush1.bf16.msra.mxu0 0
      %2714 = vmatprep.mubr.bf16.mxu0 0
      %2715 = vmatmul.mubr.bf16.gmra.mrb[0].mxu0 %v1399
      %v2716 = vpop.f32.mrb[0].mxu0
      %v2717 = vadd.f32 %v2556, %v2716
      %v2718 = vpop.f32.mrb[0].mxu0
      %v2719 = vpop.f32.mrb[0].mxu0
      %v2720 = vadd.f32 %v2559, %v2719
      %v2721 = vpop.f32.mrb[0].mxu0
      %2722 = vmatprep.mubr.bf16.mxu0 0
      %2723 = vmatmul.mubr.bf16.gmra.mrb[0].mxu0 %v1400
      %v2724 = vpop.f32.mrb[0].mxu0
      %v2725 = vadd.f32 %v2564, %v2724
      %v2726 = vpop.f32.mrb[0].mxu0
      %v2727 = vpop.f32.mrb[0].mxu0
      %v2728 = vadd.f32 %v2567, %v2727
      %v2729 = vpop.f32.mrb[0].mxu0
      %2730 = vmatprep.mubr.bf16.mxu0 0
      %2731 = vmatmul.mubr.bf16.gmra.mrb[0].mxu0 %v1401
      %v2732 = vpop.f32.mrb[0].mxu0
      %v2733 = vadd.f32 %v2572, %v2732
      %v2734 = vpop.f32.mrb[0].mxu0
      %v2735 = vpop.f32.mrb[0].mxu0
      %v2736 = vadd.f32 %v2575, %v2735
      %v2737 = vpop.f32.mrb[0].mxu0
      %2738 = vmatprep.mubr.bf16.mxu0 0
      %2739 = vmatmul.mubr.bf16.gmra.mrb[0].mxu0 %v1402
      %v2740 = vpop.f32.mrb[0].mxu0
      %v2741 = vadd.f32 %v2580, %v2740
      %v2742 = vpop.f32.mrb[0].mxu0
      %v2743 = vpop.f32.mrb[0].mxu0
      %v2744 = vadd.f32 %v2583, %v2743
      %v2745 = vpop.f32.mrb[0].mxu0
      %2746 = vmatprep.mubr.bf16.mxu0 0
      %2747 = vmatmul.mubr.bf16.gmra.mrb[0].mxu0 %v1403
      %v2748 = vpop.f32.mrb[0].mxu0
      %v2749 = vadd.f32 %v2588, %v2748
      %v2750 = vpop.f32.mrb[0].mxu0
      %v2751 = vpop.f32.mrb[0].mxu0
      %v2752 = vadd.f32 %v2591, %v2751
      %v2753 = vpop.f32.mrb[0].mxu0
      %2754 = vmatprep.mubr.bf16.mxu0 0
      %2755 = vmatmul.mubr.bf16.gmra.mrb[0].mxu0 %v1404
      %v2756 = vpop.f32.mrb[0].mxu0
      %v2757 = vadd.f32 %v2596, %v2756
      %v2758 = vpop.f32.mrb[0].mxu0
      %v2759 = vpop.f32.mrb[0].mxu0
      %v2760 = vadd.f32 %v2599, %v2759
      %v2761 = vpop.f32.mrb[0].mxu0
      %2762 = vmatprep.mubr.bf16.mxu0 0
      %2763 = vmatmul.mubr.bf16.gmra.mrb[0].mxu0 %v1405
      %v2764 = vpop.f32.mrb[0].mxu0
      %v2765 = vadd.f32 %v2604, %v2764
      %v2766 = vpop.f32.mrb[0].mxu0
      %v2767 = vpop.f32.mrb[0].mxu0
      %v2768 = vadd.f32 %v2607, %v2767
      %v2769 = vpop.f32.mrb[0].mxu0
      %2770 = vmatprep.mubr.bf16.mxu0 0
      %2771 = vmatmul.mubr.bf16.gmra.mrb[0].mxu0 %v1406
      %v2772 = vpop.f32.mrb[0].mxu0
      %v2773 = vadd.f32 %v2612, %v2772
      %v2774 = vpop.f32.mrb[0].mxu0
      %v2775 = vpop.f32.mrb[0].mxu0
      %v2776 = vadd.f32 %v2615, %v2775
      %v2777 = vpop.f32.mrb[0].mxu0
      %2778 = vmatprep.mubr.bf16.mxu0 0
      %2779 = vmatmul.mubr.bf16.gmra.mrb[0].mxu0 %v1407
      %v2780 = vpop.f32.mrb[0].mxu0
      %v2781 = vadd.f32 %v2620, %v2780
      %v2782 = vpop.f32.mrb[0].mxu0
      %v2783 = vpop.f32.mrb[0].mxu0
      %v2784 = vadd.f32 %v2623, %v2783
      %v2785 = vpop.f32.mrb[0].mxu0
      %2786 = vmatprep.mubr.bf16.mxu0 0
      %2787 = vmatmul.mubr.bf16.gmra.mrb[0].mxu0 %v1408
      %v2788 = vpop.f32.mrb[0].mxu0
      %v2789 = vadd.f32 %v2628, %v2788
      %v2790 = vpop.f32.mrb[0].mxu0
      %v2791 = vpop.f32.mrb[0].mxu0
      %v2792 = vadd.f32 %v2631, %v2791
      %v2793 = vpop.f32.mrb[0].mxu0
      %2794 = vmatprep.mubr.bf16.mxu0 0
      %2795 = vmatmul.mubr.bf16.gmra.mrb[0].mxu0 %v1409
      %v2796 = vpop.f32.mrb[0].mxu0
      %v2797 = vadd.f32 %v2636, %v2796
      %v2798 = vpop.f32.mrb[0].mxu0
      %v2799 = vpop.f32.mrb[0].mxu0
      %v2800 = vadd.f32 %v2639, %v2799
      %v2801 = vpop.f32.mrb[0].mxu0
      %2802 = vmatprep.mubr.bf16.mxu0 0
      %2803 = vmatmul.mubr.bf16.gmra.mrb[0].mxu0 %v1410
      %v2804 = vpop.f32.mrb[0].mxu0
      %v2805 = vadd.f32 %v2644, %v2804
      %v2806 = vpop.f32.mrb[0].mxu0
      %v2807 = vpop.f32.mrb[0].mxu0
      %v2808 = vadd.f32 %v2647, %v2807
      %v2809 = vpop.f32.mrb[0].mxu0
      %2810 = vmatprep.mubr.bf16.mxu0 0
      %2811 = vmatmul.mubr.bf16.gmra.mrb[0].mxu0 %v1411
      %v2812 = vpop.f32.mrb[0].mxu0
      %v2813 = vadd.f32 %v2652, %v2812
      %v2814 = vpop.f32.mrb[0].mxu0
      %v2815 = vpop.f32.mrb[0].mxu0
      %v2816 = vadd.f32 %v2655, %v2815
      %v2817 = vpop.f32.mrb[0].mxu0
      %2818 = vmatprep.mubr.bf16.mxu0 0
      %2819 = vmatmul.mubr.bf16.gmra.mrb[0].mxu0 %v1412
      %v2820 = vpop.f32.mrb[0].mxu0
      %v2821 = vadd.f32 %v2660, %v2820
      %v2822 = vpop.f32.mrb[0].mxu0
      %v2823 = vpop.f32.mrb[0].mxu0
      %v2824 = vadd.f32 %v2663, %v2823
      %v2825 = vpop.f32.mrb[0].mxu0
      %2826 = vmatprep.mubr.bf16.mxu0 0
      %2827 = vmatmul.mubr.bf16.gmra.mrb[0].mxu0 %v1413
      %v2828 = vpop.f32.mrb[0].mxu0
      %v2829 = vadd.f32 %v2668, %v2828
      %v2830 = vpop.f32.mrb[0].mxu0
      %v2831 = vpop.f32.mrb[0].mxu0
      %v2832 = vadd.f32 %v2671, %v2831
      %v2833 = vpop.f32.mrb[0].mxu0
      %2834 = vmatprep.mubr.bf16.mxu0 0
      %2835 = vmatmul.mubr.bf16.gmra.mrb[0].mxu0 %v1414
      %v2836 = vpop.f32.mrb[0].mxu0
      %v2837 = vadd.f32 %v2676, %v2836
      %v2838 = vpop.f32.mrb[0].mxu0
      %v2839 = vpop.f32.mrb[0].mxu0
      %v2840 = vadd.f32 %v2679, %v2839
      %v2841 = vpop.f32.mrb[0].mxu0
      %2842 = vdwg.mxu0
      %s2843 = scalar_lea.vmem [#allocation2], 64
      %v2844 = vld [vmem:[%s2843] sm:$0xff]
      %v2845 = vld [vmem:[%s2843 + $0x8] sm:$0xff]
      %v2846 = vld [vmem:[%s2843 + $0x10] sm:$0xff]
      %v2847 = vld [vmem:[%s2843 + $0x18] sm:$0xff]
      %v2848 = vld [vmem:[%s2843 + $0x20] sm:$0xff]
      %v2849 = vld [vmem:[%s2843 + $0x28] sm:$0xff]
      %v2850 = vld [vmem:[%s2843 + $0x30] sm:$0xff]
      %v2851 = vld [vmem:[%s2843 + $0x38] sm:$0xff]
      %v2852 = vld [vmem:[%s2843 + $0x40] sm:$0xff]
      %v2853 = vld [vmem:[%s2843 + $0x48] sm:$0xff]
      %v2854 = vld [vmem:[%s2843 + $0x50] sm:$0xff]
      %v2855 = vld [vmem:[%s2843 + $0x58] sm:$0xff]
      %v2856 = vld [vmem:[%s2843 + $0x60] sm:$0xff]
      %v2857 = vld [vmem:[%s2843 + $0x68] sm:$0xff]
      %v2858 = vld [vmem:[%s2843 + $0x70] sm:$0xff]
      %v2859 = vld [vmem:[%s2843 + $0x78] sm:$0xff]
      %v2860 = vld [vmem:[%s2843 + $0x80] sm:$0xff]
      %v2861 = vld [vmem:[%s2843 + $0x88] sm:$0xff]
      %v2862 = vld [vmem:[%s2843 + $0x90] sm:$0xff]
      %v2863 = vld [vmem:[%s2843 + $0x98] sm:$0xff]
      %v2864 = vld [vmem:[%s2843 + $0xa0] sm:$0xff]
      %v2865 = vld [vmem:[%s2843 + $0xa8] sm:$0xff]
      %v2866 = vld [vmem:[%s2843 + $0xb0] sm:$0xff]
      %v2867 = vld [vmem:[%s2843 + $0xb8] sm:$0xff]
      %v2868 = vld [vmem:[%s2843 + $0xc0] sm:$0xff]
      %v2869 = vld [vmem:[%s2843 + $0xc8] sm:$0xff]
      %v2870 = vld [vmem:[%s2843 + $0xd0] sm:$0xff]
      %v2871 = vld [vmem:[%s2843 + $0xd8] sm:$0xff]
      %v2872 = vld [vmem:[%s2843 + $0xe0] sm:$0xff]
      %v2873 = vld [vmem:[%s2843 + $0xe8] sm:$0xff]
      %v2874 = vld [vmem:[%s2843 + $0xf0] sm:$0xff]
      %v2875 = vld [vmem:[%s2843 + $0xf8] sm:$0xff]
      %v2876 = vld [vmem:[%s2843 + $0x100] sm:$0xff]
      %v2877 = vld [vmem:[%s2843 + $0x108] sm:$0xff]
      %v2878 = vld [vmem:[%s2843 + $0x110] sm:$0xff]
      %v2879 = vld [vmem:[%s2843 + $0x118] sm:$0xff]
      %v2880 = vld [vmem:[%s2843 + $0x120] sm:$0xff]
      %v2881 = vld [vmem:[%s2843 + $0x128] sm:$0xff]
      %v2882 = vld [vmem:[%s2843 + $0x130] sm:$0xff]
      %v2883 = vld [vmem:[%s2843 + $0x138] sm:$0xff]
      %v2884 = vld [vmem:[%s2843 + $0x140] sm:$0xff]
      %v2885 = vld [vmem:[%s2843 + $0x148] sm:$0xff]
      %v2886 = vld [vmem:[%s2843 + $0x150] sm:$0xff]
      %v2887 = vld [vmem:[%s2843 + $0x158] sm:$0xff]
      %v2888 = vld [vmem:[%s2843 + $0x160] sm:$0xff]
      %v2889 = vld [vmem:[%s2843 + $0x168] sm:$0xff]
      %v2890 = vld [vmem:[%s2843 + $0x170] sm:$0xff]
      %v2891 = vld [vmem:[%s2843 + $0x178] sm:$0xff]
      %v2892 = vld [vmem:[%s2843 + $0x180] sm:$0xff]
      %v2893 = vld [vmem:[%s2843 + $0x188] sm:$0xff]
      %v2894 = vld [vmem:[%s2843 + $0x190] sm:$0xff]
      %v2895 = vld [vmem:[%s2843 + $0x198] sm:$0xff]
      %v2896 = vld [vmem:[%s2843 + $0x1a0] sm:$0xff]
      %v2897 = vld [vmem:[%s2843 + $0x1a8] sm:$0xff]
      %v2898 = vld [vmem:[%s2843 + $0x1b0] sm:$0xff]
      %v2899 = vld [vmem:[%s2843 + $0x1b8] sm:$0xff]
      %v2900 = vld [vmem:[%s2843 + $0x1c0] sm:$0xff]
      %v2901 = vld [vmem:[%s2843 + $0x1c8] sm:$0xff]
      %v2902 = vld [vmem:[%s2843 + $0x1d0] sm:$0xff]
      %v2903 = vld [vmem:[%s2843 + $0x1d8] sm:$0xff]
      %v2904 = vld [vmem:[%s2843 + $0x1e0] sm:$0xff]
      %v2905 = vld [vmem:[%s2843 + $0x1e8] sm:$0xff]
      %v2906 = vld [vmem:[%s2843 + $0x1f0] sm:$0xff]
      %v2907 = vld [vmem:[%s2843 + $0x1f8] sm:$0xff]
      %v2956 = vrot.slane %v2844, 7
      %v2957 = vrot.slane %v2845, 7
      %v2958 = vsel %vm1125, %v2956, %v2957
      %v2959 = vrot.slane %v2846, 7
      %v2960 = vsel %vm1125, %v2957, %v2959
      %v2961 = vrot.slane %v2848, 7
      %v2962 = vrot.slane %v2849, 7
      %v2963 = vsel %vm1125, %v2961, %v2962
      %v2964 = vrot.slane %v2850, 7
      %v2965 = vsel %vm1125, %v2962, %v2964
      %v2966 = vrot.slane %v2852, 7
      %v2967 = vrot.slane %v2853, 7
      %v2968 = vsel %vm1125, %v2966, %v2967
      %v2969 = vrot.slane %v2854, 7
      %v2970 = vsel %vm1125, %v2967, %v2969
      %v2971 = vrot.slane %v2856, 7
      %v2972 = vrot.slane %v2857, 7
      %v2973 = vsel %vm1125, %v2971, %v2972
      %v2974 = vrot.slane %v2858, 7
      %v2975 = vsel %vm1125, %v2972, %v2974
      %v2976 = vrot.slane %v2860, 7
      %v2977 = vrot.slane %v2861, 7
      %v2978 = vsel %vm1125, %v2976, %v2977
      %v2979 = vrot.slane %v2862, 7
      %v2980 = vsel %vm1125, %v2977, %v2979
      %v2981 = vrot.slane %v2864, 7
      %v2982 = vrot.slane %v2865, 7
      %v2983 = vsel %vm1125, %v2981, %v2982
      %v2984 = vrot.slane %v2866, 7
      %v2985 = vsel %vm1125, %v2982, %v2984
      %v2986 = vrot.slane %v2868, 7
      %v2987 = vrot.slane %v2869, 7
      %v2988 = vsel %vm1125, %v2986, %v2987
      %v2989 = vrot.slane %v2870, 7
      %v2990 = vsel %vm1125, %v2987, %v2989
      %v2991 = vrot.slane %v2872, 7
      %v2992 = vrot.slane %v2873, 7
      %v2993 = vsel %vm1125, %v2991, %v2992
      %v2994 = vrot.slane %v2874, 7
      %v2995 = vsel %vm1125, %v2992, %v2994
      %v2996 = vrot.slane %v2876, 7
      %v2997 = vrot.slane %v2877, 7
      %v2998 = vsel %vm1125, %v2996, %v2997
      %v2999 = vrot.slane %v2878, 7
      %v3000 = vsel %vm1125, %v2997, %v2999
      %v3001 = vrot.slane %v2880, 7
      %v3002 = vrot.slane %v2881, 7
      %v3003 = vsel %vm1125, %v3001, %v3002
      %v3004 = vrot.slane %v2882, 7
      %v3005 = vsel %vm1125, %v3002, %v3004
      %v3006 = vrot.slane %v2884, 7
      %v3007 = vrot.slane %v2885, 7
      %v3008 = vsel %vm1125, %v3006, %v3007
      %v3009 = vrot.slane %v2886, 7
      %v3010 = vsel %vm1125, %v3007, %v3009
      %v3011 = vrot.slane %v2888, 7
      %v3012 = vrot.slane %v2889, 7
      %v3013 = vsel %vm1125, %v3011, %v3012
      %v3014 = vrot.slane %v2890, 7
      %v3015 = vsel %vm1125, %v3012, %v3014
      %v3016 = vrot.slane %v2892, 7
      %v3017 = vrot.slane %v2893, 7
      %v3018 = vsel %vm1125, %v3016, %v3017
      %v3019 = vrot.slane %v2894, 7
      %v3020 = vsel %vm1125, %v3017, %v3019
      %v3021 = vrot.slane %v2896, 7
      %v3022 = vrot.slane %v2897, 7
      %v3023 = vsel %vm1125, %v3021, %v3022
      %v3024 = vrot.slane %v2898, 7
      %v3025 = vsel %vm1125, %v3022, %v3024
      %v3026 = vrot.slane %v2900, 7
      %v3027 = vrot.slane %v2901, 7
      %v3028 = vsel %vm1125, %v3026, %v3027
      %v3029 = vrot.slane %v2902, 7
      %v3030 = vsel %vm1125, %v3027, %v3029
      %v3031 = vrot.slane %v2904, 7
      %v3032 = vrot.slane %v2905, 7
      %v3033 = vsel %vm1125, %v3031, %v3032
      %v3034 = vrot.slane %v2906, 7
      %v3035 = vsel %vm1125, %v3032, %v3034
      %v3068 = vpack.c.bf16 %v2960, %v2958
      %v3069 = vpack.c.bf16 %v2965, %v2963
      %v3070 = vpack.c.bf16 %v2970, %v2968
      %v3071 = vpack.c.bf16 %v2975, %v2973
      %v3072 = vpack.c.bf16 %v2980, %v2978
      %v3073 = vpack.c.bf16 %v2985, %v2983
      %v3074 = vpack.c.bf16 %v2990, %v2988
      %v3075 = vpack.c.bf16 %v2995, %v2993
      %v3076 = vpack.c.bf16 %v3000, %v2998
      %v3077 = vpack.c.bf16 %v3005, %v3003
      %v3078 = vpack.c.bf16 %v3010, %v3008
      %v3079 = vpack.c.bf16 %v3015, %v3013
      %v3080 = vpack.c.bf16 %v3020, %v3018
      %v3081 = vpack.c.bf16 %v3025, %v3023
      %v3082 = vpack.c.bf16 %v3030, %v3028
      %v3083 = vpack.c.bf16 %v3035, %v3033
      %v3084 = vpack.c.bf16 %v2846, %v2845
      %v3085 = vpack.c.bf16 %v2850, %v2849
      %v3086 = vpack.c.bf16 %v2854, %v2853
      %v3087 = vpack.c.bf16 %v2858, %v2857
      %v3088 = vpack.c.bf16 %v2862, %v2861
      %v3089 = vpack.c.bf16 %v2866, %v2865
      %v3090 = vpack.c.bf16 %v2870, %v2869
      %v3091 = vpack.c.bf16 %v2874, %v2873
      %v3092 = vpack.c.bf16 %v2878, %v2877
      %v3093 = vpack.c.bf16 %v2882, %v2881
      %v3094 = vpack.c.bf16 %v2886, %v2885
      %v3095 = vpack.c.bf16 %v2890, %v2889
      %v3096 = vpack.c.bf16 %v2894, %v2893
      %v3097 = vpack.c.bf16 %v2898, %v2897
      %v3098 = vpack.c.bf16 %v2902, %v2901
      %v3099 = vpack.c.bf16 %v2906, %v2905
      %v3116 = vrot.slane %v2845, 1
      %v3117 = vrot.slane %v2846, 1
      %v3118 = vsel %vm1286, %v3116, %v3117
      %v3119 = vrot.slane %v2847, 1
      %v3120 = vsel %vm1286, %v3117, %v3119
      %v3121 = vrot.slane %v2849, 1
      %v3122 = vrot.slane %v2850, 1
      %v3123 = vsel %vm1286, %v3121, %v3122
      %v3124 = vrot.slane %v2851, 1
      %v3125 = vsel %vm1286, %v3122, %v3124
      %v3126 = vrot.slane %v2853, 1
      %v3127 = vrot.slane %v2854, 1
      %v3128 = vsel %vm1286, %v3126, %v3127
      %v3129 = vrot.slane %v2855, 1
      %v3130 = vsel %vm1286, %v3127, %v3129
      %v3131 = vrot.slane %v2857, 1
      %v3132 = vrot.slane %v2858, 1
      %v3133 = vsel %vm1286, %v3131, %v3132
      %v3134 = vrot.slane %v2859, 1
      %v3135 = vsel %vm1286, %v3132, %v3134
      %v3136 = vrot.slane %v2861, 1
      %v3137 = vrot.slane %v2862, 1
      %v3138 = vsel %vm1286, %v3136, %v3137
      %v3139 = vrot.slane %v2863, 1
      %v3140 = vsel %vm1286, %v3137, %v3139
      %v3141 = vrot.slane %v2865, 1
      %v3142 = vrot.slane %v2866, 1
      %v3143 = vsel %vm1286, %v3141, %v3142
      %v3144 = vrot.slane %v2867, 1
      %v3145 = vsel %vm1286, %v3142, %v3144
      %v3146 = vrot.slane %v2869, 1
      %v3147 = vrot.slane %v2870, 1
      %v3148 = vsel %vm1286, %v3146, %v3147
      %v3149 = vrot.slane %v2871, 1
      %v3150 = vsel %vm1286, %v3147, %v3149
      %v3151 = vrot.slane %v2873, 1
      %v3152 = vrot.slane %v2874, 1
      %v3153 = vsel %vm1286, %v3151, %v3152
      %v3154 = vrot.slane %v2875, 1
      %v3155 = vsel %vm1286, %v3152, %v3154
      %v3156 = vrot.slane %v2877, 1
      %v3157 = vrot.slane %v2878, 1
      %v3158 = vsel %vm1286, %v3156, %v3157
      %v3159 = vrot.slane %v2879, 1
      %v3160 = vsel %vm1286, %v3157, %v3159
      %v3161 = vrot.slane %v2881, 1
      %v3162 = vrot.slane %v2882, 1
      %v3163 = vsel %vm1286, %v3161, %v3162
      %v3164 = vrot.slane %v2883, 1
      %v3165 = vsel %vm1286, %v3162, %v3164
      %v3166 = vrot.slane %v2885, 1
      %v3167 = vrot.slane %v2886, 1
      %v3168 = vsel %vm1286, %v3166, %v3167
      %v3169 = vrot.slane %v2887, 1
      %v3170 = vsel %vm1286, %v3167, %v3169
      %v3171 = vrot.slane %v2889, 1
      %v3172 = vrot.slane %v2890, 1
      %v3173 = vsel %vm1286, %v3171, %v3172
      %v3174 = vrot.slane %v2891, 1
      %v3175 = vsel %vm1286, %v3172, %v3174
      %v3176 = vrot.slane %v2893, 1
      %v3177 = vrot.slane %v2894, 1
      %v3178 = vsel %vm1286, %v3176, %v3177
      %v3179 = vrot.slane %v2895, 1
      %v3180 = vsel %vm1286, %v3177, %v3179
      %v3181 = vrot.slane %v2897, 1
      %v3182 = vrot.slane %v2898, 1
      %v3183 = vsel %vm1286, %v3181, %v3182
      %v3184 = vrot.slane %v2899, 1
      %v3185 = vsel %vm1286, %v3182, %v3184
      %v3186 = vrot.slane %v2901, 1
      %v3187 = vrot.slane %v2902, 1
      %v3188 = vsel %vm1286, %v3186, %v3187
      %v3189 = vrot.slane %v2903, 1
      %v3190 = vsel %vm1286, %v3187, %v3189
      %v3191 = vrot.slane %v2905, 1
      %v3192 = vrot.slane %v2906, 1
      %v3193 = vsel %vm1286, %v3191, %v3192
      %v3194 = vrot.slane %v2907, 1
      %v3195 = vsel %vm1286, %v3192, %v3194
      %v3228 = vpack.c.bf16 %v3120, %v3118
      %v3229 = vpack.c.bf16 %v3125, %v3123
      %v3230 = vpack.c.bf16 %v3130, %v3128
      %v3231 = vpack.c.bf16 %v3135, %v3133
      %v3232 = vpack.c.bf16 %v3140, %v3138
      %v3233 = vpack.c.bf16 %v3145, %v3143
      %v3234 = vpack.c.bf16 %v3150, %v3148
      %v3235 = vpack.c.bf16 %v3155, %v3153
      %v3236 = vpack.c.bf16 %v3160, %v3158
      %v3237 = vpack.c.bf16 %v3165, %v3163
      %v3238 = vpack.c.bf16 %v3170, %v3168
      %v3239 = vpack.c.bf16 %v3175, %v3173
      %v3240 = vpack.c.bf16 %v3180, %v3178
      %v3241 = vpack.c.bf16 %v3185, %v3183
      %v3242 = vpack.c.bf16 %v3190, %v3188
      %v3243 = vpack.c.bf16 %v3195, %v3193
      %v3244 = vld [vmem:[%s6 + $0x180] sm:$0xf]
      %v3245 = vld [vmem:[%s6 + $0x184] sm:$0xf]
      %v3246 = vld [vmem:[%s6 + $0x188] sm:$0xf]
      %v3247 = vld [vmem:[%s6 + $0x18c] sm:$0xf]
      %v3248 = vld [vmem:[%s6 + $0x190] sm:$0xf]
      %v3249 = vld [vmem:[%s6 + $0x194] sm:$0xf]
      %v3250 = vld [vmem:[%s6 + $0x198] sm:$0xf]
      %v3251 = vld [vmem:[%s6 + $0x19c] sm:$0xf]
      %v3252 = vld [vmem:[%s6 + $0x1a0] sm:$0xf]
      %v3253 = vld [vmem:[%s6 + $0x1a4] sm:$0xf]
      %v3254 = vld [vmem:[%s6 + $0x1a8] sm:$0xf]
      %v3255 = vld [vmem:[%s6 + $0x1ac] sm:$0xf]
      %v3256 = vld [vmem:[%s6 + $0x1b0] sm:$0xf]
      %v3257 = vld [vmem:[%s6 + $0x1b4] sm:$0xf]
      %v3258 = vld [vmem:[%s6 + $0x1b8] sm:$0xf]
      %v3259 = vld [vmem:[%s6 + $0x1bc] sm:$0xf]
      %v3260 = vld [vmem:[%s6 + $0x1c0] sm:$0xf]
      %v3261 = vld [vmem:[%s6 + $0x1c4] sm:$0xf]
      %v3262 = vld [vmem:[%s6 + $0x1c8] sm:$0xf]
      %v3263 = vld [vmem:[%s6 + $0x1cc] sm:$0xf]
      %v3264 = vld [vmem:[%s6 + $0x1d0] sm:$0xf]
      %v3265 = vld [vmem:[%s6 + $0x1d4] sm:$0xf]
      %v3266 = vld [vmem:[%s6 + $0x1d8] sm:$0xf]
      %v3267 = vld [vmem:[%s6 + $0x1dc] sm:$0xf]
      %v3268 = vld [vmem:[%s6 + $0x1e0] sm:$0xf]
      %v3269 = vld [vmem:[%s6 + $0x1e4] sm:$0xf]
      %v3270 = vld [vmem:[%s6 + $0x1e8] sm:$0xf]
      %v3271 = vld [vmem:[%s6 + $0x1ec] sm:$0xf]
      %v3272 = vld [vmem:[%s6 + $0x1f0] sm:$0xf]
      %v3273 = vld [vmem:[%s6 + $0x1f4] sm:$0xf]
      %v3274 = vld [vmem:[%s6 + $0x1f8] sm:$0xf]
      %v3275 = vld [vmem:[%s6 + $0x1fc] sm:$0xf]
      %v3276 = vld [vmem:[%s6 + $0x200] sm:$0xf]
      %v3277 = vld [vmem:[%s6 + $0x204] sm:$0xf]
      %v3278 = vld [vmem:[%s6 + $0x208] sm:$0xf]
      %v3279 = vld [vmem:[%s6 + $0x20c] sm:$0xf]
      %v3280 = vld [vmem:[%s6 + $0x210] sm:$0xf]
      %v3281 = vld [vmem:[%s6 + $0x214] sm:$0xf]
      %v3282 = vld [vmem:[%s6 + $0x218] sm:$0xf]
      %v3283 = vld [vmem:[%s6 + $0x21c] sm:$0xf]
      %v3284 = vld [vmem:[%s6 + $0x220] sm:$0xf]
      %v3285 = vld [vmem:[%s6 + $0x224] sm:$0xf]
      %v3286 = vld [vmem:[%s6 + $0x228] sm:$0xf]
      %v3287 = vld [vmem:[%s6 + $0x22c] sm:$0xf]
      %v3288 = vld [vmem:[%s6 + $0x230] sm:$0xf]
      %v3289 = vld [vmem:[%s6 + $0x234] sm:$0xf]
      %v3290 = vld [vmem:[%s6 + $0x238] sm:$0xf]
      %v3291 = vld [vmem:[%s6 + $0x23c] sm:$0xf]
      %v3340 = vunpack.c.l.b16 %v3244
      %v3341 = vunpack.c.l.b16 %v3245
      %v3342 = vunpack.c.l.b16 %v3246
      %v3343 = vunpack.c.l.b16 %v3247
      %v3344 = vunpack.c.l.b16 %v3248
      %v3345 = vunpack.c.l.b16 %v3249
      %v3346 = vunpack.c.l.b16 %v3250
      %v3347 = vunpack.c.l.b16 %v3251
      %v3348 = vunpack.c.l.b16 %v3252
      %v3349 = vunpack.c.l.b16 %v3253
      %v3350 = vunpack.c.l.b16 %v3254
      %v3351 = vunpack.c.l.b16 %v3255
      %v3352 = vunpack.c.l.b16 %v3256
      %v3353 = vunpack.c.l.b16 %v3257
      %v3354 = vunpack.c.l.b16 %v3258
      %v3355 = vunpack.c.l.b16 %v3259
      %v3356 = vunpack.c.l.b16 %v3260
      %v3357 = vunpack.c.l.b16 %v3261
      %v3358 = vunpack.c.l.b16 %v3262
      %v3359 = vunpack.c.l.b16 %v3263
      %v3360 = vunpack.c.l.b16 %v3264
      %v3361 = vunpack.c.l.b16 %v3265
      %v3362 = vunpack.c.l.b16 %v3266
      %v3363 = vunpack.c.l.b16 %v3267
      %v3364 = vunpack.c.l.b16 %v3268
      %v3365 = vunpack.c.l.b16 %v3269
      %v3366 = vunpack.c.l.b16 %v3270
      %v3367 = vunpack.c.l.b16 %v3271
      %v3368 = vunpack.c.l.b16 %v3272
      %v3369 = vunpack.c.l.b16 %v3273
      %v3370 = vunpack.c.l.b16 %v3274
      %v3371 = vunpack.c.l.b16 %v3275
      %v3372 = vunpack.c.l.b16 %v3276
      %v3373 = vunpack.c.l.b16 %v3277
      %v3374 = vunpack.c.l.b16 %v3278
      %v3375 = vunpack.c.l.b16 %v3279
      %v3376 = vunpack.c.l.b16 %v3280
      %v3377 = vunpack.c.l.b16 %v3281
      %v3378 = vunpack.c.l.b16 %v3282
      %v3379 = vunpack.c.l.b16 %v3283
      %v3380 = vunpack.c.l.b16 %v3284
      %v3381 = vunpack.c.l.b16 %v3285
      %v3382 = vunpack.c.l.b16 %v3286
      %v3383 = vunpack.c.l.b16 %v3287
      %v3384 = vunpack.c.l.b16 %v3288
      %v3385 = vunpack.c.l.b16 %v3289
      %v3386 = vunpack.c.l.b16 %v3290
      %v3387 = vunpack.c.l.b16 %v3291
      %v3388 = vpack.c.b16 %v3341, %v3340
      %v3389 = vpack.c.b16 %v3343, %v3342
      %v3390 = vpack.c.b16 %v3345, %v3344
      %v3391 = vpack.c.b16 %v3347, %v3346
      %v3392 = vpack.c.b16 %v3349, %v3348
      %v3393 = vpack.c.b16 %v3351, %v3350
      %v3394 = vpack.c.b16 %v3353, %v3352
      %v3395 = vpack.c.b16 %v3355, %v3354
      %v3396 = vpack.c.b16 %v3357, %v3356
      %v3397 = vpack.c.b16 %v3359, %v3358
      %v3398 = vpack.c.b16 %v3361, %v3360
      %v3399 = vpack.c.b16 %v3363, %v3362
      %v3400 = vpack.c.b16 %v3365, %v3364
      %v3401 = vpack.c.b16 %v3367, %v3366
      %v3402 = vpack.c.b16 %v3369, %v3368
      %v3403 = vpack.c.b16 %v3371, %v3370
      %v3404 = vpack.c.b16 %v3373, %v3372
      %v3405 = vpack.c.b16 %v3375, %v3374
      %v3406 = vpack.c.b16 %v3377, %v3376
      %v3407 = vpack.c.b16 %v3379, %v3378
      %v3408 = vpack.c.b16 %v3381, %v3380
      %v3409 = vpack.c.b16 %v3383, %v3382
      %v3410 = vpack.c.b16 %v3385, %v3384
      %v3411 = vpack.c.b16 %v3387, %v3386
      %3436 = vmatprep.subr.bf16.mxu0 0
      %3437 = vmatpush1.bf16.msra.mxu0 %v3388
      %3438 = vmatprep.subr.bf16.mxu0 0
      %3439 = vmatpush1.bf16.msra.mxu0 %v3389
      %3440 = vmatprep.subr.bf16.mxu0 0
      %3441 = vmatpush1.bf16.msra.mxu0 %v3390
      %3442 = vmatprep.subr.bf16.mxu0 0
      %3443 = vmatpush1.bf16.msra.mxu0 %v3391
      %3444 = vmatprep.subr.bf16.mxu0 0
      %3445 = vmatpush1.bf16.msra.mxu0 %v3392
      %3446 = vmatprep.subr.bf16.mxu0 0
      %3447 = vmatpush1.bf16.msra.mxu0 %v3393
      %3448 = vmatprep.subr.bf16.mxu0 0
      %3449 = vmatpush1.bf16.msra.mxu0 %v3394
      %3450 = vmatprep.subr.bf16.mxu0 0
      %3451 = vmatpush1.bf16.msra.mxu0 %v3395
      %3452 = vmatprep.subr.bf16.mxu0 0
      %3453 = vmatpush1.bf16.msra.mxu0 %v3396
      %3454 = vmatprep.subr.bf16.mxu0 0
      %3455 = vmatpush1.bf16.msra.mxu0 %v3397
      %3456 = vmatprep.subr.bf16.mxu0 0
      %3457 = vmatpush1.bf16.msra.mxu0 %v3398
      %3458 = vmatprep.subr.bf16.mxu0 0
      %3459 = vmatpush1.bf16.msra.mxu0 %v3399
      %3460 = vmatprep.subr.bf16.mxu0 0
      %3461 = vmatpush1.bf16.msra.mxu0 %v3400
      %3462 = vmatprep.subr.bf16.mxu0 0
      %3463 = vmatpush1.bf16.msra.mxu0 %v3401
      %3464 = vmatprep.subr.bf16.mxu0 0
      %3465 = vmatpush1.bf16.msra.mxu0 %v3402
      %3466 = vmatprep.subr.bf16.mxu0 0
      %3467 = vmatpush1.bf16.msra.mxu0 %v3403
      %3468 = vmatprep.mubr.bf16.mxu0 %v3084
      %3469 = vmatmul.mubr.bf16.gmra.mrb[0].mxu0 %v3068
      %v3470 = vpop.f32.mrb[0].mxu0
      %v3471 = vadd.f32 0.0, %v3470
      %v3472 = vpop.f32.mrb[0].mxu0
      %v3473 = vpop.f32.mrb[0].mxu0
      %v3474 = vadd.f32 0.0, %v3473
      %v3475 = vpop.f32.mrb[0].mxu0
      %3476 = vmatprep.mubr.bf16.mxu0 %v3085
      %3477 = vmatmul.mubr.bf16.gmra.mrb[0].mxu0 %v3069
      %v3478 = vpop.f32.mrb[0].mxu0
      %v3479 = vadd.f32 0.0, %v3478
      %v3480 = vpop.f32.mrb[0].mxu0
      %v3481 = vpop.f32.mrb[0].mxu0
      %v3482 = vadd.f32 0.0, %v3481
      %v3483 = vpop.f32.mrb[0].mxu0
      %3484 = vmatprep.mubr.bf16.mxu0 %v3086
      %3485 = vmatmul.mubr.bf16.gmra.mrb[0].mxu0 %v3070
      %v3486 = vpop.f32.mrb[0].mxu0
      %v3487 = vadd.f32 0.0, %v3486
      %v3488 = vpop.f32.mrb[0].mxu0
      %v3489 = vpop.f32.mrb[0].mxu0
      %v3490 = vadd.f32 0.0, %v3489
      %v3491 = vpop.f32.mrb[0].mxu0
      %3492 = vmatprep.mubr.bf16.mxu0 %v3087
      %3493 = vmatmul.mubr.bf16.gmra.mrb[0].mxu0 %v3071
      %v3494 = vpop.f32.mrb[0].mxu0
      %v3495 = vadd.f32 0.0, %v3494
      %v3496 = vpop.f32.mrb[0].mxu0
      %v3497 = vpop.f32.mrb[0].mxu0
      %v3498 = vadd.f32 0.0, %v3497
      %v3499 = vpop.f32.mrb[0].mxu0
      %3500 = vmatprep.mubr.bf16.mxu0 %v3088
      %3501 = vmatmul.mubr.bf16.gmra.mrb[0].mxu0 %v3072
      %v3502 = vpop.f32.mrb[0].mxu0
      %v3503 = vadd.f32 0.0, %v3502
      %v3504 = vpop.f32.mrb[0].mxu0
      %v3505 = vpop.f32.mrb[0].mxu0
      %v3506 = vadd.f32 0.0, %v3505
      %v3507 = vpop.f32.mrb[0].mxu0
      %3508 = vmatprep.mubr.bf16.mxu0 %v3089
      %3509 = vmatmul.mubr.bf16.gmra.mrb[0].mxu0 %v3073
      %v3510 = vpop.f32.mrb[0].mxu0
      %v3511 = vadd.f32 0.0, %v3510
      %v3512 = vpop.f32.mrb[0].mxu0
      %v3513 = vpop.f32.mrb[0].mxu0
      %v3514 = vadd.f32 0.0, %v3513
      %v3515 = vpop.f32.mrb[0].mxu0
      %3516 = vmatprep.mubr.bf16.mxu0 %v3090
      %3517 = vmatmul.mubr.bf16.gmra.mrb[0].mxu0 %v3074
      %v3518 = vpop.f32.mrb[0].mxu0
      %v3519 = vadd.f32 0.0, %v3518
      %v3520 = vpop.f32.mrb[0].mxu0
      %v3521 = vpop.f32.mrb[0].mxu0
      %v3522 = vadd.f32 0.0, %v3521
      %v3523 = vpop.f32.mrb[0].mxu0
      %3524 = vmatprep.mubr.bf16.mxu0 %v3091
      %3525 = vmatmul.mubr.bf16.gmra.mrb[0].mxu0 %v3075
      %v3526 = vpop.f32.mrb[0].mxu0
      %v3527 = vadd.f32 0.0, %v3526
      %v3528 = vpop.f32.mrb[0].mxu0
      %v3529 = vpop.f32.mrb[0].mxu0
      %v3530 = vadd.f32 0.0, %v3529
      %v3531 = vpop.f32.mrb[0].mxu0
      %3532 = vmatprep.mubr.bf16.mxu0 %v3092
      %3533 = vmatmul.mubr.bf16.gmra.mrb[0].mxu0 %v3076
      %v3534 = vpop.f32.mrb[0].mxu0
      %v3535 = vadd.f32 0.0, %v3534
      %v3536 = vpop.f32.mrb[0].mxu0
      %v3537 = vpop.f32.mrb[0].mxu0
      %v3538 = vadd.f32 0.0, %v3537
      %v3539 = vpop.f32.mrb[0].mxu0
      %3540 = vmatprep.mubr.bf16.mxu0 %v3093
      %3541 = vmatmul.mubr.bf16.gmra.mrb[0].mxu0 %v3077
      %v3542 = vpop.f32.mrb[0].mxu0
      %v3543 = vadd.f32 0.0, %v3542
      %v3544 = vpop.f32.mrb[0].mxu0
      %v3545 = vpop.f32.mrb[0].mxu0
      %v3546 = vadd.f32 0.0, %v3545
      %v3547 = vpop.f32.mrb[0].mxu0
      %3548 = vmatprep.mubr.bf16.mxu0 %v3094
      %3549 = vmatmul.mubr.bf16.gmra.mrb[0].mxu0 %v3078
      %v3550 = vpop.f32.mrb[0].mxu0
      %v3551 = vadd.f32 0.0, %v3550
      %v3552 = vpop.f32.mrb[0].mxu0
      %v3553 = vpop.f32.mrb[0].mxu0
      %v3554 = vadd.f32 0.0, %v3553
      %v3555 = vpop.f32.mrb[0].mxu0
      %3556 = vmatprep.mubr.bf16.mxu0 %v3095
      %3557 = vmatmul.mubr.bf16.gmra.mrb[0].mxu0 %v3079
      %v3558 = vpop.f32.mrb[0].mxu0
      %v3559 = vadd.f32 0.0, %v3558
      %v3560 = vpop.f32.mrb[0].mxu0
      %v3561 = vpop.f32.mrb[0].mxu0
      %v3562 = vadd.f32 0.0, %v3561
      %v3563 = vpop.f32.mrb[0].mxu0
      %3564 = vmatprep.mubr.bf16.mxu0 %v3096
      %3565 = vmatmul.mubr.bf16.gmra.mrb[0].mxu0 %v3080
      %v3566 = vpop.f32.mrb[0].mxu0
      %v3567 = vadd.f32 0.0, %v3566
      %v3568 = vpop.f32.mrb[0].mxu0
      %v3569 = vpop.f32.mrb[0].mxu0
      %v3570 = vadd.f32 0.0, %v3569
      %v3571 = vpop.f32.mrb[0].mxu0
      %3572 = vmatprep.mubr.bf16.mxu0 %v3097
      %3573 = vmatmul.mubr.bf16.gmra.mrb[0].mxu0 %v3081
      %v3574 = vpop.f32.mrb[0].mxu0
      %v3575 = vadd.f32 0.0, %v3574
      %v3576 = vpop.f32.mrb[0].mxu0
      %v3577 = vpop.f32.mrb[0].mxu0
      %v3578 = vadd.f32 0.0, %v3577
      %v3579 = vpop.f32.mrb[0].mxu0
      %3580 = vmatprep.mubr.bf16.mxu0 %v3098
      %3581 = vmatmul.mubr.bf16.gmra.mrb[0].mxu0 %v3082
      %v3582 = vpop.f32.mrb[0].mxu0
      %v3583 = vadd.f32 0.0, %v3582
      %v3584 = vpop.f32.mrb[0].mxu0
      %v3585 = vpop.f32.mrb[0].mxu0
      %v3586 = vadd.f32 0.0, %v3585
      %v3587 = vpop.f32.mrb[0].mxu0
      %3588 = vmatprep.mubr.bf16.mxu0 %v3099
      %3589 = vmatmul.mubr.bf16.gmra.mrb[0].mxu0 %v3083
      %v3590 = vpop.f32.mrb[0].mxu0
      %v3591 = vadd.f32 0.0, %v3590
      %v3592 = vpop.f32.mrb[0].mxu0
      %v3593 = vpop.f32.mrb[0].mxu0
      %v3594 = vadd.f32 0.0, %v3593
      %v3595 = vpop.f32.mrb[0].mxu0
      %3596 = vdwg.mxu0
      %3597 = vmatprep.subr.bf16.mxu0 0
      %3598 = vmatpush1.bf16.msra.mxu0 %v3404
      %3599 = vmatprep.subr.bf16.mxu0 0
      %3600 = vmatpush1.bf16.msra.mxu0 %v3405
      %3601 = vmatprep.subr.bf16.mxu0 0
      %3602 = vmatpush1.bf16.msra.mxu0 %v3406
      %3603 = vmatprep.subr.bf16.mxu0 0
      %3604 = vmatpush1.bf16.msra.mxu0 %v3407
      %3605 = vmatprep.subr.bf16.mxu0 0
      %3606 = vmatpush1.bf16.msra.mxu0 %v3408
      %3607 = vmatprep.subr.bf16.mxu0 0
      %3608 = vmatpush1.bf16.msra.mxu0 %v3409
      %3609 = vmatprep.subr.bf16.mxu0 0
      %3610 = vmatpush1.bf16.msra.mxu0 %v3410
      %3611 = vmatprep.subr.bf16.mxu0 0
      %3612 = vmatpush1.bf16.msra.mxu0 %v3411
      %3613 = vmatprep.subr.bf16.mxu0 0
      %3614 = vmatpush1.bf16.msra.mxu0 0
      %3615 = vmatprep.subr.bf16.mxu0 0
      %3616 = vmatpush1.bf16.msra.mxu0 0
      %3617 = vmatprep.subr.bf16.mxu0 0
      %3618 = vmatpush1.bf16.msra.mxu0 0
      %3619 = vmatprep.subr.bf16.mxu0 0
      %3620 = vmatpush1.bf16.msra.mxu0 0
      %3621 = vmatprep.subr.bf16.mxu0 0
      %3622 = vmatpush1.bf16.msra.mxu0 0
      %3623 = vmatprep.subr.bf16.mxu0 0
      %3624 = vmatpush1.bf16.msra.mxu0 0
      %3625 = vmatprep.subr.bf16.mxu0 0
      %3626 = vmatpush1.bf16.msra.mxu0 0
      %3627 = vmatprep.subr.bf16.mxu0 0
      %3628 = vmatpush1.bf16.msra.mxu0 0
      %3629 = vmatprep.mubr.bf16.mxu0 0
      %3630 = vmatmul.mubr.bf16.gmra.mrb[0].mxu0 %v3228
      %v3631 = vpop.f32.mrb[0].mxu0
      %v3632 = vadd.f32 %v3471, %v3631
      %v3633 = vpop.f32.mrb[0].mxu0
      %v3634 = vpop.f32.mrb[0].mxu0
      %v3635 = vadd.f32 %v3474, %v3634
      %v3636 = vpop.f32.mrb[0].mxu0
      %3637 = vmatprep.mubr.bf16.mxu0 0
      %3638 = vmatmul.mubr.bf16.gmra.mrb[0].mxu0 %v3229
      %v3639 = vpop.f32.mrb[0].mxu0
      %v3640 = vadd.f32 %v3479, %v3639
      %v3641 = vpop.f32.mrb[0].mxu0
      %v3642 = vpop.f32.mrb[0].mxu0
      %v3643 = vadd.f32 %v3482, %v3642
      %v3644 = vpop.f32.mrb[0].mxu0
      %3645 = vmatprep.mubr.bf16.mxu0 0
      %3646 = vmatmul.mubr.bf16.gmra.mrb[0].mxu0 %v3230
      %v3647 = vpop.f32.mrb[0].mxu0
      %v3648 = vadd.f32 %v3487, %v3647
      %v3649 = vpop.f32.mrb[0].mxu0
      %v3650 = vpop.f32.mrb[0].mxu0
      %v3651 = vadd.f32 %v3490, %v3650
      %v3652 = vpop.f32.mrb[0].mxu0
      %3653 = vmatprep.mubr.bf16.mxu0 0
      %3654 = vmatmul.mubr.bf16.gmra.mrb[0].mxu0 %v3231
      %v3655 = vpop.f32.mrb[0].mxu0
      %v3656 = vadd.f32 %v3495, %v3655
      %v3657 = vpop.f32.mrb[0].mxu0
      %v3658 = vpop.f32.mrb[0].mxu0
      %v3659 = vadd.f32 %v3498, %v3658
      %v3660 = vpop.f32.mrb[0].mxu0
      %3661 = vmatprep.mubr.bf16.mxu0 0
      %3662 = vmatmul.mubr.bf16.gmra.mrb[0].mxu0 %v3232
      %v3663 = vpop.f32.mrb[0].mxu0
      %v3664 = vadd.f32 %v3503, %v3663
      %v3665 = vpop.f32.mrb[0].mxu0
      %v3666 = vpop.f32.mrb[0].mxu0
      %v3667 = vadd.f32 %v3506, %v3666
      %v3668 = vpop.f32.mrb[0].mxu0
      %3669 = vmatprep.mubr.bf16.mxu0 0
      %3670 = vmatmul.mubr.bf16.gmra.mrb[0].mxu0 %v3233
      %v3671 = vpop.f32.mrb[0].mxu0
      %v3672 = vadd.f32 %v3511, %v3671
      %v3673 = vpop.f32.mrb[0].mxu0
      %v3674 = vpop.f32.mrb[0].mxu0
      %v3675 = vadd.f32 %v3514, %v3674
      %v3676 = vpop.f32.mrb[0].mxu0
      %3677 = vmatprep.mubr.bf16.mxu0 0
      %3678 = vmatmul.mubr.bf16.gmra.mrb[0].mxu0 %v3234
      %v3679 = vpop.f32.mrb[0].mxu0
      %v3680 = vadd.f32 %v3519, %v3679
      %v3681 = vpop.f32.mrb[0].mxu0
      %v3682 = vpop.f32.mrb[0].mxu0
      %v3683 = vadd.f32 %v3522, %v3682
      %v3684 = vpop.f32.mrb[0].mxu0
      %3685 = vmatprep.mubr.bf16.mxu0 0
      %3686 = vmatmul.mubr.bf16.gmra.mrb[0].mxu0 %v3235
      %v3687 = vpop.f32.mrb[0].mxu0
      %v3688 = vadd.f32 %v3527, %v3687
      %v3689 = vpop.f32.mrb[0].mxu0
      %v3690 = vpop.f32.mrb[0].mxu0
      %v3691 = vadd.f32 %v3530, %v3690
      %v3692 = vpop.f32.mrb[0].mxu0
      %3693 = vmatprep.mubr.bf16.mxu0 0
      %3694 = vmatmul.mubr.bf16.gmra.mrb[0].mxu0 %v3236
      %v3695 = vpop.f32.mrb[0].mxu0
      %v3696 = vadd.f32 %v3535, %v3695
      %v3697 = vpop.f32.mrb[0].mxu0
      %v3698 = vpop.f32.mrb[0].mxu0
      %v3699 = vadd.f32 %v3538, %v3698
      %v3700 = vpop.f32.mrb[0].mxu0
      %3701 = vmatprep.mubr.bf16.mxu0 0
      %3702 = vmatmul.mubr.bf16.gmra.mrb[0].mxu0 %v3237
      %v3703 = vpop.f32.mrb[0].mxu0
      %v3704 = vadd.f32 %v3543, %v3703
      %v3705 = vpop.f32.mrb[0].mxu0
      %v3706 = vpop.f32.mrb[0].mxu0
      %v3707 = vadd.f32 %v3546, %v3706
      %v3708 = vpop.f32.mrb[0].mxu0
      %3709 = vmatprep.mubr.bf16.mxu0 0
      %3710 = vmatmul.mubr.bf16.gmra.mrb[0].mxu0 %v3238
      %v3711 = vpop.f32.mrb[0].mxu0
      %v3712 = vadd.f32 %v3551, %v3711
      %v3713 = vpop.f32.mrb[0].mxu0
      %v3714 = vpop.f32.mrb[0].mxu0
      %v3715 = vadd.f32 %v3554, %v3714
      %v3716 = vpop.f32.mrb[0].mxu0
      %3717 = vmatprep.mubr.bf16.mxu0 0
      %3718 = vmatmul.mubr.bf16.gmra.mrb[0].mxu0 %v3239
      %v3719 = vpop.f32.mrb[0].mxu0
      %v3720 = vadd.f32 %v3559, %v3719
      %v3721 = vpop.f32.mrb[0].mxu0
      %v3722 = vpop.f32.mrb[0].mxu0
      %v3723 = vadd.f32 %v3562, %v3722
      %v3724 = vpop.f32.mrb[0].mxu0
      %3725 = vmatprep.mubr.bf16.mxu0 0
      %3726 = vmatmul.mubr.bf16.gmra.mrb[0].mxu0 %v3240
      %v3727 = vpop.f32.mrb[0].mxu0
      %v3728 = vadd.f32 %v3567, %v3727
      %v3729 = vpop.f32.mrb[0].mxu0
      %v3730 = vpop.f32.mrb[0].mxu0
      %v3731 = vadd.f32 %v3570, %v3730
      %v3732 = vpop.f32.mrb[0].mxu0
      %3733 = vmatprep.mubr.bf16.mxu0 0
      %3734 = vmatmul.mubr.bf16.gmra.mrb[0].mxu0 %v3241
      %v3735 = vpop.f32.mrb[0].mxu0
      %v3736 = vadd.f32 %v3575, %v3735
      %v3737 = vpop.f32.mrb[0].mxu0
      %v3738 = vpop.f32.mrb[0].mxu0
      %v3739 = vadd.f32 %v3578, %v3738
      %v3740 = vpop.f32.mrb[0].mxu0
      %3741 = vmatprep.mubr.bf16.mxu0 0
      %3742 = vmatmul.mubr.bf16.gmra.mrb[0].mxu0 %v3242
      %v3743 = vpop.f32.mrb[0].mxu0
      %v3744 = vadd.f32 %v3583, %v3743
      %v3745 = vpop.f32.mrb[0].mxu0
      %v3746 = vpop.f32.mrb[0].mxu0
      %v3747 = vadd.f32 %v3586, %v3746
      %v3748 = vpop.f32.mrb[0].mxu0
      %3749 = vmatprep.mubr.bf16.mxu0 0
      %3750 = vmatmul.mubr.bf16.gmra.mrb[0].mxu0 %v3243
      %v3751 = vpop.f32.mrb[0].mxu0
      %v3752 = vadd.f32 %v3591, %v3751
      %v3753 = vpop.f32.mrb[0].mxu0
      %v3754 = vpop.f32.mrb[0].mxu0
      %v3755 = vadd.f32 %v3594, %v3754
      %v3756 = vpop.f32.mrb[0].mxu0
      %3757 = vdwg.mxu0
      %v3758 = vadd.f32 %v2717, %v3632
      %v3759 = vadd.f32 %v2720, %v3635
      %v3760 = vadd.f32 %v2725, %v3640
      %v3761 = vadd.f32 %v2728, %v3643
      %v3762 = vadd.f32 %v2733, %v3648
      %v3763 = vadd.f32 %v2736, %v3651
      %v3764 = vadd.f32 %v2741, %v3656
      %v3765 = vadd.f32 %v2744, %v3659
      %v3766 = vadd.f32 %v2749, %v3664
      %v3767 = vadd.f32 %v2752, %v3667
      %v3768 = vadd.f32 %v2757, %v3672
      %v3769 = vadd.f32 %v2760, %v3675
      %v3770 = vadd.f32 %v2765, %v3680
      %v3771 = vadd.f32 %v2768, %v3683
      %v3772 = vadd.f32 %v2773, %v3688
      %v3773 = vadd.f32 %v2776, %v3691
      %v3774 = vadd.f32 %v2781, %v3696
      %v3775 = vadd.f32 %v2784, %v3699
      %v3776 = vadd.f32 %v2789, %v3704
      %v3777 = vadd.f32 %v2792, %v3707
      %v3778 = vadd.f32 %v2797, %v3712
      %v3779 = vadd.f32 %v2800, %v3715
      %v3780 = vadd.f32 %v2805, %v3720
      %v3781 = vadd.f32 %v2808, %v3723
      %v3782 = vadd.f32 %v2813, %v3728
      %v3783 = vadd.f32 %v2816, %v3731
      %v3784 = vadd.f32 %v2821, %v3736
      %v3785 = vadd.f32 %v2824, %v3739
      %v3786 = vadd.f32 %v2829, %v3744
      %v3787 = vadd.f32 %v2832, %v3747
      %v3788 = vadd.f32 %v2837, %v3752
      %v3789 = vadd.f32 %v2840, %v3755
      %v3790 = vld [vmem:[%s7] sm:$0x1]
      %v3792 = vlaneseq
      %v3793 = vshrl.u32 %v3792, 7
      %v3794 = vsub.s32 0, %v3793
      %v3795 = vrot.slane %v3790, %v3794
      %v3797 = vmul.f32 %v3758, %v3795
      %v3798 = vmul.f32 %v3759, %v3795
      %v3799 = vmul.f32 %v3760, %v3795
      %v3800 = vmul.f32 %v3761, %v3795
      %v3801 = vmul.f32 %v3762, %v3795
      %v3802 = vmul.f32 %v3763, %v3795
      %v3803 = vmul.f32 %v3764, %v3795
      %v3804 = vmul.f32 %v3765, %v3795
      %v3805 = vmul.f32 %v3766, %v3795
      %v3806 = vmul.f32 %v3767, %v3795
      %v3807 = vmul.f32 %v3768, %v3795
      %v3808 = vmul.f32 %v3769, %v3795
      %v3809 = vmul.f32 %v3770, %v3795
      %v3810 = vmul.f32 %v3771, %v3795
      %v3811 = vmul.f32 %v3772, %v3795
      %v3812 = vmul.f32 %v3773, %v3795
      %v3813 = vmul.f32 %v3774, %v3795
      %v3814 = vmul.f32 %v3775, %v3795
      %v3815 = vmul.f32 %v3776, %v3795
      %v3816 = vmul.f32 %v3777, %v3795
      %v3817 = vmul.f32 %v3778, %v3795
      %v3818 = vmul.f32 %v3779, %v3795
      %v3819 = vmul.f32 %v3780, %v3795
      %v3820 = vmul.f32 %v3781, %v3795
      %v3821 = vmul.f32 %v3782, %v3795
      %v3822 = vmul.f32 %v3783, %v3795
      %v3823 = vmul.f32 %v3784, %v3795
      %v3824 = vmul.f32 %v3785, %v3795
      %v3825 = vmul.f32 %v3786, %v3795
      %v3826 = vmul.f32 %v3787, %v3795
      %v3827 = vmul.f32 %v3788, %v3795
      %v3828 = vmul.f32 %v3789, %v3795
      %v3829 = vld [vmem:[%s8] sm:$0x1]
      %v3831 = vlaneseq
      %v3832 = vshrl.u32 %v3831, 7
      %v3833 = vsub.s32 0, %v3832
      %v3834 = vrot.slane %v3829, %v3833
      %v3836 = vadd.f32 %v3797, %v3834
      %v3837 = vadd.f32 %v3798, %v3834
      %v3838 = vadd.f32 %v3799, %v3834
      %v3839 = vadd.f32 %v3800, %v3834
      %v3840 = vadd.f32 %v3801, %v3834
      %v3841 = vadd.f32 %v3802, %v3834
      %v3842 = vadd.f32 %v3803, %v3834
      %v3843 = vadd.f32 %v3804, %v3834
      %v3844 = vadd.f32 %v3805, %v3834
      %v3845 = vadd.f32 %v3806, %v3834
      %v3846 = vadd.f32 %v3807, %v3834
      %v3847 = vadd.f32 %v3808, %v3834
      %v3848 = vadd.f32 %v3809, %v3834
      %v3849 = vadd.f32 %v3810, %v3834
      %v3850 = vadd.f32 %v3811, %v3834
      %v3851 = vadd.f32 %v3812, %v3834
      %v3852 = vadd.f32 %v3813, %v3834
      %v3853 = vadd.f32 %v3814, %v3834
      %v3854 = vadd.f32 %v3815, %v3834
      %v3855 = vadd.f32 %v3816, %v3834
      %v3856 = vadd.f32 %v3817, %v3834
      %v3857 = vadd.f32 %v3818, %v3834
      %v3858 = vadd.f32 %v3819, %v3834
      %v3859 = vadd.f32 %v3820, %v3834
      %v3860 = vadd.f32 %v3821, %v3834
      %v3861 = vadd.f32 %v3822, %v3834
      %v3862 = vadd.f32 %v3823, %v3834
      %v3863 = vadd.f32 %v3824, %v3834
      %v3864 = vadd.f32 %v3825, %v3834
      %v3865 = vadd.f32 %v3826, %v3834
      %v3866 = vadd.f32 %v3827, %v3834
      %v3867 = vadd.f32 %v3828, %v3834
      %v3868 = vmax.f32 %v3836, 0.0
      %v3869 = vmax.f32 %v3837, 0.0
      %v3870 = vmax.f32 %v3838, 0.0
      %v3871 = vmax.f32 %v3839, 0.0
      %v3872 = vmax.f32 %v3840, 0.0
      %v3873 = vmax.f32 %v3841, 0.0
      %v3874 = vmax.f32 %v3842, 0.0
      %v3875 = vmax.f32 %v3843, 0.0
      %v3876 = vmax.f32 %v3844, 0.0
      %v3877 = vmax.f32 %v3845, 0.0
      %v3878 = vmax.f32 %v3846, 0.0
      %v3879 = vmax.f32 %v3847, 0.0
      %v3880 = vmax.f32 %v3848, 0.0
      %v3881 = vmax.f32 %v3849, 0.0
      %v3882 = vmax.f32 %v3850, 0.0
      %v3883 = vmax.f32 %v3851, 0.0
      %v3884 = vmax.f32 %v3852, 0.0
      %v3885 = vmax.f32 %v3853, 0.0
      %v3886 = vmax.f32 %v3854, 0.0
      %v3887 = vmax.f32 %v3855, 0.0
      %v3888 = vmax.f32 %v3856, 0.0
      %v3889 = vmax.f32 %v3857, 0.0
      %v3890 = vmax.f32 %v3858, 0.0
      %v3891 = vmax.f32 %v3859, 0.0
      %v3892 = vmax.f32 %v3860, 0.0
      %v3893 = vmax.f32 %v3861, 0.0
      %v3894 = vmax.f32 %v3862, 0.0
      %v3895 = vmax.f32 %v3863, 0.0
      %v3896 = vmax.f32 %v3864, 0.0
      %v3897 = vmax.f32 %v3865, 0.0
      %v3898 = vmax.f32 %v3866, 0.0
      %v3899 = vmax.f32 %v3867, 0.0
      %v3900 = vpack.c.bf16 %v3869, %v3868
      %v3901 = vpack.c.bf16 %v3871, %v3870
      %v3902 = vpack.c.bf16 %v3873, %v3872
      %v3903 = vpack.c.bf16 %v3875, %v3874
      %v3904 = vpack.c.bf16 %v3877, %v3876
      %v3905 = vpack.c.bf16 %v3879, %v3878
      %v3906 = vpack.c.bf16 %v3881, %v3880
      %v3907 = vpack.c.bf16 %v3883, %v3882
      %v3908 = vpack.c.bf16 %v3885, %v3884
      %v3909 = vpack.c.bf16 %v3887, %v3886
      %v3910 = vpack.c.bf16 %v3889, %v3888
      %v3911 = vpack.c.bf16 %v3891, %v3890
      %v3912 = vpack.c.bf16 %v3893, %v3892
      %v3913 = vpack.c.bf16 %v3895, %v3894
      %v3914 = vpack.c.bf16 %v3897, %v3896
      %v3915 = vpack.c.bf16 %v3899, %v3898
      %v3916 = vld [vmem:[%s9] sm:$0x1]
      %v3918 = vlaneseq
      %v3919 = vshrl.u32 %v3918, 7
      %v3920 = vsub.s32 0, %v3919
      %v3921 = vrot.slane %v3916, %v3920
      %v3923 = vmul.f32 %v448, %v3921
      %v3924 = vmul.f32 %v449, %v3921
      %v3925 = vmul.f32 %v450, %v3921
      %v3926 = vmul.f32 %v451, %v3921
      %v3927 = vmul.f32 %v452, %v3921
      %v3928 = vmul.f32 %v453, %v3921
      %v3929 = vmul.f32 %v454, %v3921
      %v3930 = vmul.f32 %v455, %v3921
      %v3931 = vmul.f32 %v456, %v3921
      %v3932 = vmul.f32 %v457, %v3921
      %v3933 = vmul.f32 %v458, %v3921
      %v3934 = vmul.f32 %v459, %v3921
      %v3935 = vmul.f32 %v460, %v3921
      %v3936 = vmul.f32 %v461, %v3921
      %v3937 = vmul.f32 %v462, %v3921
      %v3938 = vmul.f32 %v463, %v3921
      %v3939 = vmul.f32 %v464, %v3921
      %v3940 = vmul.f32 %v465, %v3921
      %v3941 = vmul.f32 %v466, %v3921
      %v3942 = vmul.f32 %v467, %v3921
      %v3943 = vmul.f32 %v468, %v3921
      %v3944 = vmul.f32 %v469, %v3921
      %v3945 = vmul.f32 %v470, %v3921
      %v3946 = vmul.f32 %v471, %v3921
      %v3947 = vmul.f32 %v472, %v3921
      %v3948 = vmul.f32 %v473, %v3921
      %v3949 = vmul.f32 %v474, %v3921
      %v3950 = vmul.f32 %v475, %v3921
      %v3951 = vmul.f32 %v476, %v3921
      %v3952 = vmul.f32 %v477, %v3921
      %v3953 = vmul.f32 %v478, %v3921
      %v3954 = vmul.f32 %v479, %v3921
      %v3955 = vld [vmem:[%s10] sm:$0x1]
      %v3957 = vlaneseq
      %v3958 = vshrl.u32 %v3957, 7
      %v3959 = vsub.s32 0, %v3958
      %v3960 = vrot.slane %v3955, %v3959
      %v3962 = vadd.f32 %v3923, %v3960
      %v3963 = vadd.f32 %v3924, %v3960
      %v3964 = vadd.f32 %v3925, %v3960
      %v3965 = vadd.f32 %v3926, %v3960
      %v3966 = vadd.f32 %v3927, %v3960
      %v3967 = vadd.f32 %v3928, %v3960
      %v3968 = vadd.f32 %v3929, %v3960
      %v3969 = vadd.f32 %v3930, %v3960
      %v3970 = vadd.f32 %v3931, %v3960
      %v3971 = vadd.f32 %v3932, %v3960
      %v3972 = vadd.f32 %v3933, %v3960
      %v3973 = vadd.f32 %v3934, %v3960
      %v3974 = vadd.f32 %v3935, %v3960
      %v3975 = vadd.f32 %v3936, %v3960
      %v3976 = vadd.f32 %v3937, %v3960
      %v3977 = vadd.f32 %v3938, %v3960
      %v3978 = vadd.f32 %v3939, %v3960
      %v3979 = vadd.f32 %v3940, %v3960
      %v3980 = vadd.f32 %v3941, %v3960
      %v3981 = vadd.f32 %v3942, %v3960
      %v3982 = vadd.f32 %v3943, %v3960
      %v3983 = vadd.f32 %v3944, %v3960
      %v3984 = vadd.f32 %v3945, %v3960
      %v3985 = vadd.f32 %v3946, %v3960
      %v3986 = vadd.f32 %v3947, %v3960
      %v3987 = vadd.f32 %v3948, %v3960
      %v3988 = vadd.f32 %v3949, %v3960
      %v3989 = vadd.f32 %v3950, %v3960
      %v3990 = vadd.f32 %v3951, %v3960
      %v3991 = vadd.f32 %v3952, %v3960
      %v3992 = vadd.f32 %v3953, %v3960
      %v3993 = vadd.f32 %v3954, %v3960
      %v3994 = vmax.f32 %v3962, 0.0
      %v3995 = vmax.f32 %v3963, 0.0
      %v3996 = vmax.f32 %v3964, 0.0
      %v3997 = vmax.f32 %v3965, 0.0
      %v3998 = vmax.f32 %v3966, 0.0
      %v3999 = vmax.f32 %v3967, 0.0
      %v4000 = vmax.f32 %v3968, 0.0
      %v4001 = vmax.f32 %v3969, 0.0
      %v4002 = vmax.f32 %v3970, 0.0
      %v4003 = vmax.f32 %v3971, 0.0
      %v4004 = vmax.f32 %v3972, 0.0
      %v4005 = vmax.f32 %v3973, 0.0
      %v4006 = vmax.f32 %v3974, 0.0
      %v4007 = vmax.f32 %v3975, 0.0
      %v4008 = vmax.f32 %v3976, 0.0
      %v4009 = vmax.f32 %v3977, 0.0
      %v4010 = vmax.f32 %v3978, 0.0
      %v4011 = vmax.f32 %v3979, 0.0
      %v4012 = vmax.f32 %v3980, 0.0
      %v4013 = vmax.f32 %v3981, 0.0
      %v4014 = vmax.f32 %v3982, 0.0
      %v4015 = vmax.f32 %v3983, 0.0
      %v4016 = vmax.f32 %v3984, 0.0
      %v4017 = vmax.f32 %v3985, 0.0
      %v4018 = vmax.f32 %v3986, 0.0
      %v4019 = vmax.f32 %v3987, 0.0
      %v4020 = vmax.f32 %v3988, 0.0
      %v4021 = vmax.f32 %v3989, 0.0
      %v4022 = vmax.f32 %v3990, 0.0
      %v4023 = vmax.f32 %v3991, 0.0
      %v4024 = vmax.f32 %v3992, 0.0
      %v4025 = vmax.f32 %v3993, 0.0
      %v4026 = vpack.c.bf16 %v3995, %v3994
      %v4027 = vpack.c.bf16 %v3997, %v3996
      %v4028 = vpack.c.bf16 %v3999, %v3998
      %v4029 = vpack.c.bf16 %v4001, %v4000
      %v4030 = vpack.c.bf16 %v4003, %v4002
      %v4031 = vpack.c.bf16 %v4005, %v4004
      %v4032 = vpack.c.bf16 %v4007, %v4006
      %v4033 = vpack.c.bf16 %v4009, %v4008
      %v4034 = vpack.c.bf16 %v4011, %v4010
      %v4035 = vpack.c.bf16 %v4013, %v4012
      %v4036 = vpack.c.bf16 %v4015, %v4014
      %v4037 = vpack.c.bf16 %v4017, %v4016
      %v4038 = vpack.c.bf16 %v4019, %v4018
      %v4039 = vpack.c.bf16 %v4021, %v4020
      %v4040 = vpack.c.bf16 %v4023, %v4022
      %v4041 = vpack.c.bf16 %v4025, %v4024
      %v4042 = vld [vmem:[%s11] sm:$0xf]
      %v4043 = vld [vmem:[%s11 + $0x4] sm:$0xf]
      %v4044 = vld [vmem:[%s11 + $0x8] sm:$0xf]
      %v4045 = vld [vmem:[%s11 + $0xc] sm:$0xf]
      %v4046 = vld [vmem:[%s11 + $0x10] sm:$0xf]
      %v4047 = vld [vmem:[%s11 + $0x14] sm:$0xf]
      %v4048 = vld [vmem:[%s11 + $0x18] sm:$0xf]
      %v4049 = vld [vmem:[%s11 + $0x1c] sm:$0xf]
      %v4050 = vld [vmem:[%s11 + $0x20] sm:$0xf]
      %v4051 = vld [vmem:[%s11 + $0x24] sm:$0xf]
      %v4052 = vld [vmem:[%s11 + $0x28] sm:$0xf]
      %v4053 = vld [vmem:[%s11 + $0x2c] sm:$0xf]
      %v4054 = vld [vmem:[%s11 + $0x30] sm:$0xf]
      %v4055 = vld [vmem:[%s11 + $0x34] sm:$0xf]
      %v4056 = vld [vmem:[%s11 + $0x38] sm:$0xf]
      %v4057 = vld [vmem:[%s11 + $0x3c] sm:$0xf]
      %v4058 = vld [vmem:[%s11 + $0x40] sm:$0xf]
      %v4059 = vld [vmem:[%s11 + $0x44] sm:$0xf]
      %v4060 = vld [vmem:[%s11 + $0x48] sm:$0xf]
      %v4061 = vld [vmem:[%s11 + $0x4c] sm:$0xf]
      %v4062 = vld [vmem:[%s11 + $0x50] sm:$0xf]
      %v4063 = vld [vmem:[%s11 + $0x54] sm:$0xf]
      %v4064 = vld [vmem:[%s11 + $0x58] sm:$0xf]
      %v4065 = vld [vmem:[%s11 + $0x5c] sm:$0xf]
      %v4066 = vld [vmem:[%s11 + $0x60] sm:$0xf]
      %v4067 = vld [vmem:[%s11 + $0x64] sm:$0xf]
      %v4068 = vld [vmem:[%s11 + $0x68] sm:$0xf]
      %v4069 = vld [vmem:[%s11 + $0x6c] sm:$0xf]
      %v4070 = vld [vmem:[%s11 + $0x70] sm:$0xf]
      %v4071 = vld [vmem:[%s11 + $0x74] sm:$0xf]
      %v4072 = vld [vmem:[%s11 + $0x78] sm:$0xf]
      %v4073 = vld [vmem:[%s11 + $0x7c] sm:$0xf]
      %v4106 = vunpack.c.l.b16 %v4042
      %v4107 = vunpack.c.l.b16 %v4043
      %v4108 = vunpack.c.l.b16 %v4044
      %v4109 = vunpack.c.l.b16 %v4045
      %v4110 = vunpack.c.l.b16 %v4046
      %v4111 = vunpack.c.l.b16 %v4047
      %v4112 = vunpack.c.l.b16 %v4048
      %v4113 = vunpack.c.l.b16 %v4049
      %v4114 = vunpack.c.l.b16 %v4050
      %v4115 = vunpack.c.l.b16 %v4051
      %v4116 = vunpack.c.l.b16 %v4052
      %v4117 = vunpack.c.l.b16 %v4053
      %v4118 = vunpack.c.l.b16 %v4054
      %v4119 = vunpack.c.l.b16 %v4055
      %v4120 = vunpack.c.l.b16 %v4056
      %v4121 = vunpack.c.l.b16 %v4057
      %v4122 = vunpack.c.l.b16 %v4058
      %v4123 = vunpack.c.l.b16 %v4059
      %v4124 = vunpack.c.l.b16 %v4060
      %v4125 = vunpack.c.l.b16 %v4061
      %v4126 = vunpack.c.l.b16 %v4062
      %v4127 = vunpack.c.l.b16 %v4063
      %v4128 = vunpack.c.l.b16 %v4064
      %v4129 = vunpack.c.l.b16 %v4065
      %v4130 = vunpack.c.l.b16 %v4066
      %v4131 = vunpack.c.l.b16 %v4067
      %v4132 = vunpack.c.l.b16 %v4068
      %v4133 = vunpack.c.l.b16 %v4069
      %v4134 = vunpack.c.l.b16 %v4070
      %v4135 = vunpack.c.l.b16 %v4071
      %v4136 = vunpack.c.l.b16 %v4072
      %v4137 = vunpack.c.l.b16 %v4073
      %v4138 = vpack.c.b16 %v4107, %v4106
      %v4139 = vpack.c.b16 %v4109, %v4108
      %v4140 = vpack.c.b16 %v4111, %v4110
      %v4141 = vpack.c.b16 %v4113, %v4112
      %v4142 = vpack.c.b16 %v4115, %v4114
      %v4143 = vpack.c.b16 %v4117, %v4116
      %v4144 = vpack.c.b16 %v4119, %v4118
      %v4145 = vpack.c.b16 %v4121, %v4120
      %v4146 = vpack.c.b16 %v4123, %v4122
      %v4147 = vpack.c.b16 %v4125, %v4124
      %v4148 = vpack.c.b16 %v4127, %v4126
      %v4149 = vpack.c.b16 %v4129, %v4128
      %v4150 = vpack.c.b16 %v4131, %v4130
      %v4151 = vpack.c.b16 %v4133, %v4132
      %v4152 = vpack.c.b16 %v4135, %v4134
      %v4153 = vpack.c.b16 %v4137, %v4136
      %4170 = vmatprep.subr.bf16.mxu0 0
      %4171 = vmatpush1.bf16.msra.mxu0 %v4138
      %4172 = vmatprep.subr.bf16.mxu0 0
      %4173 = vmatpush1.bf16.msra.mxu0 %v4139
      %4174 = vmatprep.subr.bf16.mxu0 0
      %4175 = vmatpush1.bf16.msra.mxu0 %v4140
      %4176 = vmatprep.subr.bf16.mxu0 0
      %4177 = vmatpush1.bf16.msra.mxu0 %v4141
      %4178 = vmatprep.subr.bf16.mxu0 0
      %4179 = vmatpush1.bf16.msra.mxu0 %v4142
      %4180 = vmatprep.subr.bf16.mxu0 0
      %4181 = vmatpush1.bf16.msra.mxu0 %v4143
      %4182 = vmatprep.subr.bf16.mxu0 0
      %4183 = vmatpush1.bf16.msra.mxu0 %v4144
      %4184 = vmatprep.subr.bf16.mxu0 0
      %4185 = vmatpush1.bf16.msra.mxu0 %v4145
      %4186 = vmatprep.subr.bf16.mxu0 0
      %4187 = vmatpush1.bf16.msra.mxu0 %v4146
      %4188 = vmatprep.subr.bf16.mxu0 0
      %4189 = vmatpush1.bf16.msra.mxu0 %v4147
      %4190 = vmatprep.subr.bf16.mxu0 0
      %4191 = vmatpush1.bf16.msra.mxu0 %v4148
      %4192 = vmatprep.subr.bf16.mxu0 0
      %4193 = vmatpush1.bf16.msra.mxu0 %v4149
      %4194 = vmatprep.subr.bf16.mxu0 0
      %4195 = vmatpush1.bf16.msra.mxu0 %v4150
      %4196 = vmatprep.subr.bf16.mxu0 0
      %4197 = vmatpush1.bf16.msra.mxu0 %v4151
      %4198 = vmatprep.subr.bf16.mxu0 0
      %4199 = vmatpush1.bf16.msra.mxu0 %v4152
      %4200 = vmatprep.subr.bf16.mxu0 0
      %4201 = vmatpush1.bf16.msra.mxu0 %v4153
      %4202 = vmatprep.mubr.bf16.mxu0 %v4026
      %4203 = vmatmul.mubr.bf16.gmra.mrb[0].mxu0 %v3900
      %v4204 = vpop.f32.mrb[0].mxu0
      %v4205 = vadd.f32 0.0, %v4204
      %v4206 = vpop.f32.mrb[0].mxu0
      %v4207 = vpop.f32.mrb[0].mxu0
      %v4208 = vadd.f32 0.0, %v4207
      %v4209 = vpop.f32.mrb[0].mxu0
      %4210 = vmatprep.mubr.bf16.mxu0 %v4027
      %4211 = vmatmul.mubr.bf16.gmra.mrb[0].mxu0 %v3901
      %v4212 = vpop.f32.mrb[0].mxu0
      %v4213 = vadd.f32 0.0, %v4212
      %v4214 = vpop.f32.mrb[0].mxu0
      %v4215 = vpop.f32.mrb[0].mxu0
      %v4216 = vadd.f32 0.0, %v4215
      %v4217 = vpop.f32.mrb[0].mxu0
      %4218 = vmatprep.mubr.bf16.mxu0 %v4028
      %4219 = vmatmul.mubr.bf16.gmra.mrb[0].mxu0 %v3902
      %v4220 = vpop.f32.mrb[0].mxu0
      %v4221 = vadd.f32 0.0, %v4220
      %v4222 = vpop.f32.mrb[0].mxu0
      %v4223 = vpop.f32.mrb[0].mxu0
      %v4224 = vadd.f32 0.0, %v4223
      %v4225 = vpop.f32.mrb[0].mxu0
      %4226 = vmatprep.mubr.bf16.mxu0 %v4029
      %4227 = vmatmul.mubr.bf16.gmra.mrb[0].mxu0 %v3903
      %v4228 = vpop.f32.mrb[0].mxu0
      %v4229 = vadd.f32 0.0, %v4228
      %v4230 = vpop.f32.mrb[0].mxu0
      %v4231 = vpop.f32.mrb[0].mxu0
      %v4232 = vadd.f32 0.0, %v4231
      %v4233 = vpop.f32.mrb[0].mxu0
      %4234 = vmatprep.mubr.bf16.mxu0 %v4030
      %4235 = vmatmul.mubr.bf16.gmra.mrb[0].mxu0 %v3904
      %v4236 = vpop.f32.mrb[0].mxu0
      %v4237 = vadd.f32 0.0, %v4236
      %v4238 = vpop.f32.mrb[0].mxu0
      %v4239 = vpop.f32.mrb[0].mxu0
      %v4240 = vadd.f32 0.0, %v4239
      %v4241 = vpop.f32.mrb[0].mxu0
      %4242 = vmatprep.mubr.bf16.mxu0 %v4031
      %4243 = vmatmul.mubr.bf16.gmra.mrb[0].mxu0 %v3905
      %v4244 = vpop.f32.mrb[0].mxu0
      %v4245 = vadd.f32 0.0, %v4244
      %v4246 = vpop.f32.mrb[0].mxu0
      %v4247 = vpop.f32.mrb[0].mxu0
      %v4248 = vadd.f32 0.0, %v4247
      %v4249 = vpop.f32.mrb[0].mxu0
      %4250 = vmatprep.mubr.bf16.mxu0 %v4032
      %4251 = vmatmul.mubr.bf16.gmra.mrb[0].mxu0 %v3906
      %v4252 = vpop.f32.mrb[0].mxu0
      %v4253 = vadd.f32 0.0, %v4252
      %v4254 = vpop.f32.mrb[0].mxu0
      %v4255 = vpop.f32.mrb[0].mxu0
      %v4256 = vadd.f32 0.0, %v4255
      %v4257 = vpop.f32.mrb[0].mxu0
      %4258 = vmatprep.mubr.bf16.mxu0 %v4033
      %4259 = vmatmul.mubr.bf16.gmra.mrb[0].mxu0 %v3907
      %v4260 = vpop.f32.mrb[0].mxu0
      %v4261 = vadd.f32 0.0, %v4260
      %v4262 = vpop.f32.mrb[0].mxu0
      %v4263 = vpop.f32.mrb[0].mxu0
      %v4264 = vadd.f32 0.0, %v4263
      %v4265 = vpop.f32.mrb[0].mxu0
      %4266 = vmatprep.mubr.bf16.mxu0 %v4034
      %4267 = vmatmul.mubr.bf16.gmra.mrb[0].mxu0 %v3908
      %v4268 = vpop.f32.mrb[0].mxu0
      %v4269 = vadd.f32 0.0, %v4268
      %v4270 = vpop.f32.mrb[0].mxu0
      %v4271 = vpop.f32.mrb[0].mxu0
      %v4272 = vadd.f32 0.0, %v4271
      %v4273 = vpop.f32.mrb[0].mxu0
      %4274 = vmatprep.mubr.bf16.mxu0 %v4035
      %4275 = vmatmul.mubr.bf16.gmra.mrb[0].mxu0 %v3909
      %v4276 = vpop.f32.mrb[0].mxu0
      %v4277 = vadd.f32 0.0, %v4276
      %v4278 = vpop.f32.mrb[0].mxu0
      %v4279 = vpop.f32.mrb[0].mxu0
      %v4280 = vadd.f32 0.0, %v4279
      %v4281 = vpop.f32.mrb[0].mxu0
      %4282 = vmatprep.mubr.bf16.mxu0 %v4036
      %4283 = vmatmul.mubr.bf16.gmra.mrb[0].mxu0 %v3910
      %v4284 = vpop.f32.mrb[0].mxu0
      %v4285 = vadd.f32 0.0, %v4284
      %v4286 = vpop.f32.mrb[0].mxu0
      %v4287 = vpop.f32.mrb[0].mxu0
      %v4288 = vadd.f32 0.0, %v4287
      %v4289 = vpop.f32.mrb[0].mxu0
      %4290 = vmatprep.mubr.bf16.mxu0 %v4037
      %4291 = vmatmul.mubr.bf16.gmra.mrb[0].mxu0 %v3911
      %v4292 = vpop.f32.mrb[0].mxu0
      %v4293 = vadd.f32 0.0, %v4292
      %v4294 = vpop.f32.mrb[0].mxu0
      %v4295 = vpop.f32.mrb[0].mxu0
      %v4296 = vadd.f32 0.0, %v4295
      %v4297 = vpop.f32.mrb[0].mxu0
      %4298 = vmatprep.mubr.bf16.mxu0 %v4038
      %4299 = vmatmul.mubr.bf16.gmra.mrb[0].mxu0 %v3912
      %v4300 = vpop.f32.mrb[0].mxu0
      %v4301 = vadd.f32 0.0, %v4300
      %v4302 = vpop.f32.mrb[0].mxu0
      %v4303 = vpop.f32.mrb[0].mxu0
      %v4304 = vadd.f32 0.0, %v4303
      %v4305 = vpop.f32.mrb[0].mxu0
      %4306 = vmatprep.mubr.bf16.mxu0 %v4039
      %4307 = vmatmul.mubr.bf16.gmra.mrb[0].mxu0 %v3913
      %v4308 = vpop.f32.mrb[0].mxu0
      %v4309 = vadd.f32 0.0, %v4308
      %v4310 = vpop.f32.mrb[0].mxu0
      %v4311 = vpop.f32.mrb[0].mxu0
      %v4312 = vadd.f32 0.0, %v4311
      %v4313 = vpop.f32.mrb[0].mxu0
      %4314 = vmatprep.mubr.bf16.mxu0 %v4040
      %4315 = vmatmul.mubr.bf16.gmra.mrb[0].mxu0 %v3914
      %v4316 = vpop.f32.mrb[0].mxu0
      %v4317 = vadd.f32 0.0, %v4316
      %v4318 = vpop.f32.mrb[0].mxu0
      %v4319 = vpop.f32.mrb[0].mxu0
      %v4320 = vadd.f32 0.0, %v4319
      %v4321 = vpop.f32.mrb[0].mxu0
      %4322 = vmatprep.mubr.bf16.mxu0 %v4041
      %4323 = vmatmul.mubr.bf16.gmra.mrb[0].mxu0 %v3915
      %v4324 = vpop.f32.mrb[0].mxu0
      %v4325 = vadd.f32 0.0, %v4324
      %v4326 = vpop.f32.mrb[0].mxu0
      %v4327 = vpop.f32.mrb[0].mxu0
      %v4328 = vadd.f32 0.0, %v4327
      %v4329 = vpop.f32.mrb[0].mxu0
      %4330 = vdwg.mxu0
      %vm4331 = vcmask 64512
      %4332 = vst.msk [vmem:[%s413] sm:$0xff] %vm4331, %v4205
      %4333 = vst.msk [vmem:[%s413 + $0x8] sm:$0xff] %vm4331, %v4208
      %4334 = vst.msk [vmem:[%s413 + $0x10] sm:$0xff] %vm4331, %v4213
      %4335 = vst.msk [vmem:[%s413 + $0x18] sm:$0xff] %vm4331, %v4216
      %4336 = vst.msk [vmem:[%s413 + $0x20] sm:$0xff] %vm4331, %v4221
      %4337 = vst.msk [vmem:[%s413 + $0x28] sm:$0xff] %vm4331, %v4224
      %4338 = vst.msk [vmem:[%s413 + $0x30] sm:$0xff] %vm4331, %v4229
      %4339 = vst.msk [vmem:[%s413 + $0x38] sm:$0xff] %vm4331, %v4232
      %4340 = vst.msk [vmem:[%s413 + $0x40] sm:$0xff] %vm4331, %v4237
      %4341 = vst.msk [vmem:[%s413 + $0x48] sm:$0xff] %vm4331, %v4240
      %4342 = vst.msk [vmem:[%s413 + $0x50] sm:$0xff] %vm4331, %v4245
      %4343 = vst.msk [vmem:[%s413 + $0x58] sm:$0xff] %vm4331, %v4248
      %4344 = vst.msk [vmem:[%s413 + $0x60] sm:$0xff] %vm4331, %v4253
      %4345 = vst.msk [vmem:[%s413 + $0x68] sm:$0xff] %vm4331, %v4256
      %4346 = vst.msk [vmem:[%s413 + $0x70] sm:$0xff] %vm4331, %v4261
      %4347 = vst.msk [vmem:[%s413 + $0x78] sm:$0xff] %vm4331, %v4264
      %4348 = vst.msk [vmem:[%s413 + $0x80] sm:$0xff] %vm4331, %v4269
      %4349 = vst.msk [vmem:[%s413 + $0x88] sm:$0xff] %vm4331, %v4272
      %4350 = vst.msk [vmem:[%s413 + $0x90] sm:$0xff] %vm4331, %v4277
      %4351 = vst.msk [vmem:[%s413 + $0x98] sm:$0xff] %vm4331, %v4280
      %4352 = vst.msk [vmem:[%s413 + $0xa0] sm:$0xff] %vm4331, %v4285
      %4353 = vst.msk [vmem:[%s413 + $0xa8] sm:$0xff] %vm4331, %v4288
      %4354 = vst.msk [vmem:[%s413 + $0xb0] sm:$0xff] %vm4331, %v4293
      %4355 = vst.msk [vmem:[%s413 + $0xb8] sm:$0xff] %vm4331, %v4296
      %4356 = vst.msk [vmem:[%s413 + $0xc0] sm:$0xff] %vm4331, %v4301
      %4357 = vst.msk [vmem:[%s413 + $0xc8] sm:$0xff] %vm4331, %v4304
      %4358 = vst.msk [vmem:[%s413 + $0xd0] sm:$0xff] %vm4331, %v4309
      %4359 = vst.msk [vmem:[%s413 + $0xd8] sm:$0xff] %vm4331, %v4312
      %4360 = vst.msk [vmem:[%s413 + $0xe0] sm:$0xff] %vm4331, %v4317
      %4361 = vst.msk [vmem:[%s413 + $0xe8] sm:$0xff] %vm4331, %v4320
      %4362 = vst.msk [vmem:[%s413 + $0xf0] sm:$0xff] %vm4331, %v4325
      %4363 = vst.msk [vmem:[%s413 + $0xf8] sm:$0xff] %vm4331, %v4328
      %p4364 = scmp.lt.s32.totalorder %s23, 1
      %s4365 = scalar_select %p4364, %s23, 1
      %s4366 = smul.addr %s4365, 32
      %s4367 = smul.addr %s4366, 8
      %s4368 = scalar_lea.vmem %s12, %s4367
      // Predicated region
      $region69: #{decoder_bottleneck_forward.1} parent=67 // pred_check
        %p4369 = pneg %p298
      $region70: #{decoder_bottleneck_forward.1} parent=67 // pred_check_branch
        %4371 = sbr.rel (%p4369) target = $region72
      $region71: #{decoder_bottleneck_forward.1} parent=67 // pred_region
        _
      $region72: #{decoder_bottleneck_forward.1} parent=67 // pred_fallthru
        _
    $region68: #{decoder_bottleneck_forward.1} parent=5 // pred_fallthru
      _
    %p4372 = scmp.le.s32.totalorder 2, %s18
    // Predicated region
    $region73: #{decoder_bottleneck_forward.1} parent=5 // pred_check
      %p4373 = pneg %p4372
    $region74: #{decoder_bottleneck_forward.1} parent=5 // pred_check_branch
      %4375 = sbr.rel (%p4373) target = $region76
    $region75: #{decoder_bottleneck_forward.1} parent=5 // pred_region
      %s4376 = ssub.s32 %s18, 2
      // Predicated region
      $region77: #{decoder_bottleneck_forward.1} parent=75 // pred_check
        %p4377 = pneg %p304
      $region78: #{decoder_bottleneck_forward.1} parent=75 // pred_check_branch
        %4379 = sbr.rel (%p4377) target = $region80
      $region79: #{decoder_bottleneck_forward.1} parent=75 // pred_region
        %p4380 = scmp.lt.s32.totalorder %s24, 1
        %s4381 = scalar_select %p4380, %s24, 1
        %s4382 = smul.addr %s4381, 32
        %s4383 = smul.addr %s4382, 8
        %s4384 = scalar_lea.vmem %s12, %s4383
      $region80: #{decoder_bottleneck_forward.1} parent=75 // pred_fallthru
        _
    $region76: #{decoder_bottleneck_forward.1} parent=5 // pred_fallthru
      _
  $region6: #{decoder_bottleneck_forward.1} parent=0 // loop_footer
    %s22 = sadd.s32 1, %s18
  $region7: #{decoder_bottleneck_forward.1} parent=0 // loop_footer_branch
    %17 = sbr.rel target = $region3
  $region8: #{decoder_bottleneck_forward.1} parent=0 // loop_exit
    _

</llo_original>
